<compile_context>
chip_gen: v7x
topology: tpu7x:2x2x1
jax: 0.10.0
libtpu: 0.0.40
codegen_flags: <defaults>
</compile_context>

<pallas_src>
import functools
import math

import jax
import jax.numpy as jnp
from jax.experimental import pallas as pl
from jax.experimental.pallas import tpu as pltpu

D_MODEL = 32
D_FF = 64
N_HEADS = 4                      # d_model % n_heads == 0  ->  d_k = 8
D_K = D_MODEL // N_HEADS
KERNEL_SIZE = 7                  # (kernel_size - 1) % 2 == 0
EPS = 1e-5


def conformer_layer_kernel(
    # activations / rope tables
    x_ref, cos_ref, sneg_ref, spos_ref,
    # layer norms, stacked rows [ff1, att, conv, ff2, out]
    ln_g_ref, ln_b_ref,
    # feed forward 1
    ff1_w1_ref, ff1_b1_ref, ff1_w2_ref, ff1_b2_ref,
    # attention
    qkv_w_ref, qkv_b_ref, wo_ref, bo_ref,
    # convolution module
    pw1_wa_ref, pw1_ba_ref, pw1_wb_ref, pw1_bb_ref,
    dw_w_ref, dw_b_ref, bn_scale_ref, bn_shift_ref,
    pw2_w_ref, pw2_b_ref,
    # feed forward 2
    ff2_w1_ref, ff2_b1_ref, ff2_w2_ref, ff2_b2_ref,
    # output
    o_ref,
    *, batch, seq_len, n_heads, matmul_dtype,
):
    B, T, H = batch, seq_len, n_heads
    x = x_ref[...]                       # (B*T, D) activations, time-major per batch
    BT, D = x.shape
    dk = D // H
    half = dk // 2

    def mm(a, b):
        # MXU matmul; operands cast to matmul_dtype (bf16 at production sizes),
        # accumulation kept in f32.
        return jnp.dot(a.astype(matmul_dtype), b.astype(matmul_dtype),
                       preferred_element_type=jnp.float32)

    def sigmoid(v):
        # exp + approximate reciprocal both land on the EUP (no long divide).
        return pl.reciprocal(1.0 + jnp.exp(-v), approx=True)

    def silu(v):
        return v * sigmoid(v)

    def layernorm(v, idx):
        mu = jnp.mean(v, axis=-1, keepdims=True)
        var = jnp.mean((v - mu) ** 2, axis=-1, keepdims=True)
        return ((v - mu) * jax.lax.rsqrt(var + EPS)
                * ln_g_ref[idx:idx + 1, :] + ln_b_ref[idx:idx + 1, :])

    def ffn(v, w1_ref, b1_ref, w2_ref, b2_ref):
        h = silu(mm(v, w1_ref[...]) + b1_ref[...])
        return mm(h, w2_ref[...]) + b2_ref[...]

    residual = x

    # ---------------- feed forward 1 (half residual) ----------------
    residual = residual + 0.5 * ffn(layernorm(residual, 0),
                                    ff1_w1_ref, ff1_b1_ref,
                                    ff1_w2_ref, ff1_b2_ref)

    # ---------------- rotary multi-head self attention ----------------
    xa = layernorm(residual, 1)

    # RoPE on the pre-projection features (the GigaAM reference rotates q/k
    # BEFORE linear_q / linear_k).  rtt_half within each head block is built
    # from two global lane rolls; lanes that would pick up wrong-head /
    # wrapped data are zeroed by the precomputed masked sin tables.
    # pltpu.roll follows jnp.roll semantics: rolled[:, j] = x[:, (j - shift) % D].
    x_rot = (xa * cos_ref[...]
             + pltpu.roll(xa, D - half, axis=1) * sneg_ref[...]   # -x[j+half]*sin
             + pltpu.roll(xa, half, axis=1) * spos_ref[...])      # +x[j-half]*sin

    q = mm(x_rot, qkv_w_ref[0]) + qkv_b_ref[0:1, :]
    k = (mm(x_rot, qkv_w_ref[1]) + qkv_b_ref[1:2, :]) * (1.0 / math.sqrt(dk))
    v = mm(xa, qkv_w_ref[2]) + qkv_b_ref[2:3, :]

    def to_heads(m):                                  # (B*T, D) -> (H*B, T, dk)
        parts = [m[:, h * dk:(h + 1) * dk].reshape(B, T, dk) for h in range(H)]
        return jnp.stack(parts, axis=0).reshape(H * B, T, dk)

    qg, kg, vg = to_heads(q), to_heads(k), to_heads(v)

    # Single batched score / context matmul pair over the (H*B) batch axis.
    # TODO(synk): at production T, tile the KV axis with an online (flash)
    # softmax so the (H*B, T, T) scores never fully materialize (v7x VMEM).
    s = jnp.einsum('gid,gjd->gij', qg.astype(matmul_dtype),
                   kg.astype(matmul_dtype),
                   preferred_element_type=jnp.float32)            # (H*B, T, T)
    s = s - jnp.max(s, axis=-1, keepdims=True)
    p = jnp.exp(s)
    p = p * pl.reciprocal(jnp.sum(p, axis=-1, keepdims=True), approx=True)
    ctx = jnp.einsum('gij,gjd->gid', p.astype(matmul_dtype),
                     vg.astype(matmul_dtype),
                     preferred_element_type=jnp.float32)          # (H*B, T, dk)

    # Output projection accumulated per head against the (H, dk, D) split of
    # W_out -> no lane concatenate of head contexts.
    attn_out = jnp.zeros((BT, D), jnp.float32)
    for h in range(H):
        ctx_h = ctx[h * B:(h + 1) * B].reshape(BT, dk)
        attn_out = attn_out + mm(ctx_h, wo_ref[h])
    residual = residual + attn_out + bo_ref[...]

    # ---------------- conformer convolution module ----------------
    xc = layernorm(residual, 2)
    # pointwise conv 1 + GLU; (D, 2D) weight pre-split in the wrapper so there
    # is no mid-lane slice of a (.., 2D) matmul result.
    y = ((mm(xc, pw1_wa_ref[...]) + pw1_ba_ref[...])
         * sigmoid(mm(xc, pw1_wb_ref[...]) + pw1_bb_ref[...]))

    # Depthwise conv along time: K static sublane rolls + boundary masks.
    # The mask zeroes taps that fall outside [0, T) which also prevents any
    # bleed across batch boundaries in the flattened (B*T) layout.
    K = dw_w_ref.shape[0]
    P = (K - 1) // 2
    t_idx = jax.lax.broadcasted_iota(jnp.int32, (B, T, D), 1).reshape(BT, D)
    conv = jnp.zeros((BT, D), jnp.float32)
    for kk in range(K):
        off = kk - P
        if off == 0:
            src = y
        else:
            src = pltpu.roll(y, (-off) % BT, axis=0)   # src[i] = y[i + off]
            if off < 0:
                src = jnp.where(t_idx >= -off, src, 0.0)
            else:
                src = jnp.where(t_idx < T - off, src, 0.0)
        conv = conv + src * dw_w_ref[kk:kk + 1, :]
    y = conv + dw_b_ref[...]

    # TODO(synk): BatchNorm1d is reproduced in eval mode only (running stats,
    # pre-folded to scale/shift in the wrapper); training-mode cross-batch
    # statistics are not computed here.
    y = y * bn_scale_ref[...] + bn_shift_ref[...]
    y = silu(y)
    y = mm(y, pw2_w_ref[...]) + pw2_b_ref[...]
    residual = residual + y

    # -------- feed forward 2 (half residual) + output norm --------
    residual = residual + 0.5 * ffn(layernorm(residual, 3),
                                    ff2_w1_ref, ff2_b1_ref,
                                    ff2_w2_ref, ff2_b2_ref)
    # NOTE: D=32 < 128 lanes -> masked store; disappears at production d_model.
    o_ref[...] = layernorm(residual, 4).astype(o_ref.dtype)


def conformer_layer(x, params, cos, sin, *, n_heads=N_HEADS,
                    matmul_dtype=jnp.float32):
    B, T, D = x.shape
    assert D % n_heads == 0
    dk = D // n_heads
    half = dk // 2
    BT = B * T

    # Wrapper-side reshape: fold the batch into the matmul M dimension.
    x2 = x.reshape(BT, D)

    # ---- RoPE tables tiled to full feature width, batch-flattened time ----
    cos_full = jnp.tile(cos, (1, n_heads)).astype(jnp.float32)     # (T, D)
    sin_full = jnp.tile(sin, (1, n_heads)).astype(jnp.float32)
    lane_lo = (jnp.arange(D) % dk) < half
    sin_neg = jnp.where(lane_lo, -sin_full, 0.0)   # pairs with roll by D-half
    sin_pos = jnp.where(lane_lo, 0.0, sin_full)    # pairs with roll by half
    cos_bt = jnp.tile(cos_full, (B, 1))            # (B*T, D)
    sneg_bt = jnp.tile(sin_neg, (B, 1))
    spos_bt = jnp.tile(sin_pos, (B, 1))

    # ---- one-time parameter re-packing (outside the kernel) ----
    qkv_w = params["attn_w"][:3]                                   # (3, D, D)
    qkv_b = params["attn_b"][:3]                                   # (3, D)
    wo = params["attn_w"][3].reshape(n_heads, dk, D)               # (H, dk, D)
    bo = params["attn_b"][3:4]                                     # (1, D)

    pw1_wa = params["pw1_w"][:, :D]
    pw1_wb = params["pw1_w"][:, D:]
    pw1_ba = params["pw1_b"][:, :D]
    pw1_bb = params["pw1_b"][:, D:]

    bn = params["bn"]                              # rows: [gamma, beta, mean, var]
    bn_scale = (bn[0] * jax.lax.rsqrt(bn[3] + EPS))[None, :]
    bn_shift = bn[1][None, :] - bn[2][None, :] * bn_scale

    args = (
        x2, cos_bt, sneg_bt, spos_bt,
        params["ln_g"], params["ln_b"],
        params["ff1_w1"], params["ff1_b1"], params["ff1_w2"], params["ff1_b2"],
        qkv_w, qkv_b, wo, bo,
        pw1_wa, pw1_ba, pw1_wb, pw1_bb,
        params["dw_w"], params["dw_b"], bn_scale, bn_shift,
        params["pw2_w"], params["pw2_b"],
        params["ff2_w1"], params["ff2_b1"], params["ff2_w2"], params["ff2_b2"],
    )

    # Single grid step: at these shapes everything fits VMEM comfortably and
    # one step avoids the ~0.35us per-step pipeline overhead.  At production
    # sizes: raise vmem_limit_bytes (v5e), single-buffer the constant weight
    # inputs, and shard a leading "parallel" batch axis across v7x's 2 TCs.
    in_specs = [pl.BlockSpec(a.shape, lambda i, _nd=a.ndim: (0,) * _nd)
                for a in args]
    out_spec = pl.BlockSpec((BT, D), lambda i: (0, 0))

    kernel = functools.partial(conformer_layer_kernel, batch=B, seq_len=T,
                               n_heads=n_heads, matmul_dtype=matmul_dtype)

    out2 = pl.pallas_call(
        kernel,
        out_shape=jax.ShapeDtypeStruct((BT, D), x.dtype),
        grid_spec=pltpu.PrefetchScalarGridSpec(
            num_scalar_prefetch=0,
            grid=(1,),
            in_specs=in_specs,
            out_specs=out_spec,
        ),
        compiler_params=pltpu.CompilerParams(
            dimension_semantics=("arbitrary",)),
    )(*args)
    return out2.reshape(B, T, D)


def init_params(key, d_model, d_ff, kernel_size):
    keys = jax.random.split(key, 10)

    def w(k, shape, scale=0.05):
        return (scale * jax.random.normal(k, shape)).astype(jnp.float32)

    return {
        # layernorm params stacked: [ff1, att, conv, ff2, out]
        "ln_g": jnp.ones((5, d_model), jnp.float32),
        "ln_b": jnp.zeros((5, d_model), jnp.float32),
        "ff1_w1": w(keys[0], (d_model, d_ff)),
        "ff1_b1": jnp.zeros((1, d_ff), jnp.float32),
        "ff1_w2": w(keys[1], (d_ff, d_model)),
        "ff1_b2": jnp.zeros((1, d_model), jnp.float32),
        # attention weights stacked [q, k, v, out], stored as (in, out)
        "attn_w": w(keys[2], (4, d_model, d_model)),
        "attn_b": w(keys[3], (4, d_model), 0.01),
        "pw1_w": w(keys[4], (d_model, 2 * d_model)),
        "pw1_b": jnp.zeros((1, 2 * d_model), jnp.float32),
        "dw_w": w(keys[5], (kernel_size, d_model)),
        "dw_b": jnp.zeros((1, d_model), jnp.float32),
        # batch norm rows: [gamma, beta, running_mean, running_var]
        "bn": jnp.stack([jnp.ones(d_model), jnp.zeros(d_model),
                         jnp.zeros(d_model), jnp.ones(d_model)]).astype(jnp.float32),
        "pw2_w": w(keys[6], (d_model, d_model)),
        "pw2_b": jnp.zeros((1, d_model), jnp.float32),
        "ff2_w1": w(keys[7], (d_model, d_ff)),
        "ff2_b1": jnp.zeros((1, d_ff), jnp.float32),
        "ff2_w2": w(keys[8], (d_ff, d_model)),
        "ff2_b2": jnp.zeros((1, d_model), jnp.float32),
    }


def make_rope(T, dk):
    inv_freq = 1.0 / (10000.0 ** (jnp.arange(0, dk, 2, dtype=jnp.float32) / dk))
    ang = jnp.arange(T, dtype=jnp.float32)[:, None] * inv_freq[None, :]
    emb = jnp.concatenate([ang, ang], axis=-1)     # (T, dk)
    return jnp.cos(emb), jnp.sin(emb)


if __name__ == "__main__":
    key = jax.random.PRNGKey(0)
    kx, kp = jax.random.split(key)
    B, T = 2, 8
    x = jax.random.normal(kx, (B, T, D_MODEL), dtype=jnp.float32)
    params = init_params(kp, D_MODEL, D_FF, KERNEL_SIZE)
    cos, sin = make_rope(T, D_K)

    out = conformer_layer(x, params, cos, sin)
    out = jax.block_until_ready(out)
    assert out.shape == (B, T, D_MODEL)
    assert bool(jnp.all(jnp.isfinite(out)))
    print("KERNEL_OK")
</pallas_src>

<mosaic_0001>
module attributes {stable_mosaic.version = 11 : i64} {
  func.func @conformer_layer_kernel(%arg0: i32, %arg1: memref<16x32xf32, #tpu.memory_space<vmem>>, %arg2: memref<16x32xf32, #tpu.memory_space<vmem>>, %arg3: memref<16x32xf32, #tpu.memory_space<vmem>>, %arg4: memref<16x32xf32, #tpu.memory_space<vmem>>, %arg5: memref<5x32xf32, #tpu.memory_space<vmem>>, %arg6: memref<5x32xf32, #tpu.memory_space<vmem>>, %arg7: memref<32x64xf32, #tpu.memory_space<vmem>>, %arg8: memref<1x64xf32, #tpu.memory_space<vmem>>, %arg9: memref<64x32xf32, #tpu.memory_space<vmem>>, %arg10: memref<1x32xf32, #tpu.memory_space<vmem>>, %arg11: memref<3x32x32xf32, #tpu.memory_space<vmem>>, %arg12: memref<3x32xf32, #tpu.memory_space<vmem>>, %arg13: memref<4x8x32xf32, #tpu.memory_space<vmem>>, %arg14: memref<1x32xf32, #tpu.memory_space<vmem>>, %arg15: memref<32x32xf32, #tpu.memory_space<vmem>>, %arg16: memref<1x32xf32, #tpu.memory_space<vmem>>, %arg17: memref<32x32xf32, #tpu.memory_space<vmem>>, %arg18: memref<1x32xf32, #tpu.memory_space<vmem>>, %arg19: memref<7x32xf32, #tpu.memory_space<vmem>>, %arg20: memref<1x32xf32, #tpu.memory_space<vmem>>, %arg21: memref<1x32xf32, #tpu.memory_space<vmem>>, %arg22: memref<1x32xf32, #tpu.memory_space<vmem>>, %arg23: memref<32x32xf32, #tpu.memory_space<vmem>>, %arg24: memref<1x32xf32, #tpu.memory_space<vmem>>, %arg25: memref<32x64xf32, #tpu.memory_space<vmem>>, %arg26: memref<1x64xf32, #tpu.memory_space<vmem>>, %arg27: memref<64x32xf32, #tpu.memory_space<vmem>>, %arg28: memref<1x32xf32, #tpu.memory_space<vmem>>, %arg29: memref<16x32xf32, #tpu.memory_space<vmem>>) attributes {dimension_semantics = [#tpu.dimension_semantics<arbitrary>], iteration_bounds = array<i64: 1>, scalar_prefetch = 0 : i64, scratch_operands = 0 : i64, tpu.core_type = #tpu.core_type<tc>, window_params = [{pipeline_mode = #tpu.pipeline_mode<synchronous>, transform_indices = @transform_0, window_bounds = array<i64: 16, 32>}, {pipeline_mode = #tpu.pipeline_mode<synchronous>, transform_indices = @transform_1, window_bounds = array<i64: 16, 32>}, {pipeline_mode = #tpu.pipeline_mode<synchronous>, transform_indices = @transform_2, window_bounds = array<i64: 16, 32>}, {pipeline_mode = #tpu.pipeline_mode<synchronous>, transform_indices = @transform_3, window_bounds = array<i64: 16, 32>}, {pipeline_mode = #tpu.pipeline_mode<synchronous>, transform_indices = @transform_4, window_bounds = array<i64: 5, 32>}, {pipeline_mode = #tpu.pipeline_mode<synchronous>, transform_indices = @transform_5, window_bounds = array<i64: 5, 32>}, {pipeline_mode = #tpu.pipeline_mode<synchronous>, transform_indices = @transform_6, window_bounds = array<i64: 32, 64>}, {pipeline_mode = #tpu.pipeline_mode<synchronous>, transform_indices = @transform_7, window_bounds = array<i64: 1, 64>}, {pipeline_mode = #tpu.pipeline_mode<synchronous>, transform_indices = @transform_8, window_bounds = array<i64: 64, 32>}, {pipeline_mode = #tpu.pipeline_mode<synchronous>, transform_indices = @transform_9, window_bounds = array<i64: 1, 32>}, {pipeline_mode = #tpu.pipeline_mode<synchronous>, transform_indices = @transform_10, window_bounds = array<i64: 3, 32, 32>}, {pipeline_mode = #tpu.pipeline_mode<synchronous>, transform_indices = @transform_11, window_bounds = array<i64: 3, 32>}, {pipeline_mode = #tpu.pipeline_mode<synchronous>, transform_indices = @transform_12, window_bounds = array<i64: 4, 8, 32>}, {pipeline_mode = #tpu.pipeline_mode<synchronous>, transform_indices = @transform_13, window_bounds = array<i64: 1, 32>}, {pipeline_mode = #tpu.pipeline_mode<synchronous>, transform_indices = @transform_14, window_bounds = array<i64: 32, 32>}, {pipeline_mode = #tpu.pipeline_mode<synchronous>, transform_indices = @transform_15, window_bounds = array<i64: 1, 32>}, {pipeline_mode = #tpu.pipeline_mode<synchronous>, transform_indices = @transform_16, window_bounds = array<i64: 32, 32>}, {pipeline_mode = #tpu.pipeline_mode<synchronous>, transform_indices = @transform_17, window_bounds = array<i64: 1, 32>}, {pipeline_mode = #tpu.pipeline_mode<synchronous>, transform_indices = @transform_18, window_bounds = array<i64: 7, 32>}, {pipeline_mode = #tpu.pipeline_mode<synchronous>, transform_indices = @transform_19, window_bounds = array<i64: 1, 32>}, {pipeline_mode = #tpu.pipeline_mode<synchronous>, transform_indices = @transform_20, window_bounds = array<i64: 1, 32>}, {pipeline_mode = #tpu.pipeline_mode<synchronous>, transform_indices = @transform_21, window_bounds = array<i64: 1, 32>}, {pipeline_mode = #tpu.pipeline_mode<synchronous>, transform_indices = @transform_22, window_bounds = array<i64: 32, 32>}, {pipeline_mode = #tpu.pipeline_mode<synchronous>, transform_indices = @transform_23, window_bounds = array<i64: 1, 32>}, {pipeline_mode = #tpu.pipeline_mode<synchronous>, transform_indices = @transform_24, window_bounds = array<i64: 32, 64>}, {pipeline_mode = #tpu.pipeline_mode<synchronous>, transform_indices = @transform_25, window_bounds = array<i64: 1, 64>}, {pipeline_mode = #tpu.pipeline_mode<synchronous>, transform_indices = @transform_26, window_bounds = array<i64: 64, 32>}, {pipeline_mode = #tpu.pipeline_mode<synchronous>, transform_indices = @transform_27, window_bounds = array<i64: 1, 32>}, {pipeline_mode = #tpu.pipeline_mode<synchronous>, transform_indices = @transform_28, window_bounds = array<i64: 16, 32>}]} {
    %c0 = arith.constant 0 : index
    %c0_0 = arith.constant 0 : index
    %0 = vector.load %arg1[%c0, %c0_0] : memref<16x32xf32, #tpu.memory_space<vmem>>, vector<16x32xf32>
    %cst = arith.constant dense<0.000000e+00> : vector<16xf32>
    %1 = vector.multi_reduction <add>, %0, %cst [1] : vector<16x32xf32> to vector<16xf32>
    %2 = vector.shape_cast %1 : vector<16xf32> to vector<16x1xf32>
    %cst_1 = arith.constant 3.200000e+01 : f32
    %3 = vector.broadcast %cst_1 : f32 to vector<16x1xf32>
    %4 = arith.divf %2, %3 : vector<16x1xf32>
    %5 = vector.broadcast %4 : vector<16x1xf32> to vector<16x32xf32>
    %6 = arith.subf %0, %5 : vector<16x32xf32>
    %7 = arith.mulf %6, %6 : vector<16x32xf32>
    %cst_2 = arith.constant dense<0.000000e+00> : vector<16xf32>
    %8 = vector.multi_reduction <add>, %7, %cst_2 [1] : vector<16x32xf32> to vector<16xf32>
    %9 = vector.shape_cast %8 : vector<16xf32> to vector<16x1xf32>
    %cst_3 = arith.constant 3.200000e+01 : f32
    %10 = vector.broadcast %cst_3 : f32 to vector<16x1xf32>
    %11 = arith.divf %9, %10 : vector<16x1xf32>
    %12 = vector.broadcast %4 : vector<16x1xf32> to vector<16x32xf32>
    %13 = arith.subf %0, %12 : vector<16x32xf32>
    %cst_4 = arith.constant 9.99999974E-6 : f32
    %14 = vector.broadcast %cst_4 : f32 to vector<16x1xf32>
    %15 = arith.addf %11, %14 : vector<16x1xf32>
    %16 = math.rsqrt %15 : vector<16x1xf32>
    %17 = vector.broadcast %16 : vector<16x1xf32> to vector<16x32xf32>
    %18 = arith.mulf %13, %17 : vector<16x32xf32>
    %c0_5 = arith.constant 0 : index
    %c0_6 = arith.constant 0 : index
    %19 = vector.load %arg5[%c0_5, %c0_6] : memref<5x32xf32, #tpu.memory_space<vmem>>, vector<1x32xf32>
    %20 = vector.broadcast %19 : vector<1x32xf32> to vector<16x32xf32>
    %21 = arith.mulf %18, %20 : vector<16x32xf32>
    %c0_7 = arith.constant 0 : index
    %c0_8 = arith.constant 0 : index
    %22 = vector.load %arg6[%c0_7, %c0_8] : memref<5x32xf32, #tpu.memory_space<vmem>>, vector<1x32xf32>
    %23 = vector.broadcast %22 : vector<1x32xf32> to vector<16x32xf32>
    %24 = arith.addf %21, %23 : vector<16x32xf32>
    %c0_9 = arith.constant 0 : index
    %c0_10 = arith.constant 0 : index
    %25 = vector.load %arg7[%c0_9, %c0_10] : memref<32x64xf32, #tpu.memory_space<vmem>>, vector<32x64xf32>
    %cst_11 = arith.constant dense<0.000000e+00> : vector<16x64xf32>
    %26 = tpu.matmul %24, %25, %cst_11 {dimension_numbers = #tpu.dot_dimension_numbers<[1], [0], [0], [1], [0, 0, 1, 1], [], []>} : vector<16x32xf32>, vector<32x64xf32>, vector<16x64xf32> -> vector<16x64xf32>
    %c0_12 = arith.constant 0 : index
    %c0_13 = arith.constant 0 : index
    %27 = vector.load %arg8[%c0_12, %c0_13] : memref<1x64xf32, #tpu.memory_space<vmem>>, vector<1x64xf32>
    %28 = vector.broadcast %27 : vector<1x64xf32> to vector<16x64xf32>
    %29 = arith.addf %26, %28 : vector<16x64xf32>
    %cst_14 = arith.constant 0.000000e+00 : f32
    %30 = vector.broadcast %cst_14 : f32 to vector<16x64xf32>
    %31 = arith.subf %30, %29 : vector<16x64xf32>
    %32 = math.exp %31 : vector<16x64xf32>
    %cst_15 = arith.constant 1.000000e+00 : f32
    %33 = vector.broadcast %cst_15 : f32 to vector<16x64xf32>
    %34 = arith.addf %33, %32 : vector<16x64xf32>
    %35 = tpu.reciprocal %34 {approx = true} : vector<16x64xf32> -> vector<16x64xf32>
    %36 = arith.mulf %29, %35 : vector<16x64xf32>
    %c0_16 = arith.constant 0 : index
    %c0_17 = arith.constant 0 : index
    %37 = vector.load %arg9[%c0_16, %c0_17] : memref<64x32xf32, #tpu.memory_space<vmem>>, vector<64x32xf32>
    %cst_18 = arith.constant dense<0.000000e+00> : vector<16x32xf32>
    %38 = tpu.matmul %36, %37, %cst_18 {dimension_numbers = #tpu.dot_dimension_numbers<[1], [0], [0], [1], [0, 0, 1, 1], [], []>} : vector<16x64xf32>, vector<64x32xf32>, vector<16x32xf32> -> vector<16x32xf32>
    %c0_19 = arith.constant 0 : index
    %c0_20 = arith.constant 0 : index
    %39 = vector.load %arg10[%c0_19, %c0_20] : memref<1x32xf32, #tpu.memory_space<vmem>>, vector<1x32xf32>
    %40 = vector.broadcast %39 : vector<1x32xf32> to vector<16x32xf32>
    %41 = arith.addf %38, %40 : vector<16x32xf32>
    %cst_21 = arith.constant 5.000000e-01 : f32
    %42 = vector.broadcast %cst_21 : f32 to vector<16x32xf32>
    %43 = arith.mulf %42, %41 : vector<16x32xf32>
    %44 = arith.addf %0, %43 : vector<16x32xf32>
    %cst_22 = arith.constant dense<0.000000e+00> : vector<16xf32>
    %45 = vector.multi_reduction <add>, %44, %cst_22 [1] : vector<16x32xf32> to vector<16xf32>
    %46 = vector.shape_cast %45 : vector<16xf32> to vector<16x1xf32>
    %cst_23 = arith.constant 3.200000e+01 : f32
    %47 = vector.broadcast %cst_23 : f32 to vector<16x1xf32>
    %48 = arith.divf %46, %47 : vector<16x1xf32>
    %49 = vector.broadcast %48 : vector<16x1xf32> to vector<16x32xf32>
    %50 = arith.subf %44, %49 : vector<16x32xf32>
    %51 = arith.mulf %50, %50 : vector<16x32xf32>
    %cst_24 = arith.constant dense<0.000000e+00> : vector<16xf32>
    %52 = vector.multi_reduction <add>, %51, %cst_24 [1] : vector<16x32xf32> to vector<16xf32>
    %53 = vector.shape_cast %52 : vector<16xf32> to vector<16x1xf32>
    %cst_25 = arith.constant 3.200000e+01 : f32
    %54 = vector.broadcast %cst_25 : f32 to vector<16x1xf32>
    %55 = arith.divf %53, %54 : vector<16x1xf32>
    %56 = vector.broadcast %48 : vector<16x1xf32> to vector<16x32xf32>
    %57 = arith.subf %44, %56 : vector<16x32xf32>
    %cst_26 = arith.constant 9.99999974E-6 : f32
    %58 = vector.broadcast %cst_26 : f32 to vector<16x1xf32>
    %59 = arith.addf %55, %58 : vector<16x1xf32>
    %60 = math.rsqrt %59 : vector<16x1xf32>
    %61 = vector.broadcast %60 : vector<16x1xf32> to vector<16x32xf32>
    %62 = arith.mulf %57, %61 : vector<16x32xf32>
    %c1 = arith.constant 1 : index
    %c0_27 = arith.constant 0 : index
    %63 = vector.load %arg5[%c1, %c0_27] : memref<5x32xf32, #tpu.memory_space<vmem>>, vector<1x32xf32>
    %64 = vector.broadcast %63 : vector<1x32xf32> to vector<16x32xf32>
    %65 = arith.mulf %62, %64 : vector<16x32xf32>
    %c1_28 = arith.constant 1 : index
    %c0_29 = arith.constant 0 : index
    %66 = vector.load %arg6[%c1_28, %c0_29] : memref<5x32xf32, #tpu.memory_space<vmem>>, vector<1x32xf32>
    %67 = vector.broadcast %66 : vector<1x32xf32> to vector<16x32xf32>
    %68 = arith.addf %65, %67 : vector<16x32xf32>
    %c0_30 = arith.constant 0 : index
    %c0_31 = arith.constant 0 : index
    %69 = vector.load %arg2[%c0_30, %c0_31] : memref<16x32xf32, #tpu.memory_space<vmem>>, vector<16x32xf32>
    %70 = arith.mulf %68, %69 : vector<16x32xf32>
    %c28_i32 = arith.constant 28 : i32
    %71 = tpu.dynamic_rotate %68 by %c28_i32 dim 1 : vector<16x32xf32>, i32 -> vector<16x32xf32>
    %c0_32 = arith.constant 0 : index
    %c0_33 = arith.constant 0 : index
    %72 = vector.load %arg3[%c0_32, %c0_33] : memref<16x32xf32, #tpu.memory_space<vmem>>, vector<16x32xf32>
    %73 = arith.mulf %71, %72 : vector<16x32xf32>
    %74 = arith.addf %70, %73 : vector<16x32xf32>
    %c4_i32 = arith.constant 4 : i32
    %75 = tpu.dynamic_rotate %68 by %c4_i32 dim 1 : vector<16x32xf32>, i32 -> vector<16x32xf32>
    %c0_34 = arith.constant 0 : index
    %c0_35 = arith.constant 0 : index
    %76 = vector.load %arg4[%c0_34, %c0_35] : memref<16x32xf32, #tpu.memory_space<vmem>>, vector<16x32xf32>
    %77 = arith.mulf %75, %76 : vector<16x32xf32>
    %78 = arith.addf %74, %77 : vector<16x32xf32>
    %c0_36 = arith.constant 0 : index
    %c0_37 = arith.constant 0 : index
    %c0_38 = arith.constant 0 : index
    %79 = vector.load %arg11[%c0_36, %c0_37, %c0_38] : memref<3x32x32xf32, #tpu.memory_space<vmem>>, vector<1x32x32xf32>
    %80 = vector.shape_cast %79 : vector<1x32x32xf32> to vector<32x32xf32>
    %cst_39 = arith.constant dense<0.000000e+00> : vector<16x32xf32>
    %81 = tpu.matmul %78, %80, %cst_39 {dimension_numbers = #tpu.dot_dimension_numbers<[1], [0], [0], [1], [0, 0, 1, 1], [], []>} : vector<16x32xf32>, vector<32x32xf32>, vector<16x32xf32> -> vector<16x32xf32>
    %c0_40 = arith.constant 0 : index
    %c0_41 = arith.constant 0 : index
    %82 = vector.load %arg12[%c0_40, %c0_41] : memref<3x32xf32, #tpu.memory_space<vmem>>, vector<1x32xf32>
    %83 = vector.broadcast %82 : vector<1x32xf32> to vector<16x32xf32>
    %84 = arith.addf %81, %83 : vector<16x32xf32>
    %c1_42 = arith.constant 1 : index
    %c0_43 = arith.constant 0 : index
    %c0_44 = arith.constant 0 : index
    %85 = vector.load %arg11[%c1_42, %c0_43, %c0_44] : memref<3x32x32xf32, #tpu.memory_space<vmem>>, vector<1x32x32xf32>
    %86 = vector.shape_cast %85 : vector<1x32x32xf32> to vector<32x32xf32>
    %cst_45 = arith.constant dense<0.000000e+00> : vector<16x32xf32>
    %87 = tpu.matmul %78, %86, %cst_45 {dimension_numbers = #tpu.dot_dimension_numbers<[1], [0], [0], [1], [0, 0, 1, 1], [], []>} : vector<16x32xf32>, vector<32x32xf32>, vector<16x32xf32> -> vector<16x32xf32>
    %c1_46 = arith.constant 1 : index
    %c0_47 = arith.constant 0 : index
    %88 = vector.load %arg12[%c1_46, %c0_47] : memref<3x32xf32, #tpu.memory_space<vmem>>, vector<1x32xf32>
    %89 = vector.broadcast %88 : vector<1x32xf32> to vector<16x32xf32>
    %90 = arith.addf %87, %89 : vector<16x32xf32>
    %cst_48 = arith.constant 0.353553385 : f32
    %91 = vector.broadcast %cst_48 : f32 to vector<16x32xf32>
    %92 = arith.mulf %90, %91 : vector<16x32xf32>
    %c2 = arith.constant 2 : index
    %c0_49 = arith.constant 0 : index
    %c0_50 = arith.constant 0 : index
    %93 = vector.load %arg11[%c2, %c0_49, %c0_50] : memref<3x32x32xf32, #tpu.memory_space<vmem>>, vector<1x32x32xf32>
    %94 = vector.shape_cast %93 : vector<1x32x32xf32> to vector<32x32xf32>
    %cst_51 = arith.constant dense<0.000000e+00> : vector<16x32xf32>
    %95 = tpu.matmul %68, %94, %cst_51 {dimension_numbers = #tpu.dot_dimension_numbers<[1], [0], [0], [1], [0, 0, 1, 1], [], []>} : vector<16x32xf32>, vector<32x32xf32>, vector<16x32xf32> -> vector<16x32xf32>
    %c2_52 = arith.constant 2 : index
    %c0_53 = arith.constant 0 : index
    %96 = vector.load %arg12[%c2_52, %c0_53] : memref<3x32xf32, #tpu.memory_space<vmem>>, vector<1x32xf32>
    %97 = vector.broadcast %96 : vector<1x32xf32> to vector<16x32xf32>
    %98 = arith.addf %95, %97 : vector<16x32xf32>
    %99 = vector.extract_strided_slice %84 {offsets = [0, 0], sizes = [16, 8], strides = [1, 1]} : vector<16x32xf32> to vector<16x8xf32>
    %100 = vector.shape_cast %99 : vector<16x8xf32> to vector<2x8x8xf32>
    %101 = vector.extract_strided_slice %84 {offsets = [0, 8], sizes = [16, 8], strides = [1, 1]} : vector<16x32xf32> to vector<16x8xf32>
    %102 = vector.shape_cast %101 : vector<16x8xf32> to vector<2x8x8xf32>
    %103 = vector.extract_strided_slice %84 {offsets = [0, 16], sizes = [16, 8], strides = [1, 1]} : vector<16x32xf32> to vector<16x8xf32>
    %104 = vector.shape_cast %103 : vector<16x8xf32> to vector<2x8x8xf32>
    %105 = vector.extract_strided_slice %84 {offsets = [0, 24], sizes = [16, 8], strides = [1, 1]} : vector<16x32xf32> to vector<16x8xf32>
    %106 = vector.shape_cast %105 : vector<16x8xf32> to vector<2x8x8xf32>
    %107 = vector.shape_cast %100 : vector<2x8x8xf32> to vector<1x2x8x8xf32>
    %108 = vector.shape_cast %102 : vector<2x8x8xf32> to vector<1x2x8x8xf32>
    %109 = vector.shape_cast %104 : vector<2x8x8xf32> to vector<1x2x8x8xf32>
    %110 = vector.shape_cast %106 : vector<2x8x8xf32> to vector<1x2x8x8xf32>
    %111 = tpu.concatenate %107, %108, %109, %110 in 0 : vector<1x2x8x8xf32>, vector<1x2x8x8xf32>, vector<1x2x8x8xf32>, vector<1x2x8x8xf32> -> vector<4x2x8x8xf32>
    %112 = vector.shape_cast %111 : vector<4x2x8x8xf32> to vector<8x8x8xf32>
    %113 = vector.extract_strided_slice %92 {offsets = [0, 0], sizes = [16, 8], strides = [1, 1]} : vector<16x32xf32> to vector<16x8xf32>
    %114 = vector.shape_cast %113 : vector<16x8xf32> to vector<2x8x8xf32>
    %115 = vector.extract_strided_slice %92 {offsets = [0, 8], sizes = [16, 8], strides = [1, 1]} : vector<16x32xf32> to vector<16x8xf32>
    %116 = vector.shape_cast %115 : vector<16x8xf32> to vector<2x8x8xf32>
    %117 = vector.extract_strided_slice %92 {offsets = [0, 16], sizes = [16, 8], strides = [1, 1]} : vector<16x32xf32> to vector<16x8xf32>
    %118 = vector.shape_cast %117 : vector<16x8xf32> to vector<2x8x8xf32>
    %119 = vector.extract_strided_slice %92 {offsets = [0, 24], sizes = [16, 8], strides = [1, 1]} : vector<16x32xf32> to vector<16x8xf32>
    %120 = vector.shape_cast %119 : vector<16x8xf32> to vector<2x8x8xf32>
    %121 = vector.shape_cast %114 : vector<2x8x8xf32> to vector<1x2x8x8xf32>
    %122 = vector.shape_cast %116 : vector<2x8x8xf32> to vector<1x2x8x8xf32>
    %123 = vector.shape_cast %118 : vector<2x8x8xf32> to vector<1x2x8x8xf32>
    %124 = vector.shape_cast %120 : vector<2x8x8xf32> to vector<1x2x8x8xf32>
    %125 = tpu.concatenate %121, %122, %123, %124 in 0 : vector<1x2x8x8xf32>, vector<1x2x8x8xf32>, vector<1x2x8x8xf32>, vector<1x2x8x8xf32> -> vector<4x2x8x8xf32>
    %126 = vector.shape_cast %125 : vector<4x2x8x8xf32> to vector<8x8x8xf32>
    %127 = vector.extract_strided_slice %98 {offsets = [0, 0], sizes = [16, 8], strides = [1, 1]} : vector<16x32xf32> to vector<16x8xf32>
    %128 = vector.shape_cast %127 : vector<16x8xf32> to vector<2x8x8xf32>
    %129 = vector.extract_strided_slice %98 {offsets = [0, 8], sizes = [16, 8], strides = [1, 1]} : vector<16x32xf32> to vector<16x8xf32>
    %130 = vector.shape_cast %129 : vector<16x8xf32> to vector<2x8x8xf32>
    %131 = vector.extract_strided_slice %98 {offsets = [0, 16], sizes = [16, 8], strides = [1, 1]} : vector<16x32xf32> to vector<16x8xf32>
    %132 = vector.shape_cast %131 : vector<16x8xf32> to vector<2x8x8xf32>
    %133 = vector.extract_strided_slice %98 {offsets = [0, 24], sizes = [16, 8], strides = [1, 1]} : vector<16x32xf32> to vector<16x8xf32>
    %134 = vector.shape_cast %133 : vector<16x8xf32> to vector<2x8x8xf32>
    %135 = vector.shape_cast %128 : vector<2x8x8xf32> to vector<1x2x8x8xf32>
    %136 = vector.shape_cast %130 : vector<2x8x8xf32> to vector<1x2x8x8xf32>
    %137 = vector.shape_cast %132 : vector<2x8x8xf32> to vector<1x2x8x8xf32>
    %138 = vector.shape_cast %134 : vector<2x8x8xf32> to vector<1x2x8x8xf32>
    %139 = tpu.concatenate %135, %136, %137, %138 in 0 : vector<1x2x8x8xf32>, vector<1x2x8x8xf32>, vector<1x2x8x8xf32>, vector<1x2x8x8xf32> -> vector<4x2x8x8xf32>
    %140 = vector.shape_cast %139 : vector<4x2x8x8xf32> to vector<8x8x8xf32>
    "tpu.trace_start"() <{level = 10 : i32, message = "gid,gjd->gij"}> : () -> ()
    %cst_54 = arith.constant dense<0.000000e+00> : vector<8x8x8xf32>
    %141 = tpu.matmul %112, %126, %cst_54 {dimension_numbers = #tpu.dot_dimension_numbers<[2], [2], [1], [1], [0, 0, 0, 1, 1, 1], [0], [0]>} : vector<8x8x8xf32>, vector<8x8x8xf32>, vector<8x8x8xf32> -> vector<8x8x8xf32>
    "tpu.trace_stop"() : () -> ()
    %cst_55 = arith.constant dense<0xFF800000> : vector<8x8xf32>
    %142 = vector.multi_reduction <maximumf>, %141, %cst_55 [2] : vector<8x8x8xf32> to vector<8x8xf32>
    %143 = vector.shape_cast %142 : vector<8x8xf32> to vector<8x8x1xf32>
    %144 = vector.broadcast %143 : vector<8x8x1xf32> to vector<8x8x8xf32>
    %145 = arith.subf %141, %144 : vector<8x8x8xf32>
    %146 = math.exp %145 : vector<8x8x8xf32>
    %cst_56 = arith.constant dense<0.000000e+00> : vector<8x8xf32>
    %147 = vector.multi_reduction <add>, %146, %cst_56 [2] : vector<8x8x8xf32> to vector<8x8xf32>
    %148 = vector.shape_cast %147 : vector<8x8xf32> to vector<8x8x1xf32>
    %149 = tpu.reciprocal %148 {approx = true} : vector<8x8x1xf32> -> vector<8x8x1xf32>
    %150 = vector.broadcast %149 : vector<8x8x1xf32> to vector<8x8x8xf32>
    %151 = arith.mulf %146, %150 : vector<8x8x8xf32>
    "tpu.trace_start"() <{level = 10 : i32, message = "gij,gjd->gid"}> : () -> ()
    %cst_57 = arith.constant dense<0.000000e+00> : vector<8x8x8xf32>
    %152 = tpu.matmul %151, %140, %cst_57 {dimension_numbers = #tpu.dot_dimension_numbers<[2], [1], [1], [2], [0, 0, 0, 1, 1, 2], [0], [0]>} : vector<8x8x8xf32>, vector<8x8x8xf32>, vector<8x8x8xf32> -> vector<8x8x8xf32>
    %cst_58 = arith.constant 0.000000e+00 : f32
    "tpu.trace_stop"() : () -> ()
    %153 = vector.broadcast %cst_58 : f32 to vector<16x32xf32>
    %154 = vector.extract_strided_slice %152 {offsets = [0, 0, 0], sizes = [2, 8, 8], strides = [1, 1, 1]} : vector<8x8x8xf32> to vector<2x8x8xf32>
    %155 = vector.shape_cast %154 : vector<2x8x8xf32> to vector<16x8xf32>
    %c0_59 = arith.constant 0 : index
    %c0_60 = arith.constant 0 : index
    %c0_61 = arith.constant 0 : index
    %156 = vector.load %arg13[%c0_59, %c0_60, %c0_61] : memref<4x8x32xf32, #tpu.memory_space<vmem>>, vector<1x8x32xf32>
    %157 = vector.shape_cast %156 : vector<1x8x32xf32> to vector<8x32xf32>
    %cst_62 = arith.constant dense<0.000000e+00> : vector<16x32xf32>
    %158 = tpu.matmul %155, %157, %cst_62 {dimension_numbers = #tpu.dot_dimension_numbers<[1], [0], [0], [1], [0, 0, 1, 1], [], []>} : vector<16x8xf32>, vector<8x32xf32>, vector<16x32xf32> -> vector<16x32xf32>
    %159 = arith.addf %153, %158 : vector<16x32xf32>
    %160 = vector.extract_strided_slice %152 {offsets = [2, 0, 0], sizes = [2, 8, 8], strides = [1, 1, 1]} : vector<8x8x8xf32> to vector<2x8x8xf32>
    %161 = vector.shape_cast %160 : vector<2x8x8xf32> to vector<16x8xf32>
    %c1_63 = arith.constant 1 : index
    %c0_64 = arith.constant 0 : index
    %c0_65 = arith.constant 0 : index
    %162 = vector.load %arg13[%c1_63, %c0_64, %c0_65] : memref<4x8x32xf32, #tpu.memory_space<vmem>>, vector<1x8x32xf32>
    %163 = vector.shape_cast %162 : vector<1x8x32xf32> to vector<8x32xf32>
    %cst_66 = arith.constant dense<0.000000e+00> : vector<16x32xf32>
    %164 = tpu.matmul %161, %163, %cst_66 {dimension_numbers = #tpu.dot_dimension_numbers<[1], [0], [0], [1], [0, 0, 1, 1], [], []>} : vector<16x8xf32>, vector<8x32xf32>, vector<16x32xf32> -> vector<16x32xf32>
    %165 = arith.addf %159, %164 : vector<16x32xf32>
    %166 = vector.extract_strided_slice %152 {offsets = [4, 0, 0], sizes = [2, 8, 8], strides = [1, 1, 1]} : vector<8x8x8xf32> to vector<2x8x8xf32>
    %167 = vector.shape_cast %166 : vector<2x8x8xf32> to vector<16x8xf32>
    %c2_67 = arith.constant 2 : index
    %c0_68 = arith.constant 0 : index
    %c0_69 = arith.constant 0 : index
    %168 = vector.load %arg13[%c2_67, %c0_68, %c0_69] : memref<4x8x32xf32, #tpu.memory_space<vmem>>, vector<1x8x32xf32>
    %169 = vector.shape_cast %168 : vector<1x8x32xf32> to vector<8x32xf32>
    %cst_70 = arith.constant dense<0.000000e+00> : vector<16x32xf32>
    %170 = tpu.matmul %167, %169, %cst_70 {dimension_numbers = #tpu.dot_dimension_numbers<[1], [0], [0], [1], [0, 0, 1, 1], [], []>} : vector<16x8xf32>, vector<8x32xf32>, vector<16x32xf32> -> vector<16x32xf32>
    %171 = arith.addf %165, %170 : vector<16x32xf32>
    %172 = vector.extract_strided_slice %152 {offsets = [6, 0, 0], sizes = [2, 8, 8], strides = [1, 1, 1]} : vector<8x8x8xf32> to vector<2x8x8xf32>
    %173 = vector.shape_cast %172 : vector<2x8x8xf32> to vector<16x8xf32>
    %c3 = arith.constant 3 : index
    %c0_71 = arith.constant 0 : index
    %c0_72 = arith.constant 0 : index
    %174 = vector.load %arg13[%c3, %c0_71, %c0_72] : memref<4x8x32xf32, #tpu.memory_space<vmem>>, vector<1x8x32xf32>
    %175 = vector.shape_cast %174 : vector<1x8x32xf32> to vector<8x32xf32>
    %cst_73 = arith.constant dense<0.000000e+00> : vector<16x32xf32>
    %176 = tpu.matmul %173, %175, %cst_73 {dimension_numbers = #tpu.dot_dimension_numbers<[1], [0], [0], [1], [0, 0, 1, 1], [], []>} : vector<16x8xf32>, vector<8x32xf32>, vector<16x32xf32> -> vector<16x32xf32>
    %177 = arith.addf %171, %176 : vector<16x32xf32>
    %178 = arith.addf %44, %177 : vector<16x32xf32>
    %c0_74 = arith.constant 0 : index
    %c0_75 = arith.constant 0 : index
    %179 = vector.load %arg14[%c0_74, %c0_75] : memref<1x32xf32, #tpu.memory_space<vmem>>, vector<1x32xf32>
    %180 = vector.broadcast %179 : vector<1x32xf32> to vector<16x32xf32>
    %181 = arith.addf %178, %180 : vector<16x32xf32>
    %cst_76 = arith.constant dense<0.000000e+00> : vector<16xf32>
    %182 = vector.multi_reduction <add>, %181, %cst_76 [1] : vector<16x32xf32> to vector<16xf32>
    %183 = vector.shape_cast %182 : vector<16xf32> to vector<16x1xf32>
    %cst_77 = arith.constant 3.200000e+01 : f32
    %184 = vector.broadcast %cst_77 : f32 to vector<16x1xf32>
    %185 = arith.divf %183, %184 : vector<16x1xf32>
    %186 = vector.broadcast %185 : vector<16x1xf32> to vector<16x32xf32>
    %187 = arith.subf %181, %186 : vector<16x32xf32>
    %188 = arith.mulf %187, %187 : vector<16x32xf32>
    %cst_78 = arith.constant dense<0.000000e+00> : vector<16xf32>
    %189 = vector.multi_reduction <add>, %188, %cst_78 [1] : vector<16x32xf32> to vector<16xf32>
    %190 = vector.shape_cast %189 : vector<16xf32> to vector<16x1xf32>
    %cst_79 = arith.constant 3.200000e+01 : f32
    %191 = vector.broadcast %cst_79 : f32 to vector<16x1xf32>
    %192 = arith.divf %190, %191 : vector<16x1xf32>
    %193 = vector.broadcast %185 : vector<16x1xf32> to vector<16x32xf32>
    %194 = arith.subf %181, %193 : vector<16x32xf32>
    %cst_80 = arith.constant 9.99999974E-6 : f32
    %195 = vector.broadcast %cst_80 : f32 to vector<16x1xf32>
    %196 = arith.addf %192, %195 : vector<16x1xf32>
    %197 = math.rsqrt %196 : vector<16x1xf32>
    %198 = vector.broadcast %197 : vector<16x1xf32> to vector<16x32xf32>
    %199 = arith.mulf %194, %198 : vector<16x32xf32>
    %c2_81 = arith.constant 2 : index
    %c0_82 = arith.constant 0 : index
    %200 = vector.load %arg5[%c2_81, %c0_82] : memref<5x32xf32, #tpu.memory_space<vmem>>, vector<1x32xf32>
    %201 = vector.broadcast %200 : vector<1x32xf32> to vector<16x32xf32>
    %202 = arith.mulf %199, %201 : vector<16x32xf32>
    %c2_83 = arith.constant 2 : index
    %c0_84 = arith.constant 0 : index
    %203 = vector.load %arg6[%c2_83, %c0_84] : memref<5x32xf32, #tpu.memory_space<vmem>>, vector<1x32xf32>
    %204 = vector.broadcast %203 : vector<1x32xf32> to vector<16x32xf32>
    %205 = arith.addf %202, %204 : vector<16x32xf32>
    %c0_85 = arith.constant 0 : index
    %c0_86 = arith.constant 0 : index
    %206 = vector.load %arg15[%c0_85, %c0_86] : memref<32x32xf32, #tpu.memory_space<vmem>>, vector<32x32xf32>
    %cst_87 = arith.constant dense<0.000000e+00> : vector<16x32xf32>
    %207 = tpu.matmul %205, %206, %cst_87 {dimension_numbers = #tpu.dot_dimension_numbers<[1], [0], [0], [1], [0, 0, 1, 1], [], []>} : vector<16x32xf32>, vector<32x32xf32>, vector<16x32xf32> -> vector<16x32xf32>
    %c0_88 = arith.constant 0 : index
    %c0_89 = arith.constant 0 : index
    %208 = vector.load %arg16[%c0_88, %c0_89] : memref<1x32xf32, #tpu.memory_space<vmem>>, vector<1x32xf32>
    %209 = vector.broadcast %208 : vector<1x32xf32> to vector<16x32xf32>
    %210 = arith.addf %207, %209 : vector<16x32xf32>
    %c0_90 = arith.constant 0 : index
    %c0_91 = arith.constant 0 : index
    %211 = vector.load %arg17[%c0_90, %c0_91] : memref<32x32xf32, #tpu.memory_space<vmem>>, vector<32x32xf32>
    %cst_92 = arith.constant dense<0.000000e+00> : vector<16x32xf32>
    %212 = tpu.matmul %205, %211, %cst_92 {dimension_numbers = #tpu.dot_dimension_numbers<[1], [0], [0], [1], [0, 0, 1, 1], [], []>} : vector<16x32xf32>, vector<32x32xf32>, vector<16x32xf32> -> vector<16x32xf32>
    %c0_93 = arith.constant 0 : index
    %c0_94 = arith.constant 0 : index
    %213 = vector.load %arg18[%c0_93, %c0_94] : memref<1x32xf32, #tpu.memory_space<vmem>>, vector<1x32xf32>
    %214 = vector.broadcast %213 : vector<1x32xf32> to vector<16x32xf32>
    %215 = arith.addf %212, %214 : vector<16x32xf32>
    %cst_95 = arith.constant 0.000000e+00 : f32
    %216 = vector.broadcast %cst_95 : f32 to vector<16x32xf32>
    %217 = arith.subf %216, %215 : vector<16x32xf32>
    %218 = math.exp %217 : vector<16x32xf32>
    %cst_96 = arith.constant 1.000000e+00 : f32
    %219 = vector.broadcast %cst_96 : f32 to vector<16x32xf32>
    %220 = arith.addf %219, %218 : vector<16x32xf32>
    %221 = tpu.reciprocal %220 {approx = true} : vector<16x32xf32> -> vector<16x32xf32>
    %222 = arith.mulf %210, %221 : vector<16x32xf32>
    %223 = tpu.iota {dimensions = array<i32: 1>} : vector<2x8x32xi32>
    %224 = vector.shape_cast %223 : vector<2x8x32xi32> to vector<16x32xi32>
    %cst_97 = arith.constant 0.000000e+00 : f32
    %225 = vector.broadcast %cst_97 : f32 to vector<16x32xf32>
    %c3_i32 = arith.constant 3 : i32
    %226 = tpu.dynamic_rotate %222 by %c3_i32 dim 0 : vector<16x32xf32>, i32 -> vector<16x32xf32>
    %c3_i32_98 = arith.constant 3 : i32
    %227 = vector.broadcast %c3_i32_98 : i32 to vector<16x32xi32>
    %228 = arith.cmpi sge, %224, %227 : vector<16x32xi32>
    %cst_99 = arith.constant 0.000000e+00 : f32
    %229 = vector.broadcast %cst_99 : f32 to vector<16x32xf32>
    %230 = arith.select %228, %226, %229 : vector<16x32xi1>, vector<16x32xf32>
    %c0_100 = arith.constant 0 : index
    %c0_101 = arith.constant 0 : index
    %231 = vector.load %arg19[%c0_100, %c0_101] : memref<7x32xf32, #tpu.memory_space<vmem>>, vector<1x32xf32>
    %232 = vector.broadcast %231 : vector<1x32xf32> to vector<16x32xf32>
    %233 = arith.mulf %230, %232 : vector<16x32xf32>
    %234 = arith.addf %225, %233 : vector<16x32xf32>
    %c2_i32 = arith.constant 2 : i32
    %235 = tpu.dynamic_rotate %222 by %c2_i32 dim 0 : vector<16x32xf32>, i32 -> vector<16x32xf32>
    %c2_i32_102 = arith.constant 2 : i32
    %236 = vector.broadcast %c2_i32_102 : i32 to vector<16x32xi32>
    %237 = arith.cmpi sge, %224, %236 : vector<16x32xi32>
    %cst_103 = arith.constant 0.000000e+00 : f32
    %238 = vector.broadcast %cst_103 : f32 to vector<16x32xf32>
    %239 = arith.select %237, %235, %238 : vector<16x32xi1>, vector<16x32xf32>
    %c1_104 = arith.constant 1 : index
    %c0_105 = arith.constant 0 : index
    %240 = vector.load %arg19[%c1_104, %c0_105] : memref<7x32xf32, #tpu.memory_space<vmem>>, vector<1x32xf32>
    %241 = vector.broadcast %240 : vector<1x32xf32> to vector<16x32xf32>
    %242 = arith.mulf %239, %241 : vector<16x32xf32>
    %243 = arith.addf %234, %242 : vector<16x32xf32>
    %c1_i32 = arith.constant 1 : i32
    %244 = tpu.dynamic_rotate %222 by %c1_i32 dim 0 : vector<16x32xf32>, i32 -> vector<16x32xf32>
    %c1_i32_106 = arith.constant 1 : i32
    %245 = vector.broadcast %c1_i32_106 : i32 to vector<16x32xi32>
    %246 = arith.cmpi sge, %224, %245 : vector<16x32xi32>
    %cst_107 = arith.constant 0.000000e+00 : f32
    %247 = vector.broadcast %cst_107 : f32 to vector<16x32xf32>
    %248 = arith.select %246, %244, %247 : vector<16x32xi1>, vector<16x32xf32>
    %c2_108 = arith.constant 2 : index
    %c0_109 = arith.constant 0 : index
    %249 = vector.load %arg19[%c2_108, %c0_109] : memref<7x32xf32, #tpu.memory_space<vmem>>, vector<1x32xf32>
    %250 = vector.broadcast %249 : vector<1x32xf32> to vector<16x32xf32>
    %251 = arith.mulf %248, %250 : vector<16x32xf32>
    %252 = arith.addf %243, %251 : vector<16x32xf32>
    %c3_110 = arith.constant 3 : index
    %c0_111 = arith.constant 0 : index
    %253 = vector.load %arg19[%c3_110, %c0_111] : memref<7x32xf32, #tpu.memory_space<vmem>>, vector<1x32xf32>
    %254 = vector.broadcast %253 : vector<1x32xf32> to vector<16x32xf32>
    %255 = arith.mulf %222, %254 : vector<16x32xf32>
    %256 = arith.addf %252, %255 : vector<16x32xf32>
    %c15_i32 = arith.constant 15 : i32
    %257 = tpu.dynamic_rotate %222 by %c15_i32 dim 0 : vector<16x32xf32>, i32 -> vector<16x32xf32>
    %c7_i32 = arith.constant 7 : i32
    %258 = vector.broadcast %c7_i32 : i32 to vector<16x32xi32>
    %259 = arith.cmpi slt, %224, %258 : vector<16x32xi32>
    %cst_112 = arith.constant 0.000000e+00 : f32
    %260 = vector.broadcast %cst_112 : f32 to vector<16x32xf32>
    %261 = arith.select %259, %257, %260 : vector<16x32xi1>, vector<16x32xf32>
    %c4 = arith.constant 4 : index
    %c0_113 = arith.constant 0 : index
    %262 = vector.load %arg19[%c4, %c0_113] : memref<7x32xf32, #tpu.memory_space<vmem>>, vector<1x32xf32>
    %263 = vector.broadcast %262 : vector<1x32xf32> to vector<16x32xf32>
    %264 = arith.mulf %261, %263 : vector<16x32xf32>
    %265 = arith.addf %256, %264 : vector<16x32xf32>
    %c14_i32 = arith.constant 14 : i32
    %266 = tpu.dynamic_rotate %222 by %c14_i32 dim 0 : vector<16x32xf32>, i32 -> vector<16x32xf32>
    %c6_i32 = arith.constant 6 : i32
    %267 = vector.broadcast %c6_i32 : i32 to vector<16x32xi32>
    %268 = arith.cmpi slt, %224, %267 : vector<16x32xi32>
    %cst_114 = arith.constant 0.000000e+00 : f32
    %269 = vector.broadcast %cst_114 : f32 to vector<16x32xf32>
    %270 = arith.select %268, %266, %269 : vector<16x32xi1>, vector<16x32xf32>
    %c5 = arith.constant 5 : index
    %c0_115 = arith.constant 0 : index
    %271 = vector.load %arg19[%c5, %c0_115] : memref<7x32xf32, #tpu.memory_space<vmem>>, vector<1x32xf32>
    %272 = vector.broadcast %271 : vector<1x32xf32> to vector<16x32xf32>
    %273 = arith.mulf %270, %272 : vector<16x32xf32>
    %274 = arith.addf %265, %273 : vector<16x32xf32>
    %c13_i32 = arith.constant 13 : i32
    %275 = tpu.dynamic_rotate %222 by %c13_i32 dim 0 : vector<16x32xf32>, i32 -> vector<16x32xf32>
    %c5_i32 = arith.constant 5 : i32
    %276 = vector.broadcast %c5_i32 : i32 to vector<16x32xi32>
    %277 = arith.cmpi slt, %224, %276 : vector<16x32xi32>
    %cst_116 = arith.constant 0.000000e+00 : f32
    %278 = vector.broadcast %cst_116 : f32 to vector<16x32xf32>
    %279 = arith.select %277, %275, %278 : vector<16x32xi1>, vector<16x32xf32>
    %c6 = arith.constant 6 : index
    %c0_117 = arith.constant 0 : index
    %280 = vector.load %arg19[%c6, %c0_117] : memref<7x32xf32, #tpu.memory_space<vmem>>, vector<1x32xf32>
    %281 = vector.broadcast %280 : vector<1x32xf32> to vector<16x32xf32>
    %282 = arith.mulf %279, %281 : vector<16x32xf32>
    %283 = arith.addf %274, %282 : vector<16x32xf32>
    %c0_118 = arith.constant 0 : index
    %c0_119 = arith.constant 0 : index
    %284 = vector.load %arg20[%c0_118, %c0_119] : memref<1x32xf32, #tpu.memory_space<vmem>>, vector<1x32xf32>
    %285 = vector.broadcast %284 : vector<1x32xf32> to vector<16x32xf32>
    %286 = arith.addf %283, %285 : vector<16x32xf32>
    %c0_120 = arith.constant 0 : index
    %c0_121 = arith.constant 0 : index
    %287 = vector.load %arg21[%c0_120, %c0_121] : memref<1x32xf32, #tpu.memory_space<vmem>>, vector<1x32xf32>
    %288 = vector.broadcast %287 : vector<1x32xf32> to vector<16x32xf32>
    %289 = arith.mulf %286, %288 : vector<16x32xf32>
    %c0_122 = arith.constant 0 : index
    %c0_123 = arith.constant 0 : index
    %290 = vector.load %arg22[%c0_122, %c0_123] : memref<1x32xf32, #tpu.memory_space<vmem>>, vector<1x32xf32>
    %291 = vector.broadcast %290 : vector<1x32xf32> to vector<16x32xf32>
    %292 = arith.addf %289, %291 : vector<16x32xf32>
    %cst_124 = arith.constant 0.000000e+00 : f32
    %293 = vector.broadcast %cst_124 : f32 to vector<16x32xf32>
    %294 = arith.subf %293, %292 : vector<16x32xf32>
    %295 = math.exp %294 : vector<16x32xf32>
    %cst_125 = arith.constant 1.000000e+00 : f32
    %296 = vector.broadcast %cst_125 : f32 to vector<16x32xf32>
    %297 = arith.addf %296, %295 : vector<16x32xf32>
    %298 = tpu.reciprocal %297 {approx = true} : vector<16x32xf32> -> vector<16x32xf32>
    %299 = arith.mulf %292, %298 : vector<16x32xf32>
    %c0_126 = arith.constant 0 : index
    %c0_127 = arith.constant 0 : index
    %300 = vector.load %arg23[%c0_126, %c0_127] : memref<32x32xf32, #tpu.memory_space<vmem>>, vector<32x32xf32>
    %cst_128 = arith.constant dense<0.000000e+00> : vector<16x32xf32>
    %301 = tpu.matmul %299, %300, %cst_128 {dimension_numbers = #tpu.dot_dimension_numbers<[1], [0], [0], [1], [0, 0, 1, 1], [], []>} : vector<16x32xf32>, vector<32x32xf32>, vector<16x32xf32> -> vector<16x32xf32>
    %c0_129 = arith.constant 0 : index
    %c0_130 = arith.constant 0 : index
    %302 = vector.load %arg24[%c0_129, %c0_130] : memref<1x32xf32, #tpu.memory_space<vmem>>, vector<1x32xf32>
    %303 = vector.broadcast %302 : vector<1x32xf32> to vector<16x32xf32>
    %304 = arith.addf %301, %303 : vector<16x32xf32>
    %305 = arith.addf %181, %304 : vector<16x32xf32>
    %cst_131 = arith.constant dense<0.000000e+00> : vector<16xf32>
    %306 = vector.multi_reduction <add>, %305, %cst_131 [1] : vector<16x32xf32> to vector<16xf32>
    %307 = vector.shape_cast %306 : vector<16xf32> to vector<16x1xf32>
    %cst_132 = arith.constant 3.200000e+01 : f32
    %308 = vector.broadcast %cst_132 : f32 to vector<16x1xf32>
    %309 = arith.divf %307, %308 : vector<16x1xf32>
    %310 = vector.broadcast %309 : vector<16x1xf32> to vector<16x32xf32>
    %311 = arith.subf %305, %310 : vector<16x32xf32>
    %312 = arith.mulf %311, %311 : vector<16x32xf32>
    %cst_133 = arith.constant dense<0.000000e+00> : vector<16xf32>
    %313 = vector.multi_reduction <add>, %312, %cst_133 [1] : vector<16x32xf32> to vector<16xf32>
    %314 = vector.shape_cast %313 : vector<16xf32> to vector<16x1xf32>
    %cst_134 = arith.constant 3.200000e+01 : f32
    %315 = vector.broadcast %cst_134 : f32 to vector<16x1xf32>
    %316 = arith.divf %314, %315 : vector<16x1xf32>
    %317 = vector.broadcast %309 : vector<16x1xf32> to vector<16x32xf32>
    %318 = arith.subf %305, %317 : vector<16x32xf32>
    %cst_135 = arith.constant 9.99999974E-6 : f32
    %319 = vector.broadcast %cst_135 : f32 to vector<16x1xf32>
    %320 = arith.addf %316, %319 : vector<16x1xf32>
    %321 = math.rsqrt %320 : vector<16x1xf32>
    %322 = vector.broadcast %321 : vector<16x1xf32> to vector<16x32xf32>
    %323 = arith.mulf %318, %322 : vector<16x32xf32>
    %c3_136 = arith.constant 3 : index
    %c0_137 = arith.constant 0 : index
    %324 = vector.load %arg5[%c3_136, %c0_137] : memref<5x32xf32, #tpu.memory_space<vmem>>, vector<1x32xf32>
    %325 = vector.broadcast %324 : vector<1x32xf32> to vector<16x32xf32>
    %326 = arith.mulf %323, %325 : vector<16x32xf32>
    %c3_138 = arith.constant 3 : index
    %c0_139 = arith.constant 0 : index
    %327 = vector.load %arg6[%c3_138, %c0_139] : memref<5x32xf32, #tpu.memory_space<vmem>>, vector<1x32xf32>
    %328 = vector.broadcast %327 : vector<1x32xf32> to vector<16x32xf32>
    %329 = arith.addf %326, %328 : vector<16x32xf32>
    %c0_140 = arith.constant 0 : index
    %c0_141 = arith.constant 0 : index
    %330 = vector.load %arg25[%c0_140, %c0_141] : memref<32x64xf32, #tpu.memory_space<vmem>>, vector<32x64xf32>
    %cst_142 = arith.constant dense<0.000000e+00> : vector<16x64xf32>
    %331 = tpu.matmul %329, %330, %cst_142 {dimension_numbers = #tpu.dot_dimension_numbers<[1], [0], [0], [1], [0, 0, 1, 1], [], []>} : vector<16x32xf32>, vector<32x64xf32>, vector<16x64xf32> -> vector<16x64xf32>
    %c0_143 = arith.constant 0 : index
    %c0_144 = arith.constant 0 : index
    %332 = vector.load %arg26[%c0_143, %c0_144] : memref<1x64xf32, #tpu.memory_space<vmem>>, vector<1x64xf32>
    %333 = vector.broadcast %332 : vector<1x64xf32> to vector<16x64xf32>
    %334 = arith.addf %331, %333 : vector<16x64xf32>
    %cst_145 = arith.constant 0.000000e+00 : f32
    %335 = vector.broadcast %cst_145 : f32 to vector<16x64xf32>
    %336 = arith.subf %335, %334 : vector<16x64xf32>
    %337 = math.exp %336 : vector<16x64xf32>
    %cst_146 = arith.constant 1.000000e+00 : f32
    %338 = vector.broadcast %cst_146 : f32 to vector<16x64xf32>
    %339 = arith.addf %338, %337 : vector<16x64xf32>
    %340 = tpu.reciprocal %339 {approx = true} : vector<16x64xf32> -> vector<16x64xf32>
    %341 = arith.mulf %334, %340 : vector<16x64xf32>
    %c0_147 = arith.constant 0 : index
    %c0_148 = arith.constant 0 : index
    %342 = vector.load %arg27[%c0_147, %c0_148] : memref<64x32xf32, #tpu.memory_space<vmem>>, vector<64x32xf32>
    %cst_149 = arith.constant dense<0.000000e+00> : vector<16x32xf32>
    %343 = tpu.matmul %341, %342, %cst_149 {dimension_numbers = #tpu.dot_dimension_numbers<[1], [0], [0], [1], [0, 0, 1, 1], [], []>} : vector<16x64xf32>, vector<64x32xf32>, vector<16x32xf32> -> vector<16x32xf32>
    %c0_150 = arith.constant 0 : index
    %c0_151 = arith.constant 0 : index
    %344 = vector.load %arg28[%c0_150, %c0_151] : memref<1x32xf32, #tpu.memory_space<vmem>>, vector<1x32xf32>
    %345 = vector.broadcast %344 : vector<1x32xf32> to vector<16x32xf32>
    %346 = arith.addf %343, %345 : vector<16x32xf32>
    %cst_152 = arith.constant 5.000000e-01 : f32
    %347 = vector.broadcast %cst_152 : f32 to vector<16x32xf32>
    %348 = arith.mulf %347, %346 : vector<16x32xf32>
    %349 = arith.addf %305, %348 : vector<16x32xf32>
    %cst_153 = arith.constant dense<0.000000e+00> : vector<16xf32>
    %350 = vector.multi_reduction <add>, %349, %cst_153 [1] : vector<16x32xf32> to vector<16xf32>
    %351 = vector.shape_cast %350 : vector<16xf32> to vector<16x1xf32>
    %cst_154 = arith.constant 3.200000e+01 : f32
    %352 = vector.broadcast %cst_154 : f32 to vector<16x1xf32>
    %353 = arith.divf %351, %352 : vector<16x1xf32>
    %354 = vector.broadcast %353 : vector<16x1xf32> to vector<16x32xf32>
    %355 = arith.subf %349, %354 : vector<16x32xf32>
    %356 = arith.mulf %355, %355 : vector<16x32xf32>
    %cst_155 = arith.constant dense<0.000000e+00> : vector<16xf32>
    %357 = vector.multi_reduction <add>, %356, %cst_155 [1] : vector<16x32xf32> to vector<16xf32>
    %358 = vector.shape_cast %357 : vector<16xf32> to vector<16x1xf32>
    %cst_156 = arith.constant 3.200000e+01 : f32
    %359 = vector.broadcast %cst_156 : f32 to vector<16x1xf32>
    %360 = arith.divf %358, %359 : vector<16x1xf32>
    %361 = vector.broadcast %353 : vector<16x1xf32> to vector<16x32xf32>
    %362 = arith.subf %349, %361 : vector<16x32xf32>
    %cst_157 = arith.constant 9.99999974E-6 : f32
    %363 = vector.broadcast %cst_157 : f32 to vector<16x1xf32>
    %364 = arith.addf %360, %363 : vector<16x1xf32>
    %365 = math.rsqrt %364 : vector<16x1xf32>
    %366 = vector.broadcast %365 : vector<16x1xf32> to vector<16x32xf32>
    %367 = arith.mulf %362, %366 : vector<16x32xf32>
    %c4_158 = arith.constant 4 : index
    %c0_159 = arith.constant 0 : index
    %368 = vector.load %arg5[%c4_158, %c0_159] : memref<5x32xf32, #tpu.memory_space<vmem>>, vector<1x32xf32>
    %369 = vector.broadcast %368 : vector<1x32xf32> to vector<16x32xf32>
    %370 = arith.mulf %367, %369 : vector<16x32xf32>
    %c4_160 = arith.constant 4 : index
    %c0_161 = arith.constant 0 : index
    %371 = vector.load %arg6[%c4_160, %c0_161] : memref<5x32xf32, #tpu.memory_space<vmem>>, vector<1x32xf32>
    %372 = vector.broadcast %371 : vector<1x32xf32> to vector<16x32xf32>
    %373 = arith.addf %370, %372 : vector<16x32xf32>
    %c0_162 = arith.constant 0 : index
    %c0_163 = arith.constant 0 : index
    %374 = vector.load %arg29[%c0_162, %c0_163] : memref<16x32xf32, #tpu.memory_space<vmem>>, vector<16x32xf32>
    tpu.vector_store %arg29[%c0_162, %c0_163], %373 {strides = array<i32>} : memref<16x32xf32, #tpu.memory_space<vmem>>, vector<16x32xf32>,
    return
  }
  func.func @transform_0(%arg0: i32) -> (i32, i32) {
    %c0_i32 = arith.constant 0 : i32
    %c0_i32_0 = arith.constant 0 : i32
    %c0_i32_1 = arith.constant 0 : i32
    return %c0_i32, %c0_i32_0 : i32, i32
  }
  func.func @transform_1(%arg0: i32) -> (i32, i32) {
    %c0_i32 = arith.constant 0 : i32
    %c0_i32_0 = arith.constant 0 : i32
    %c0_i32_1 = arith.constant 0 : i32
    return %c0_i32, %c0_i32_0 : i32, i32
  }
  func.func @transform_2(%arg0: i32) -> (i32, i32) {
    %c0_i32 = arith.constant 0 : i32
    %c0_i32_0 = arith.constant 0 : i32
    %c0_i32_1 = arith.constant 0 : i32
    return %c0_i32, %c0_i32_0 : i32, i32
  }
  func.func @transform_3(%arg0: i32) -> (i32, i32) {
    %c0_i32 = arith.constant 0 : i32
    %c0_i32_0 = arith.constant 0 : i32
    %c0_i32_1 = arith.constant 0 : i32
    return %c0_i32, %c0_i32_0 : i32, i32
  }
  func.func @transform_4(%arg0: i32) -> (i32, i32) {
    %c0_i32 = arith.constant 0 : i32
    %c0_i32_0 = arith.constant 0 : i32
    %c0_i32_1 = arith.constant 0 : i32
    return %c0_i32, %c0_i32_0 : i32, i32
  }
  func.func @transform_5(%arg0: i32) -> (i32, i32) {
    %c0_i32 = arith.constant 0 : i32
    %c0_i32_0 = arith.constant 0 : i32
    %c0_i32_1 = arith.constant 0 : i32
    return %c0_i32, %c0_i32_0 : i32, i32
  }
  func.func @transform_6(%arg0: i32) -> (i32, i32) {
    %c0_i32 = arith.constant 0 : i32
    %c0_i32_0 = arith.constant 0 : i32
    %c0_i32_1 = arith.constant 0 : i32
    return %c0_i32, %c0_i32_0 : i32, i32
  }
  func.func @transform_7(%arg0: i32) -> (i32, i32) {
    %c0_i32 = arith.constant 0 : i32
    %c0_i32_0 = arith.constant 0 : i32
    %c0_i32_1 = arith.constant 0 : i32
    return %c0_i32, %c0_i32_0 : i32, i32
  }
  func.func @transform_8(%arg0: i32) -> (i32, i32) {
    %c0_i32 = arith.constant 0 : i32
    %c0_i32_0 = arith.constant 0 : i32
    %c0_i32_1 = arith.constant 0 : i32
    return %c0_i32, %c0_i32_0 : i32, i32
  }
  func.func @transform_9(%arg0: i32) -> (i32, i32) {
    %c0_i32 = arith.constant 0 : i32
    %c0_i32_0 = arith.constant 0 : i32
    %c0_i32_1 = arith.constant 0 : i32
    return %c0_i32, %c0_i32_0 : i32, i32
  }
  func.func @transform_10(%arg0: i32) -> (i32, i32, i32) {
    %c0_i32 = arith.constant 0 : i32
    %c0_i32_0 = arith.constant 0 : i32
    %c0_i32_1 = arith.constant 0 : i32
    %c0_i32_2 = arith.constant 0 : i32
    return %c0_i32, %c0_i32_0, %c0_i32_1 : i32, i32, i32
  }
  func.func @transform_11(%arg0: i32) -> (i32, i32) {
    %c0_i32 = arith.constant 0 : i32
    %c0_i32_0 = arith.constant 0 : i32
    %c0_i32_1 = arith.constant 0 : i32
    return %c0_i32, %c0_i32_0 : i32, i32
  }
  func.func @transform_12(%arg0: i32) -> (i32, i32, i32) {
    %c0_i32 = arith.constant 0 : i32
    %c0_i32_0 = arith.constant 0 : i32
    %c0_i32_1 = arith.constant 0 : i32
    %c0_i32_2 = arith.constant 0 : i32
    return %c0_i32, %c0_i32_0, %c0_i32_1 : i32, i32, i32
  }
  func.func @transform_13(%arg0: i32) -> (i32, i32) {
    %c0_i32 = arith.constant 0 : i32
    %c0_i32_0 = arith.constant 0 : i32
    %c0_i32_1 = arith.constant 0 : i32
    return %c0_i32, %c0_i32_0 : i32, i32
  }
  func.func @transform_14(%arg0: i32) -> (i32, i32) {
    %c0_i32 = arith.constant 0 : i32
    %c0_i32_0 = arith.constant 0 : i32
    %c0_i32_1 = arith.constant 0 : i32
    return %c0_i32, %c0_i32_0 : i32, i32
  }
  func.func @transform_15(%arg0: i32) -> (i32, i32) {
    %c0_i32 = arith.constant 0 : i32
    %c0_i32_0 = arith.constant 0 : i32
    %c0_i32_1 = arith.constant 0 : i32
    return %c0_i32, %c0_i32_0 : i32, i32
  }
  func.func @transform_16(%arg0: i32) -> (i32, i32) {
    %c0_i32 = arith.constant 0 : i32
    %c0_i32_0 = arith.constant 0 : i32
    %c0_i32_1 = arith.constant 0 : i32
    return %c0_i32, %c0_i32_0 : i32, i32
  }
  func.func @transform_17(%arg0: i32) -> (i32, i32) {
    %c0_i32 = arith.constant 0 : i32
    %c0_i32_0 = arith.constant 0 : i32
    %c0_i32_1 = arith.constant 0 : i32
    return %c0_i32, %c0_i32_0 : i32, i32
  }
  func.func @transform_18(%arg0: i32) -> (i32, i32) {
    %c0_i32 = arith.constant 0 : i32
    %c0_i32_0 = arith.constant 0 : i32
    %c0_i32_1 = arith.constant 0 : i32
    return %c0_i32, %c0_i32_0 : i32, i32
  }
  func.func @transform_19(%arg0: i32) -> (i32, i32) {
    %c0_i32 = arith.constant 0 : i32
    %c0_i32_0 = arith.constant 0 : i32
    %c0_i32_1 = arith.constant 0 : i32
    return %c0_i32, %c0_i32_0 : i32, i32
  }
  func.func @transform_20(%arg0: i32) -> (i32, i32) {
    %c0_i32 = arith.constant 0 : i32
    %c0_i32_0 = arith.constant 0 : i32
    %c0_i32_1 = arith.constant 0 : i32
    return %c0_i32, %c0_i32_0 : i32, i32
  }
  func.func @transform_21(%arg0: i32) -> (i32, i32) {
    %c0_i32 = arith.constant 0 : i32
    %c0_i32_0 = arith.constant 0 : i32
    %c0_i32_1 = arith.constant 0 : i32
    return %c0_i32, %c0_i32_0 : i32, i32
  }
  func.func @transform_22(%arg0: i32) -> (i32, i32) {
    %c0_i32 = arith.constant 0 : i32
    %c0_i32_0 = arith.constant 0 : i32
    %c0_i32_1 = arith.constant 0 : i32
    return %c0_i32, %c0_i32_0 : i32, i32
  }
  func.func @transform_23(%arg0: i32) -> (i32, i32) {
    %c0_i32 = arith.constant 0 : i32
    %c0_i32_0 = arith.constant 0 : i32
    %c0_i32_1 = arith.constant 0 : i32
    return %c0_i32, %c0_i32_0 : i32, i32
  }
  func.func @transform_24(%arg0: i32) -> (i32, i32) {
    %c0_i32 = arith.constant 0 : i32
    %c0_i32_0 = arith.constant 0 : i32
    %c0_i32_1 = arith.constant 0 : i32
    return %c0_i32, %c0_i32_0 : i32, i32
  }
  func.func @transform_25(%arg0: i32) -> (i32, i32) {
    %c0_i32 = arith.constant 0 : i32
    %c0_i32_0 = arith.constant 0 : i32
    %c0_i32_1 = arith.constant 0 : i32
    return %c0_i32, %c0_i32_0 : i32, i32
  }
  func.func @transform_26(%arg0: i32) -> (i32, i32) {
    %c0_i32 = arith.constant 0 : i32
    %c0_i32_0 = arith.constant 0 : i32
    %c0_i32_1 = arith.constant 0 : i32
    return %c0_i32, %c0_i32_0 : i32, i32
  }
  func.func @transform_27(%arg0: i32) -> (i32, i32) {
    %c0_i32 = arith.constant 0 : i32
    %c0_i32_0 = arith.constant 0 : i32
    %c0_i32_1 = arith.constant 0 : i32
    return %c0_i32, %c0_i32_0 : i32, i32
  }
  func.func @transform_28(%arg0: i32) -> (i32, i32) {
    %c0_i32 = arith.constant 0 : i32
    %c0_i32_0 = arith.constant 0 : i32
    %c0_i32_1 = arith.constant 0 : i32
    return %c0_i32, %c0_i32_0 : i32, i32
  }
}

</mosaic_0001>

<llo_original>
// kernel: tpu_custom_call.1
$region0: #{tpu_custom_call.1}
  #allocation0 [shape = 'u32[]', space=smem, size = 0x4, offset = 0x4, fixed_abs, tag = 'smem constant byte address 0x4 - core index']
  #allocation1 [shape = 'u32[144,128]{1,0:T(1,128)}', space=vmem, size = 0x12000, scoped, tag = 'internal scratch']
  %s0 = inlined_call_operand.hbm [shape: f32[16,32], index: 0, kind: input, shape index: {}]
  %s1 = inlined_call_operand.hbm [shape: f32[16,32], index: 1, kind: input, shape index: {}]
  %s2 = inlined_call_operand.hbm [shape: f32[16,32], index: 2, kind: input, shape index: {}]
  %s3 = inlined_call_operand.hbm [shape: f32[16,32], index: 3, kind: input, shape index: {}]
  %s4 = inlined_call_operand.hbm [shape: f32[5,32], index: 4, kind: input, shape index: {}]
  %s5 = inlined_call_operand.hbm [shape: f32[5,32], index: 5, kind: input, shape index: {}]
  %s6 = inlined_call_operand.vmem [shape: f32[32,64], index: 6, kind: input, shape index: {}]
  %s7 = inlined_call_operand.hbm [shape: f32[1,64], index: 7, kind: input, shape index: {}]
  %s8 = inlined_call_operand.vmem [shape: f32[64,32], index: 8, kind: input, shape index: {}]
  %s9 = inlined_call_operand.hbm [shape: f32[1,32], index: 9, kind: input, shape index: {}]
  %s10 = inlined_call_operand.vmem [shape: f32[3,32,32], index: 10, kind: input, shape index: {}]
  %s11 = inlined_call_operand.hbm [shape: f32[3,32], index: 11, kind: input, shape index: {}]
  %s12 = inlined_call_operand.vmem [shape: f32[4,8,32], index: 12, kind: input, shape index: {}]
  %s13 = inlined_call_operand.hbm [shape: f32[1,32], index: 13, kind: input, shape index: {}]
  %s14 = inlined_call_operand.vmem [shape: f32[32,32], index: 14, kind: input, shape index: {}]
  %s15 = inlined_call_operand.hbm [shape: f32[1,32], index: 15, kind: input, shape index: {}]
  %s16 = inlined_call_operand.hbm [shape: f32[32,32], index: 16, kind: input, shape index: {}]
  %s17 = inlined_call_operand.hbm [shape: f32[1,32], index: 17, kind: input, shape index: {}]
  %s18 = inlined_call_operand.hbm [shape: f32[7,32], index: 18, kind: input, shape index: {}]
  %s19 = inlined_call_operand.vmem [shape: f32[1,32], index: 19, kind: input, shape index: {}]
  %s20 = inlined_call_operand.vmem [shape: f32[1,32], index: 20, kind: input, shape index: {}]
  %s21 = inlined_call_operand.vmem [shape: f32[1,32], index: 21, kind: input, shape index: {}]
  %s22 = inlined_call_operand.vmem [shape: f32[32,32], index: 22, kind: input, shape index: {}]
  %s23 = inlined_call_operand.vmem [shape: f32[1,32], index: 23, kind: input, shape index: {}]
  %s24 = inlined_call_operand.hbm [shape: f32[32,64], index: 24, kind: input, shape index: {}]
  %s25 = inlined_call_operand.vmem [shape: f32[1,64], index: 25, kind: input, shape index: {}]
  %s26 = inlined_call_operand.vmem [shape: f32[64,32], index: 26, kind: input, shape index: {}]
  %s27 = inlined_call_operand.vmem [shape: f32[1,32], index: 27, kind: input, shape index: {}]
  %s28 = inlined_call_operand.hbm [shape: f32[16,32], index: 28, kind: output, shape index: {}]
  %s29 = sld [smem:[#allocation0]]
  $region182: #{tpu_custom_call.1} parent=0
    _
  %s31 = ssub.s32 1, %s29
  %s32 = scalar_select 0, %s31, %s29
  $region1: #{tpu_custom_call.1} parent=0
    #allocation2 [shape = 'u8[8192]{0}', space=vmem, size = 0x2000, scoped, tag = 'input window, operand 0, single buffered']
    #allocation3 [shape = 's32[1]{0}', space=sflag, size = 0x4, scoped, tag = 'scoped memory for tpu_custom_call.1']
    #allocation4 [shape = 's32[1]{0}', space=sflag, size = 0x4, scoped, tag = 'scoped memory for tpu_custom_call.1']
    #allocation5 [shape = 'u8[8192]{0}', space=vmem, size = 0x2000, scoped, tag = 'input window, operand 1, single buffered']
    #allocation6 [shape = 's32[1]{0}', space=sflag, size = 0x4, scoped, tag = 'scoped memory for tpu_custom_call.1']
    #allocation7 [shape = 'u8[8192]{0}', space=vmem, size = 0x2000, scoped, tag = 'input window, operand 2, single buffered']
    #allocation8 [shape = 'u8[8192]{0}', space=vmem, size = 0x2000, scoped, tag = 'input window, operand 3, single buffered']
    #allocation9 [shape = 's32[1]{0}', space=sflag, size = 0x4, scoped, tag = 'scoped memory for tpu_custom_call.1']
    #allocation10 [shape = 'u8[4096]{0}', space=vmem, size = 0x1000, scoped, tag = 'input window, operand 4, single buffered']
    #allocation11 [shape = 'u8[4096]{0}', space=vmem, size = 0x1000, scoped, tag = 'input window, operand 5, single buffered']
    #allocation12 [shape = 's32[1]{0}', space=sflag, size = 0x4, scoped, tag = 'scoped memory for tpu_custom_call.1']
    #allocation13 [shape = 'u8[512]{0}', space=vmem, size = 0x400, scoped, tag = 'input window, operand 7, single buffered']
    #allocation14 [shape = 'u8[512]{0}', space=vmem, size = 0x400, scoped, tag = 'input window, operand 9, single buffered']
    #allocation15 [shape = 's32[1]{0}', space=sflag, size = 0x4, scoped, tag = 'scoped memory for tpu_custom_call.1']
    #allocation16 [shape = 'u8[2048]{0}', space=vmem, size = 0x800, scoped, tag = 'input window, operand 11, single buffered']
    #allocation17 [shape = 'u8[512]{0}', space=vmem, size = 0x400, scoped, tag = 'input window, operand 13, single buffered']
    #allocation18 [shape = 's32[1]{0}', space=sflag, size = 0x4, scoped, tag = 'scoped memory for tpu_custom_call.1']
    #allocation19 [shape = 'u8[512]{0}', space=vmem, size = 0x400, scoped, tag = 'input window, operand 15, single buffered']
    #allocation20 [shape = 'u8[16384]{0}', space=vmem, size = 0x4000, scoped, tag = 'input window, operand 16, single buffered']
    #allocation21 [shape = 's32[1]{0}', space=sflag, size = 0x4, scoped, tag = 'scoped memory for tpu_custom_call.1']
    #allocation22 [shape = 'u8[512]{0}', space=vmem, size = 0x400, scoped, tag = 'input window, operand 17, single buffered']
    #allocation23 [shape = 'u8[4096]{0}', space=vmem, size = 0x1000, scoped, tag = 'input window, operand 18, single buffered']
    #allocation24 [shape = 's32[1]{0}', space=sflag, size = 0x4, scoped, tag = 'scoped memory for tpu_custom_call.1']
    #allocation25 [shape = 'u8[16384]{0}', space=vmem, size = 0x4000, scoped, tag = 'input window, operand 24, single buffered']
    #allocation26 [shape = 'u8[8192]{0}', space=vmem, size = 0x2000, scoped, tag = 'output window, operand 0, single buffered']
    %33 = vsyncpa [#allocation3], 0
    %34 = vsyncpa [#allocation6], 0
    %35 = vsyncpa [#allocation9], 0
    %36 = vsyncpa [#allocation12], 0
    %37 = vsyncpa [#allocation15], 0
    %38 = vsyncpa [#allocation18], 0
    %39 = vsyncpa [#allocation21], 0
    %40 = vsyncpa [#allocation24], 0
    %41 = vsyncpa [#allocation4], 0
    // Predicated region
    $region2: #{tpu_custom_call.1} parent=1 // pred_check
      _
    $region3: #{tpu_custom_call.1} parent=1 // pred_check_branch
      %43 = sbr.rel (0) target = $region5
    $region4: #{tpu_custom_call.1} parent=1 // pred_region
      %s45 = ssub.s32 256, 256
      %46 = vsyncadd [#allocation3], %s45
      %s47 = sshll.u32 [#allocation2], 4
      %s48 = int_to_ptr.vmem [resolvable:$true] %s47
      %53 = dma.hbm_to_vmem [thread:$0]  %s0, 256, %s48, [#allocation3], 128, 128, 8
    $region5: #{tpu_custom_call.1} parent=1 // pred_fallthru
      _
    // Predicated region
    $region6: #{tpu_custom_call.1} parent=1 // pred_check
      _
    $region7: #{tpu_custom_call.1} parent=1 // pred_check_branch
      %55 = sbr.rel (0) target = $region9
    $region8: #{tpu_custom_call.1} parent=1 // pred_region
      %s57 = ssub.s32 256, 256
      %58 = vsyncadd [#allocation6], %s57
      %s59 = sshll.u32 [#allocation5], 4
      %s60 = int_to_ptr.vmem [resolvable:$true] %s59
      %65 = dma.hbm_to_vmem [thread:$0]  %s1, 256, %s60, [#allocation6], 128, 128, 8
    $region9: #{tpu_custom_call.1} parent=1 // pred_fallthru
      _
    // Predicated region
    $region10: #{tpu_custom_call.1} parent=1 // pred_check
      _
    $region11: #{tpu_custom_call.1} parent=1 // pred_check_branch
      %67 = sbr.rel (0) target = $region13
    $region12: #{tpu_custom_call.1} parent=1 // pred_region
      %s69 = ssub.s32 256, 256
      %70 = vsyncadd [#allocation6], %s69
      %s71 = sshll.u32 [#allocation7], 4
      %s72 = int_to_ptr.vmem [resolvable:$true] %s71
      %77 = dma.hbm_to_vmem [thread:$0]  %s2, 256, %s72, [#allocation6], 128, 128, 8
    $region13: #{tpu_custom_call.1} parent=1 // pred_fallthru
      _
    // Predicated region
    $region14: #{tpu_custom_call.1} parent=1 // pred_check
      _
    $region15: #{tpu_custom_call.1} parent=1 // pred_check_branch
      %79 = sbr.rel (0) target = $region17
    $region16: #{tpu_custom_call.1} parent=1 // pred_region
      %s81 = ssub.s32 256, 256
      %82 = vsyncadd [#allocation9], %s81
      %s83 = sshll.u32 [#allocation8], 4
      %s84 = int_to_ptr.vmem [resolvable:$true] %s83
      %89 = dma.hbm_to_vmem [thread:$0]  %s3, 256, %s84, [#allocation9], 128, 128, 8
    $region17: #{tpu_custom_call.1} parent=1 // pred_fallthru
      _
    // Predicated region
    $region18: #{tpu_custom_call.1} parent=1 // pred_check
      _
    $region19: #{tpu_custom_call.1} parent=1 // pred_check_branch
      %91 = sbr.rel (0) target = $region21
    $region20: #{tpu_custom_call.1} parent=1 // pred_region
      %s93 = ssub.s32 128, 128
      %94 = vsyncadd [#allocation9], %s93
      %s96 = sshll.u32 [#allocation10], 4
      %s97 = int_to_ptr.vmem [resolvable:$true] %s96
      %99 = dma.hbm_to_vmem [thread:$0]  %s4, 128, %s97, [#allocation9]
    $region21: #{tpu_custom_call.1} parent=1 // pred_fallthru
      _
    // Predicated region
    $region22: #{tpu_custom_call.1} parent=1 // pred_check
      _
    $region23: #{tpu_custom_call.1} parent=1 // pred_check_branch
      %101 = sbr.rel (0) target = $region25
    $region24: #{tpu_custom_call.1} parent=1 // pred_region
      %s103 = ssub.s32 128, 128
      %104 = vsyncadd [#allocation12], %s103
      %s106 = sshll.u32 [#allocation11], 4
      %s107 = int_to_ptr.vmem [resolvable:$true] %s106
      %109 = dma.hbm_to_vmem [thread:$0]  %s5, 128, %s107, [#allocation12]
    $region25: #{tpu_custom_call.1} parent=1 // pred_fallthru
      _
    // Predicated region
    $region26: #{tpu_custom_call.1} parent=1 // pred_check
      _
    $region27: #{tpu_custom_call.1} parent=1 // pred_check_branch
      %111 = sbr.rel (0) target = $region29
    $region28: #{tpu_custom_call.1} parent=1 // pred_region
      _
    $region29: #{tpu_custom_call.1} parent=1 // pred_fallthru
      _
    // Predicated region
    $region30: #{tpu_custom_call.1} parent=1 // pred_check
      _
    $region31: #{tpu_custom_call.1} parent=1 // pred_check_branch
      %113 = sbr.rel (0) target = $region33
    $region32: #{tpu_custom_call.1} parent=1 // pred_region
      %s115 = ssub.s32 16, 16
      %116 = vsyncadd [#allocation12], %s115
      %s118 = sshll.u32 [#allocation13], 4
      %s119 = int_to_ptr.vmem [resolvable:$true] %s118
      %121 = dma.hbm_to_vmem [thread:$0]  %s7, 16, %s119, [#allocation12]
    $region33: #{tpu_custom_call.1} parent=1 // pred_fallthru
      _
    // Predicated region
    $region34: #{tpu_custom_call.1} parent=1 // pred_check
      _
    $region35: #{tpu_custom_call.1} parent=1 // pred_check_branch
      %123 = sbr.rel (0) target = $region37
    $region36: #{tpu_custom_call.1} parent=1 // pred_region
      _
    $region37: #{tpu_custom_call.1} parent=1 // pred_fallthru
      _
    // Predicated region
    $region38: #{tpu_custom_call.1} parent=1 // pred_check
      _
    $region39: #{tpu_custom_call.1} parent=1 // pred_check_branch
      %125 = sbr.rel (0) target = $region41
    $region40: #{tpu_custom_call.1} parent=1 // pred_region
      %s127 = ssub.s32 16, 16
      %128 = vsyncadd [#allocation15], %s127
      %s130 = sshll.u32 [#allocation14], 4
      %s131 = int_to_ptr.vmem [resolvable:$true] %s130
      %133 = dma.hbm_to_vmem [thread:$0]  %s9, 16, %s131, [#allocation15]
    $region41: #{tpu_custom_call.1} parent=1 // pred_fallthru
      _
    // Predicated region
    $region42: #{tpu_custom_call.1} parent=1 // pred_check
      _
    $region43: #{tpu_custom_call.1} parent=1 // pred_check_branch
      %135 = sbr.rel (0) target = $region45
    $region44: #{tpu_custom_call.1} parent=1 // pred_region
      _
    $region45: #{tpu_custom_call.1} parent=1 // pred_fallthru
      _
    // Predicated region
    $region46: #{tpu_custom_call.1} parent=1 // pred_check
      _
    $region47: #{tpu_custom_call.1} parent=1 // pred_check_branch
      %137 = sbr.rel (0) target = $region49
    $region48: #{tpu_custom_call.1} parent=1 // pred_region
      %s139 = ssub.s32 64, 64
      %140 = vsyncadd [#allocation15], %s139
      %s142 = sshll.u32 [#allocation16], 4
      %s143 = int_to_ptr.vmem [resolvable:$true] %s142
      %145 = dma.hbm_to_vmem [thread:$0]  %s11, 64, %s143, [#allocation15]
    $region49: #{tpu_custom_call.1} parent=1 // pred_fallthru
      _
    // Predicated region
    $region50: #{tpu_custom_call.1} parent=1 // pred_check
      _
    $region51: #{tpu_custom_call.1} parent=1 // pred_check_branch
      %147 = sbr.rel (0) target = $region53
    $region52: #{tpu_custom_call.1} parent=1 // pred_region
      _
    $region53: #{tpu_custom_call.1} parent=1 // pred_fallthru
      _
    // Predicated region
    $region54: #{tpu_custom_call.1} parent=1 // pred_check
      _
    $region55: #{tpu_custom_call.1} parent=1 // pred_check_branch
      %149 = sbr.rel (0) target = $region57
    $region56: #{tpu_custom_call.1} parent=1 // pred_region
      %s151 = ssub.s32 16, 16
      %152 = vsyncadd [#allocation18], %s151
      %s154 = sshll.u32 [#allocation17], 4
      %s155 = int_to_ptr.vmem [resolvable:$true] %s154
      %157 = dma.hbm_to_vmem [thread:$0]  %s13, 16, %s155, [#allocation18]
    $region57: #{tpu_custom_call.1} parent=1 // pred_fallthru
      _
    // Predicated region
    $region58: #{tpu_custom_call.1} parent=1 // pred_check
      _
    $region59: #{tpu_custom_call.1} parent=1 // pred_check_branch
      %159 = sbr.rel (0) target = $region61
    $region60: #{tpu_custom_call.1} parent=1 // pred_region
      _
    $region61: #{tpu_custom_call.1} parent=1 // pred_fallthru
      _
    // Predicated region
    $region62: #{tpu_custom_call.1} parent=1 // pred_check
      _
    $region63: #{tpu_custom_call.1} parent=1 // pred_check_branch
      %161 = sbr.rel (0) target = $region65
    $region64: #{tpu_custom_call.1} parent=1 // pred_region
      %s163 = ssub.s32 16, 16
      %164 = vsyncadd [#allocation18], %s163
      %s166 = sshll.u32 [#allocation19], 4
      %s167 = int_to_ptr.vmem [resolvable:$true] %s166
      %169 = dma.hbm_to_vmem [thread:$0]  %s15, 16, %s167, [#allocation18]
    $region65: #{tpu_custom_call.1} parent=1 // pred_fallthru
      _
    // Predicated region
    $region66: #{tpu_custom_call.1} parent=1 // pred_check
      _
    $region67: #{tpu_custom_call.1} parent=1 // pred_check_branch
      %171 = sbr.rel (0) target = $region69
    $region68: #{tpu_custom_call.1} parent=1 // pred_region
      %s173 = ssub.s32 512, 512
      %174 = vsyncadd [#allocation21], %s173
      %s175 = sshll.u32 [#allocation20], 4
      %s176 = int_to_ptr.vmem [resolvable:$true] %s175
      %181 = dma.hbm_to_vmem [thread:$0]  %s16, 512, %s176, [#allocation21], 128, 128, 8
    $region69: #{tpu_custom_call.1} parent=1 // pred_fallthru
      _
    // Predicated region
    $region70: #{tpu_custom_call.1} parent=1 // pred_check
      _
    $region71: #{tpu_custom_call.1} parent=1 // pred_check_branch
      %183 = sbr.rel (0) target = $region73
    $region72: #{tpu_custom_call.1} parent=1 // pred_region
      %s185 = ssub.s32 16, 16
      %186 = vsyncadd [#allocation21], %s185
      %s188 = sshll.u32 [#allocation22], 4
      %s189 = int_to_ptr.vmem [resolvable:$true] %s188
      %191 = dma.hbm_to_vmem [thread:$0]  %s17, 16, %s189, [#allocation21]
    $region73: #{tpu_custom_call.1} parent=1 // pred_fallthru
      _
    // Predicated region
    $region74: #{tpu_custom_call.1} parent=1 // pred_check
      _
    $region75: #{tpu_custom_call.1} parent=1 // pred_check_branch
      %193 = sbr.rel (0) target = $region77
    $region76: #{tpu_custom_call.1} parent=1 // pred_region
      %s195 = ssub.s32 128, 128
      %196 = vsyncadd [#allocation24], %s195
      %s198 = sshll.u32 [#allocation23], 4
      %s199 = int_to_ptr.vmem [resolvable:$true] %s198
      %201 = dma.hbm_to_vmem [thread:$0]  %s18, 128, %s199, [#allocation24]
    $region77: #{tpu_custom_call.1} parent=1 // pred_fallthru
      _
    // Predicated region
    $region78: #{tpu_custom_call.1} parent=1 // pred_check
      _
    $region79: #{tpu_custom_call.1} parent=1 // pred_check_branch
      %203 = sbr.rel (0) target = $region81
    $region80: #{tpu_custom_call.1} parent=1 // pred_region
      _
    $region81: #{tpu_custom_call.1} parent=1 // pred_fallthru
      _
    // Predicated region
    $region82: #{tpu_custom_call.1} parent=1 // pred_check
      _
    $region83: #{tpu_custom_call.1} parent=1 // pred_check_branch
      %205 = sbr.rel (0) target = $region85
    $region84: #{tpu_custom_call.1} parent=1 // pred_region
      _
    $region85: #{tpu_custom_call.1} parent=1 // pred_fallthru
      _
    // Predicated region
    $region86: #{tpu_custom_call.1} parent=1 // pred_check
      _
    $region87: #{tpu_custom_call.1} parent=1 // pred_check_branch
      %207 = sbr.rel (0) target = $region89
    $region88: #{tpu_custom_call.1} parent=1 // pred_region
      _
    $region89: #{tpu_custom_call.1} parent=1 // pred_fallthru
      _
    // Predicated region
    $region90: #{tpu_custom_call.1} parent=1 // pred_check
      _
    $region91: #{tpu_custom_call.1} parent=1 // pred_check_branch
      %209 = sbr.rel (0) target = $region93
    $region92: #{tpu_custom_call.1} parent=1 // pred_region
      _
    $region93: #{tpu_custom_call.1} parent=1 // pred_fallthru
      _
    // Predicated region
    $region94: #{tpu_custom_call.1} parent=1 // pred_check
      _
    $region95: #{tpu_custom_call.1} parent=1 // pred_check_branch
      %211 = sbr.rel (0) target = $region97
    $region96: #{tpu_custom_call.1} parent=1 // pred_region
      _
    $region97: #{tpu_custom_call.1} parent=1 // pred_fallthru
      _
    // Predicated region
    $region98: #{tpu_custom_call.1} parent=1 // pred_check
      _
    $region99: #{tpu_custom_call.1} parent=1 // pred_check_branch
      %213 = sbr.rel (0) target = $region101
    $region100: #{tpu_custom_call.1} parent=1 // pred_region
      %s215 = ssub.s32 512, 512
      %216 = vsyncadd [#allocation24], %s215
      %s217 = sshll.u32 [#allocation25], 4
      %s218 = int_to_ptr.vmem [resolvable:$true] %s217
      %223 = dma.hbm_to_vmem [thread:$0]  %s24, 512, %s218, [#allocation24], 128, 128, 8
    $region101: #{tpu_custom_call.1} parent=1 // pred_fallthru
      _
    // Predicated region
    $region102: #{tpu_custom_call.1} parent=1 // pred_check
      _
    $region103: #{tpu_custom_call.1} parent=1 // pred_check_branch
      %225 = sbr.rel (0) target = $region105
    $region104: #{tpu_custom_call.1} parent=1 // pred_region
      _
    $region105: #{tpu_custom_call.1} parent=1 // pred_fallthru
      _
    // Predicated region
    $region106: #{tpu_custom_call.1} parent=1 // pred_check
      _
    $region107: #{tpu_custom_call.1} parent=1 // pred_check_branch
      %227 = sbr.rel (0) target = $region109
    $region108: #{tpu_custom_call.1} parent=1 // pred_region
      _
    $region109: #{tpu_custom_call.1} parent=1 // pred_fallthru
      _
    // Predicated region
    $region110: #{tpu_custom_call.1} parent=1 // pred_check
      _
    $region111: #{tpu_custom_call.1} parent=1 // pred_check_branch
      %229 = sbr.rel (0) target = $region113
    $region112: #{tpu_custom_call.1} parent=1 // pred_region
      _
    $region113: #{tpu_custom_call.1} parent=1 // pred_fallthru
      _
    // Predicated region
    $region114: #{tpu_custom_call.1} parent=1 // pred_check
      _
    $region115: #{tpu_custom_call.1} parent=1 // pred_check_branch
      %231 = sbr.rel (0) target = $region117
    $region116: #{tpu_custom_call.1} parent=1 // pred_region
      %232 = dma.done [#allocation3], 256
    $region117: #{tpu_custom_call.1} parent=1 // pred_fallthru
      _
    // Predicated region
    $region118: #{tpu_custom_call.1} parent=1 // pred_check
      _
    $region119: #{tpu_custom_call.1} parent=1 // pred_check_branch
      %234 = sbr.rel (0) target = $region121
    $region120: #{tpu_custom_call.1} parent=1 // pred_region
      %235 = dma.done [#allocation6], 256
    $region121: #{tpu_custom_call.1} parent=1 // pred_fallthru
      _
    // Predicated region
    $region122: #{tpu_custom_call.1} parent=1 // pred_check
      _
    $region123: #{tpu_custom_call.1} parent=1 // pred_check_branch
      %237 = sbr.rel (0) target = $region125
    $region124: #{tpu_custom_call.1} parent=1 // pred_region
      %238 = dma.done [#allocation6], 256
    $region125: #{tpu_custom_call.1} parent=1 // pred_fallthru
      _
    // Predicated region
    $region126: #{tpu_custom_call.1} parent=1 // pred_check
      _
    $region127: #{tpu_custom_call.1} parent=1 // pred_check_branch
      %240 = sbr.rel (0) target = $region129
    $region128: #{tpu_custom_call.1} parent=1 // pred_region
      %241 = dma.done [#allocation9], 256
    $region129: #{tpu_custom_call.1} parent=1 // pred_fallthru
      _
    // Predicated region
    $region130: #{tpu_custom_call.1} parent=1 // pred_check
      _
    $region131: #{tpu_custom_call.1} parent=1 // pred_check_branch
      %243 = sbr.rel (0) target = $region133
    $region132: #{tpu_custom_call.1} parent=1 // pred_region
      %244 = dma.done [#allocation9], 128
    $region133: #{tpu_custom_call.1} parent=1 // pred_fallthru
      _
    // Predicated region
    $region134: #{tpu_custom_call.1} parent=1 // pred_check
      _
    $region135: #{tpu_custom_call.1} parent=1 // pred_check_branch
      %246 = sbr.rel (0) target = $region137
    $region136: #{tpu_custom_call.1} parent=1 // pred_region
      %247 = dma.done [#allocation12], 128
    $region137: #{tpu_custom_call.1} parent=1 // pred_fallthru
      _
    // Predicated region
    $region138: #{tpu_custom_call.1} parent=1 // pred_check
      _
    $region139: #{tpu_custom_call.1} parent=1 // pred_check_branch
      %249 = sbr.rel (0) target = $region141
    $region140: #{tpu_custom_call.1} parent=1 // pred_region
      %250 = dma.done [#allocation12], 16
    $region141: #{tpu_custom_call.1} parent=1 // pred_fallthru
      _
    // Predicated region
    $region142: #{tpu_custom_call.1} parent=1 // pred_check
      _
    $region143: #{tpu_custom_call.1} parent=1 // pred_check_branch
      %252 = sbr.rel (0) target = $region145
    $region144: #{tpu_custom_call.1} parent=1 // pred_region
      %253 = dma.done [#allocation15], 16
    $region145: #{tpu_custom_call.1} parent=1 // pred_fallthru
      _
    // Predicated region
    $region146: #{tpu_custom_call.1} parent=1 // pred_check
      _
    $region147: #{tpu_custom_call.1} parent=1 // pred_check_branch
      %255 = sbr.rel (0) target = $region149
    $region148: #{tpu_custom_call.1} parent=1 // pred_region
      %256 = dma.done [#allocation15], 64
    $region149: #{tpu_custom_call.1} parent=1 // pred_fallthru
      _
    // Predicated region
    $region150: #{tpu_custom_call.1} parent=1 // pred_check
      _
    $region151: #{tpu_custom_call.1} parent=1 // pred_check_branch
      %258 = sbr.rel (0) target = $region153
    $region152: #{tpu_custom_call.1} parent=1 // pred_region
      %259 = dma.done [#allocation18], 16
    $region153: #{tpu_custom_call.1} parent=1 // pred_fallthru
      _
    // Predicated region
    $region154: #{tpu_custom_call.1} parent=1 // pred_check
      _
    $region155: #{tpu_custom_call.1} parent=1 // pred_check_branch
      %261 = sbr.rel (0) target = $region157
    $region156: #{tpu_custom_call.1} parent=1 // pred_region
      %262 = dma.done [#allocation18], 16
    $region157: #{tpu_custom_call.1} parent=1 // pred_fallthru
      _
    // Predicated region
    $region158: #{tpu_custom_call.1} parent=1 // pred_check
      _
    $region159: #{tpu_custom_call.1} parent=1 // pred_check_branch
      %264 = sbr.rel (0) target = $region161
    $region160: #{tpu_custom_call.1} parent=1 // pred_region
      %265 = dma.done [#allocation21], 512
    $region161: #{tpu_custom_call.1} parent=1 // pred_fallthru
      _
    // Predicated region
    $region162: #{tpu_custom_call.1} parent=1 // pred_check
      _
    $region163: #{tpu_custom_call.1} parent=1 // pred_check_branch
      %267 = sbr.rel (0) target = $region165
    $region164: #{tpu_custom_call.1} parent=1 // pred_region
      %268 = dma.done [#allocation21], 16
    $region165: #{tpu_custom_call.1} parent=1 // pred_fallthru
      _
    // Predicated region
    $region166: #{tpu_custom_call.1} parent=1 // pred_check
      _
    $region167: #{tpu_custom_call.1} parent=1 // pred_check_branch
      %270 = sbr.rel (0) target = $region169
    $region168: #{tpu_custom_call.1} parent=1 // pred_region
      %271 = dma.done [#allocation24], 128
    $region169: #{tpu_custom_call.1} parent=1 // pred_fallthru
      _
    // Predicated region
    $region170: #{tpu_custom_call.1} parent=1 // pred_check
      _
    $region171: #{tpu_custom_call.1} parent=1 // pred_check_branch
      %273 = sbr.rel (0) target = $region173
    $region172: #{tpu_custom_call.1} parent=1 // pred_region
      %274 = dma.done [#allocation24], 512
    $region173: #{tpu_custom_call.1} parent=1 // pred_fallthru
      _
    %v275 = vld [vmem:[#allocation2] sm:$0xff]
    %v276 = vld [vmem:[#allocation2 + $0x8] sm:$0xff]
    %vm277 = vcmask 261120
    %v278 = vsel %vm277, %v275, 0.0
    %279 = vadd.xlane.f32.xlu0 %v278
    %v280 = vpop.xlane.xlu0 %279
    %v281 = vsel %vm277, %v276, 0.0
    %282 = vadd.xlane.f32.xlu0 %v281
    %v283 = vpop.xlane.xlu0 %282
    %v284 = vrcp.pop 32.0
    %v285 = vmul.f32 %v280, %v284
    %v286 = vmul.f32 %v283, %v284
    %v287 = vsub.f32 %v275, %v285
    %v288 = vsub.f32 %v276, %v286
    %v289 = vmul.f32 %v287, %v287
    %v290 = vmul.f32 %v288, %v288
    %v291 = vsel %vm277, %v289, 0.0
    %292 = vadd.xlane.f32.xlu0 %v291
    %v293 = vpop.xlane.xlu0 %292
    %v294 = vsel %vm277, %v290, 0.0
    %295 = vadd.xlane.f32.xlu0 %v294
    %v296 = vpop.xlane.xlu0 %295
    %v297 = vmul.f32 %v293, %v284
    %v298 = vmul.f32 %v296, %v284
    %v299 = vadd.f32 %v297, 1e-05
    %v300 = vadd.f32 %v298, 1e-05
    %v301 = vrsqrt.pop %v299
    %v302 = vrsqrt.pop %v300
    %v303 = vmul.f32 %v287, %v301
    %v304 = vmul.f32 %v288, %v302
    %v305 = vld [vmem:[#allocation10] sm:$0x1]
    %v306 = vlaneseq
    %v307 = vshrl.u32 %v306, 7
    %v308 = vsub.s32 0, %v307
    %v309 = vrot.slane %v305, %v308
    %v310 = vmul.f32 %v303, %v309
    %v311 = vmul.f32 %v304, %v309
    %v312 = vld [vmem:[#allocation11] sm:$0x1]
    %v313 = vlaneseq
    %v314 = vshrl.u32 %v313, 7
    %v315 = vsub.s32 0, %v314
    %v316 = vrot.slane %v312, %v315
    %v317 = vadd.f32 %v310, %v316
    %v318 = vadd.f32 %v311, %v316
    %v319 = vld [vmem:[%s6] sm:$0xff]
    %v320 = vld [vmem:[%s6 + $0x8] sm:$0xff]
    %v321 = vld [vmem:[%s6 + $0x10] sm:$0xff]
    %v322 = vld [vmem:[%s6 + $0x18] sm:$0xff]
    %v323 = vld [vmem:[#allocation13] sm:$0x1]
    %v325 = vlaneseq
    %v326 = vshrl.u32 %v325, 7
    %v327 = vsub.s32 0, %v326
    %v328 = vrot.slane %v323, %v327
    %v331 = vsel %vm277, %v317, 0
    %v334 = vsel %vm277, %v318, 0
    %336 = vmatprep.subr.mxu0 0.0
    %337 = vmatpush1.msra.mxu0 %v319
    %338 = vmatprep.subr.mxu0 0.0
    %339 = vmatpush1.msra.mxu0 %v320
    %340 = vmatprep.subr.mxu0 0.0
    %341 = vmatpush1.msra.mxu0 %v321
    %342 = vmatprep.subr.mxu0 0.0
    %343 = vmatpush1.msra.mxu0 %v322
    %344 = vmatprep.subr.mxu0 0.0
    %345 = vmatpush1.msra.mxu0 0.0
    %346 = vmatprep.subr.mxu0 0.0
    %347 = vmatpush1.msra.mxu0 0.0
    %348 = vmatprep.subr.mxu0 0.0
    %349 = vmatpush1.msra.mxu0 0.0
    %350 = vmatprep.subr.mxu0 0.0
    %351 = vmatpush1.msra.mxu0 0.0
    %352 = vmatprep.subr.mxu0 0.0
    %353 = vmatpush1.msra.mxu0 0.0
    %354 = vmatprep.subr.mxu0 0.0
    %355 = vmatpush1.msra.mxu0 0.0
    %356 = vmatprep.subr.mxu0 0.0
    %357 = vmatpush1.msra.mxu0 0.0
    %358 = vmatprep.subr.mxu0 0.0
    %359 = vmatpush1.msra.mxu0 0.0
    %360 = vmatprep.subr.mxu0 0.0
    %361 = vmatpush1.msra.mxu0 0.0
    %362 = vmatprep.subr.mxu0 0.0
    %363 = vmatpush1.msra.mxu0 0.0
    %364 = vmatprep.subr.mxu0 0.0
    %365 = vmatpush1.msra.mxu0 0.0
    %366 = vmatprep.subr.mxu0 0.0
    %367 = vmatpush1.msra.mxu0 0.0
    %368 = vmatprep.subr.mxu0 0.0
    %369 = vmatpush1.msra.mxu0 0.0
    %370 = vmatprep.subr.mxu0 0.0
    %371 = vmatpush1.msra.mxu0 0.0
    %372 = vmatprep.subr.mxu0 0.0
    %373 = vmatpush1.msra.mxu0 0.0
    %374 = vmatprep.subr.mxu0 0.0
    %375 = vmatpush1.msra.mxu0 0.0
    %376 = vmatprep.subr.mxu0 0.0
    %377 = vmatpush1.msra.mxu0 0.0
    %378 = vmatprep.subr.mxu0 0.0
    %379 = vmatpush1.msra.mxu0 0.0
    %380 = vmatprep.subr.mxu0 0.0
    %381 = vmatpush1.msra.mxu0 0.0
    %382 = vmatprep.subr.mxu0 0.0
    %383 = vmatpush1.msra.mxu0 0.0
    %384 = vmatprep.subr.mxu0 0.0
    %385 = vmatpush1.msra.mxu0 0.0
    %386 = vmatprep.subr.mxu0 0.0
    %387 = vmatpush1.msra.mxu0 0.0
    %388 = vmatprep.subr.mxu0 0.0
    %389 = vmatpush1.msra.mxu0 0.0
    %390 = vmatprep.subr.mxu0 0.0
    %391 = vmatpush1.msra.mxu0 0.0
    %392 = vmatprep.subr.mxu0 0.0
    %393 = vmatpush1.msra.mxu0 0.0
    %394 = vmatprep.subr.mxu0 0.0
    %395 = vmatpush1.msra.mxu0 0.0
    %396 = vmatprep.subr.mxu0 0.0
    %397 = vmatpush1.msra.mxu0 0.0
    %398 = vmatprep.subr.mxu0 0.0
    %399 = vmatpush1.msra.mxu0 0.0
    %400 = vmatprep.mubr.f32.mxu0 0.0
    %401 = vmatmul.mubr.f32.gmra.mrb[0].mxu0 %v331
    %v402 = vpop.f32.mrb[0].mxu0
    %v403 = vadd.f32 %v328, %v402
    %v404 = vpop.f32.mrb[0].mxu0
    %405 = vmatprep.mubr.f32.mxu0 0.0
    %406 = vmatmul.mubr.f32.gmra.mrb[0].mxu0 %v334
    %v407 = vpop.f32.mrb[0].mxu0
    %v408 = vadd.f32 %v328, %v407
    %v409 = vpop.f32.mrb[0].mxu0
    %410 = vdwg.mxu0
    %v411 = vsub.f32 0.0, %v403
    %v412 = vsub.f32 0.0, %v408
    %v413 = vmul.f32 %v411, 1.442695
    %v414 = vpow.pop %v413
    %v415 = vmul.f32 %v412, 1.442695
    %v416 = vpow.pop %v415
    %v417 = vadd.f32 %v414, 1.0
    %v418 = vadd.f32 %v416, 1.0
    %v419 = vrcp.pop %v417
    %v420 = vrcp.pop %v418
    %v421 = vmul.f32 %v403, %v419
    %v422 = vmul.f32 %v408, %v420
    %v423 = vld [vmem:[%s8] sm:$0xff]
    %v424 = vld [vmem:[%s8 + $0x8] sm:$0xff]
    %v425 = vld [vmem:[%s8 + $0x10] sm:$0xff]
    %v426 = vld [vmem:[%s8 + $0x18] sm:$0xff]
    %v427 = vld [vmem:[%s8 + $0x20] sm:$0xff]
    %v428 = vld [vmem:[%s8 + $0x28] sm:$0xff]
    %v429 = vld [vmem:[%s8 + $0x30] sm:$0xff]
    %v430 = vld [vmem:[%s8 + $0x38] sm:$0xff]
    %v431 = vld [vmem:[#allocation14] sm:$0x1]
    %v433 = vlaneseq
    %v434 = vshrl.u32 %v433, 7
    %v435 = vsub.s32 0, %v434
    %v436 = vrot.slane %v431, %v435
    %vm438 = vcmask 523264
    %v440 = vsel %vm438, %v421, 0
    %v443 = vsel %vm438, %v422, 0
    %445 = vmatprep.subr.mxu0 0.0
    %446 = vmatpush1.msra.mxu0 %v423
    %447 = vmatprep.subr.mxu0 0.0
    %448 = vmatpush1.msra.mxu0 %v424
    %449 = vmatprep.subr.mxu0 0.0
    %450 = vmatpush1.msra.mxu0 %v425
    %451 = vmatprep.subr.mxu0 0.0
    %452 = vmatpush1.msra.mxu0 %v426
    %453 = vmatprep.subr.mxu0 0.0
    %454 = vmatpush1.msra.mxu0 %v427
    %455 = vmatprep.subr.mxu0 0.0
    %456 = vmatpush1.msra.mxu0 %v428
    %457 = vmatprep.subr.mxu0 0.0
    %458 = vmatpush1.msra.mxu0 %v429
    %459 = vmatprep.subr.mxu0 0.0
    %460 = vmatpush1.msra.mxu0 %v430
    %461 = vmatprep.subr.mxu0 0.0
    %462 = vmatpush1.msra.mxu0 0.0
    %463 = vmatprep.subr.mxu0 0.0
    %464 = vmatpush1.msra.mxu0 0.0
    %465 = vmatprep.subr.mxu0 0.0
    %466 = vmatpush1.msra.mxu0 0.0
    %467 = vmatprep.subr.mxu0 0.0
    %468 = vmatpush1.msra.mxu0 0.0
    %469 = vmatprep.subr.mxu0 0.0
    %470 = vmatpush1.msra.mxu0 0.0
    %471 = vmatprep.subr.mxu0 0.0
    %472 = vmatpush1.msra.mxu0 0.0
    %473 = vmatprep.subr.mxu0 0.0
    %474 = vmatpush1.msra.mxu0 0.0
    %475 = vmatprep.subr.mxu0 0.0
    %476 = vmatpush1.msra.mxu0 0.0
    %477 = vmatprep.subr.mxu0 0.0
    %478 = vmatpush1.msra.mxu0 0.0
    %479 = vmatprep.subr.mxu0 0.0
    %480 = vmatpush1.msra.mxu0 0.0
    %481 = vmatprep.subr.mxu0 0.0
    %482 = vmatpush1.msra.mxu0 0.0
    %483 = vmatprep.subr.mxu0 0.0
    %484 = vmatpush1.msra.mxu0 0.0
    %485 = vmatprep.subr.mxu0 0.0
    %486 = vmatpush1.msra.mxu0 0.0
    %487 = vmatprep.subr.mxu0 0.0
    %488 = vmatpush1.msra.mxu0 0.0
    %489 = vmatprep.subr.mxu0 0.0
    %490 = vmatpush1.msra.mxu0 0.0
    %491 = vmatprep.subr.mxu0 0.0
    %492 = vmatpush1.msra.mxu0 0.0
    %493 = vmatprep.subr.mxu0 0.0
    %494 = vmatpush1.msra.mxu0 0.0
    %495 = vmatprep.subr.mxu0 0.0
    %496 = vmatpush1.msra.mxu0 0.0
    %497 = vmatprep.subr.mxu0 0.0
    %498 = vmatpush1.msra.mxu0 0.0
    %499 = vmatprep.subr.mxu0 0.0
    %500 = vmatpush1.msra.mxu0 0.0
    %501 = vmatprep.subr.mxu0 0.0
    %502 = vmatpush1.msra.mxu0 0.0
    %503 = vmatprep.subr.mxu0 0.0
    %504 = vmatpush1.msra.mxu0 0.0
    %505 = vmatprep.subr.mxu0 0.0
    %506 = vmatpush1.msra.mxu0 0.0
    %507 = vmatprep.subr.mxu0 0.0
    %508 = vmatpush1.msra.mxu0 0.0
    %509 = vmatprep.mubr.f32.mxu0 0.0
    %510 = vmatmul.mubr.f32.gmra.mrb[0].mxu0 %v440
    %v511 = vpop.f32.mrb[0].mxu0
    %v512 = vadd.f32 %v436, %v511
    %v513 = vpop.f32.mrb[0].mxu0
    %514 = vmatprep.mubr.f32.mxu0 0.0
    %515 = vmatmul.mubr.f32.gmra.mrb[0].mxu0 %v443
    %v516 = vpop.f32.mrb[0].mxu0
    %v517 = vadd.f32 %v436, %v516
    %v518 = vpop.f32.mrb[0].mxu0
    %519 = vdwg.mxu0
    %v520 = vmul.f32 %v512, 0.5
    %v521 = vmul.f32 %v517, 0.5
    %v522 = vadd.f32 %v275, %v520
    %v523 = vadd.f32 %v276, %v521
    %v524 = vsel %vm277, %v522, 0.0
    %525 = vadd.xlane.f32.xlu0 %v524
    %v526 = vpop.xlane.xlu0 %525
    %v527 = vsel %vm277, %v523, 0.0
    %528 = vadd.xlane.f32.xlu0 %v527
    %v529 = vpop.xlane.xlu0 %528
    %v530 = vmul.f32 %v526, %v284
    %v531 = vmul.f32 %v529, %v284
    %v532 = vsub.f32 %v522, %v530
    %v533 = vsub.f32 %v523, %v531
    %v534 = vmul.f32 %v532, %v532
    %v535 = vmul.f32 %v533, %v533
    %v536 = vsel %vm277, %v534, 0.0
    %537 = vadd.xlane.f32.xlu0 %v536
    %v538 = vpop.xlane.xlu0 %537
    %v539 = vsel %vm277, %v535, 0.0
    %540 = vadd.xlane.f32.xlu0 %v539
    %v541 = vpop.xlane.xlu0 %540
    %v542 = vmul.f32 %v538, %v284
    %v543 = vmul.f32 %v541, %v284
    %v544 = vadd.f32 %v542, 1e-05
    %v545 = vadd.f32 %v543, 1e-05
    %v546 = vrsqrt.pop %v544
    %v547 = vrsqrt.pop %v545
    %v548 = vmul.f32 %v532, %v546
    %v549 = vmul.f32 %v533, %v547
    %v550 = vld [vmem:[#allocation10 + $0x1] sm:$0x1]
    %v551 = vlaneseq
    %v552 = vshrl.u32 %v551, 7
    %v553 = vsub.s32 0, %v552
    %v554 = vrot.slane %v550, %v553
    %v555 = vmul.f32 %v548, %v554
    %v556 = vmul.f32 %v549, %v554
    %v557 = vld [vmem:[#allocation11 + $0x1] sm:$0x1]
    %v558 = vlaneseq
    %v559 = vshrl.u32 %v558, 7
    %v560 = vsub.s32 0, %v559
    %v561 = vrot.slane %v557, %v560
    %v562 = vadd.f32 %v555, %v561
    %v563 = vadd.f32 %v556, %v561
    %v564 = vld [vmem:[#allocation5] sm:$0xff]
    %v565 = vld [vmem:[#allocation5 + $0x8] sm:$0xff]
    %v566 = vmul.f32 %v562, %v564
    %v567 = vmul.f32 %v563, %v565
    %vm568 = vcmask 1047808
    %569 = vrot.lane.b32.xlu0 %v562, 32
    %v570 = vpop.permute.xlu0 %569
    %v571 = vsel %vm568, %v570, %v562
    %572 = vrot.lane.b32.xlu0 %v563, 32
    %v573 = vpop.permute.xlu0 %572
    %v574 = vsel %vm568, %v573, %v563
    %575 = vrot.lane.b32.xlu0 %v571, 32
    %v576 = vpop.permute.xlu0 %575
    %577 = vrot.lane.b32.xlu0 %v574, 32
    %v578 = vpop.permute.xlu0 %577
    %v579 = vsel %vm568, %v576, %v562
    %v580 = vsel %vm568, %v578, %v563
    %v581 = vld [vmem:[#allocation7] sm:$0xff]
    %v582 = vld [vmem:[#allocation7 + $0x8] sm:$0xff]
    %585 = vrot.lane.b32.xlu0 %v581, 4
    %v586 = vpop.permute.xlu0 %585
    %587 = vrot.lane.b32.xlu0 %v582, 4
    %v588 = vpop.permute.xlu0 %587
    %v591 = vmul.f32 %v579, %v586
    %v592 = vmul.f32 %v580, %v588
    %595 = vrot.lane.b32.xlu0 %v591, 124
    %v596 = vpop.permute.xlu0 %595
    %597 = vrot.lane.b32.xlu0 %v592, 124
    %v598 = vpop.permute.xlu0 %597
    %v601 = vadd.f32 %v566, %v596
    %v602 = vadd.f32 %v567, %v598
    %v603 = vld [vmem:[#allocation8] sm:$0xff]
    %v604 = vld [vmem:[#allocation8 + $0x8] sm:$0xff]
    %607 = vrot.lane.b32.xlu0 %v603, 28
    %v608 = vpop.permute.xlu0 %607
    %609 = vrot.lane.b32.xlu0 %v604, 28
    %v610 = vpop.permute.xlu0 %609
    %v613 = vmul.f32 %v579, %v608
    %v614 = vmul.f32 %v580, %v610
    %617 = vrot.lane.b32.xlu0 %v613, 100
    %v618 = vpop.permute.xlu0 %617
    %619 = vrot.lane.b32.xlu0 %v614, 100
    %v620 = vpop.permute.xlu0 %619
    %v623 = vadd.f32 %v601, %v618
    %v624 = vadd.f32 %v602, %v620
    %v625 = vld [vmem:[%s10] sm:$0xff]
    %v626 = vld [vmem:[%s10 + $0x8] sm:$0xff]
    %v627 = vld [vmem:[%s10 + $0x10] sm:$0xff]
    %v628 = vld [vmem:[%s10 + $0x18] sm:$0xff]
    %v629 = vld [vmem:[#allocation16] sm:$0x1]
    %v630 = vlaneseq
    %v631 = vshrl.u32 %v630, 7
    %v632 = vsub.s32 0, %v631
    %v633 = vrot.slane %v629, %v632
    %v635 = vsel %vm277, %v623, 0
    %v638 = vsel %vm277, %v624, 0
    %640 = vmatprep.subr.mxu0 0.0
    %641 = vmatpush1.msra.mxu0 %v625
    %642 = vmatprep.subr.mxu0 0.0
    %643 = vmatpush1.msra.mxu0 %v626
    %644 = vmatprep.subr.mxu0 0.0
    %645 = vmatpush1.msra.mxu0 %v627
    %646 = vmatprep.subr.mxu0 0.0
    %647 = vmatpush1.msra.mxu0 %v628
    %648 = vmatprep.subr.mxu0 0.0
    %649 = vmatpush1.msra.mxu0 0.0
    %650 = vmatprep.subr.mxu0 0.0
    %651 = vmatpush1.msra.mxu0 0.0
    %652 = vmatprep.subr.mxu0 0.0
    %653 = vmatpush1.msra.mxu0 0.0
    %654 = vmatprep.subr.mxu0 0.0
    %655 = vmatpush1.msra.mxu0 0.0
    %656 = vmatprep.subr.mxu0 0.0
    %657 = vmatpush1.msra.mxu0 0.0
    %658 = vmatprep.subr.mxu0 0.0
    %659 = vmatpush1.msra.mxu0 0.0
    %660 = vmatprep.subr.mxu0 0.0
    %661 = vmatpush1.msra.mxu0 0.0
    %662 = vmatprep.subr.mxu0 0.0
    %663 = vmatpush1.msra.mxu0 0.0
    %664 = vmatprep.subr.mxu0 0.0
    %665 = vmatpush1.msra.mxu0 0.0
    %666 = vmatprep.subr.mxu0 0.0
    %667 = vmatpush1.msra.mxu0 0.0
    %668 = vmatprep.subr.mxu0 0.0
    %669 = vmatpush1.msra.mxu0 0.0
    %670 = vmatprep.subr.mxu0 0.0
    %671 = vmatpush1.msra.mxu0 0.0
    %672 = vmatprep.subr.mxu0 0.0
    %673 = vmatpush1.msra.mxu0 0.0
    %674 = vmatprep.subr.mxu0 0.0
    %675 = vmatpush1.msra.mxu0 0.0
    %676 = vmatprep.subr.mxu0 0.0
    %677 = vmatpush1.msra.mxu0 0.0
    %678 = vmatprep.subr.mxu0 0.0
    %679 = vmatpush1.msra.mxu0 0.0
    %680 = vmatprep.subr.mxu0 0.0
    %681 = vmatpush1.msra.mxu0 0.0
    %682 = vmatprep.subr.mxu0 0.0
    %683 = vmatpush1.msra.mxu0 0.0
    %684 = vmatprep.subr.mxu0 0.0
    %685 = vmatpush1.msra.mxu0 0.0
    %686 = vmatprep.subr.mxu0 0.0
    %687 = vmatpush1.msra.mxu0 0.0
    %688 = vmatprep.subr.mxu0 0.0
    %689 = vmatpush1.msra.mxu0 0.0
    %690 = vmatprep.subr.mxu0 0.0
    %691 = vmatpush1.msra.mxu0 0.0
    %692 = vmatprep.subr.mxu0 0.0
    %693 = vmatpush1.msra.mxu0 0.0
    %694 = vmatprep.subr.mxu0 0.0
    %695 = vmatpush1.msra.mxu0 0.0
    %696 = vmatprep.subr.mxu0 0.0
    %697 = vmatpush1.msra.mxu0 0.0
    %698 = vmatprep.subr.mxu0 0.0
    %699 = vmatpush1.msra.mxu0 0.0
    %700 = vmatprep.subr.mxu0 0.0
    %701 = vmatpush1.msra.mxu0 0.0
    %702 = vmatprep.subr.mxu0 0.0
    %703 = vmatpush1.msra.mxu0 0.0
    %704 = vmatprep.mubr.f32.mxu0 0.0
    %705 = vmatmul.mubr.f32.gmra.mrb[0].mxu0 %v635
    %v706 = vpop.f32.mrb[0].mxu0
    %v707 = vadd.f32 %v633, %v706
    %v708 = vpop.f32.mrb[0].mxu0
    %709 = vmatprep.mubr.f32.mxu0 0.0
    %710 = vmatmul.mubr.f32.gmra.mrb[0].mxu0 %v638
    %v711 = vpop.f32.mrb[0].mxu0
    %v712 = vadd.f32 %v633, %v711
    %v713 = vpop.f32.mrb[0].mxu0
    %714 = vdwg.mxu0
    %s715 = scalar_lea.vmem %s10, 32
    %v716 = vld [vmem:[%s715] sm:$0xff]
    %v717 = vld [vmem:[%s715 + $0x8] sm:$0xff]
    %v718 = vld [vmem:[%s715 + $0x10] sm:$0xff]
    %v719 = vld [vmem:[%s715 + $0x18] sm:$0xff]
    %v720 = vld [vmem:[#allocation16 + $0x1] sm:$0x1]
    %v721 = vlaneseq
    %v722 = vshrl.u32 %v721, 7
    %v723 = vsub.s32 0, %v722
    %v724 = vrot.slane %v720, %v723
    %725 = vmatprep.subr.mxu0 0.0
    %726 = vmatpush1.msra.mxu0 %v716
    %727 = vmatprep.subr.mxu0 0.0
    %728 = vmatpush1.msra.mxu0 %v717
    %729 = vmatprep.subr.mxu0 0.0
    %730 = vmatpush1.msra.mxu0 %v718
    %731 = vmatprep.subr.mxu0 0.0
    %732 = vmatpush1.msra.mxu0 %v719
    %733 = vmatprep.subr.mxu0 0.0
    %734 = vmatpush1.msra.mxu0 0.0
    %735 = vmatprep.subr.mxu0 0.0
    %736 = vmatpush1.msra.mxu0 0.0
    %737 = vmatprep.subr.mxu0 0.0
    %738 = vmatpush1.msra.mxu0 0.0
    %739 = vmatprep.subr.mxu0 0.0
    %740 = vmatpush1.msra.mxu0 0.0
    %741 = vmatprep.subr.mxu0 0.0
    %742 = vmatpush1.msra.mxu0 0.0
    %743 = vmatprep.subr.mxu0 0.0
    %744 = vmatpush1.msra.mxu0 0.0
    %745 = vmatprep.subr.mxu0 0.0
    %746 = vmatpush1.msra.mxu0 0.0
    %747 = vmatprep.subr.mxu0 0.0
    %748 = vmatpush1.msra.mxu0 0.0
    %749 = vmatprep.subr.mxu0 0.0
    %750 = vmatpush1.msra.mxu0 0.0
    %751 = vmatprep.subr.mxu0 0.0
    %752 = vmatpush1.msra.mxu0 0.0
    %753 = vmatprep.subr.mxu0 0.0
    %754 = vmatpush1.msra.mxu0 0.0
    %755 = vmatprep.subr.mxu0 0.0
    %756 = vmatpush1.msra.mxu0 0.0
    %757 = vmatprep.subr.mxu0 0.0
    %758 = vmatpush1.msra.mxu0 0.0
    %759 = vmatprep.subr.mxu0 0.0
    %760 = vmatpush1.msra.mxu0 0.0
    %761 = vmatprep.subr.mxu0 0.0
    %762 = vmatpush1.msra.mxu0 0.0
    %763 = vmatprep.subr.mxu0 0.0
    %764 = vmatpush1.msra.mxu0 0.0
    %765 = vmatprep.subr.mxu0 0.0
    %766 = vmatpush1.msra.mxu0 0.0
    %767 = vmatprep.subr.mxu0 0.0
    %768 = vmatpush1.msra.mxu0 0.0
    %769 = vmatprep.subr.mxu0 0.0
    %770 = vmatpush1.msra.mxu0 0.0
    %771 = vmatprep.subr.mxu0 0.0
    %772 = vmatpush1.msra.mxu0 0.0
    %773 = vmatprep.subr.mxu0 0.0
    %774 = vmatpush1.msra.mxu0 0.0
    %775 = vmatprep.subr.mxu0 0.0
    %776 = vmatpush1.msra.mxu0 0.0
    %777 = vmatprep.subr.mxu0 0.0
    %778 = vmatpush1.msra.mxu0 0.0
    %779 = vmatprep.subr.mxu0 0.0
    %780 = vmatpush1.msra.mxu0 0.0
    %781 = vmatprep.subr.mxu0 0.0
    %782 = vmatpush1.msra.mxu0 0.0
    %783 = vmatprep.subr.mxu0 0.0
    %784 = vmatpush1.msra.mxu0 0.0
    %785 = vmatprep.subr.mxu0 0.0
    %786 = vmatpush1.msra.mxu0 0.0
    %787 = vmatprep.subr.mxu0 0.0
    %788 = vmatpush1.msra.mxu0 0.0
    %789 = vmatprep.mubr.f32.mxu0 0.0
    %790 = vmatmul.mubr.f32.gmra.mrb[0].mxu0 %v635
    %v791 = vpop.f32.mrb[0].mxu0
    %v792 = vadd.f32 %v724, %v791
    %v793 = vpop.f32.mrb[0].mxu0
    %794 = vmatprep.mubr.f32.mxu0 0.0
    %795 = vmatmul.mubr.f32.gmra.mrb[0].mxu0 %v638
    %v796 = vpop.f32.mrb[0].mxu0
    %v797 = vadd.f32 %v724, %v796
    %v798 = vpop.f32.mrb[0].mxu0
    %799 = vdwg.mxu0
    %v800 = vmul.f32 %v792, 0.35355338
    %v801 = vmul.f32 %v797, 0.35355338
    %s802 = scalar_lea.vmem %s10, 64
    %v803 = vld [vmem:[%s802] sm:$0xff]
    %v804 = vld [vmem:[%s802 + $0x8] sm:$0xff]
    %v805 = vld [vmem:[%s802 + $0x10] sm:$0xff]
    %v806 = vld [vmem:[%s802 + $0x18] sm:$0xff]
    %v807 = vld [vmem:[#allocation16 + $0x2] sm:$0x1]
    %v808 = vlaneseq
    %v809 = vshrl.u32 %v808, 7
    %v810 = vsub.s32 0, %v809
    %v811 = vrot.slane %v807, %v810
    %v813 = vsel %vm277, %v562, 0
    %v816 = vsel %vm277, %v563, 0
    %818 = vmatprep.subr.mxu0 0.0
    %819 = vmatpush1.msra.mxu0 %v803
    %820 = vmatprep.subr.mxu0 0.0
    %821 = vmatpush1.msra.mxu0 %v804
    %822 = vmatprep.subr.mxu0 0.0
    %823 = vmatpush1.msra.mxu0 %v805
    %824 = vmatprep.subr.mxu0 0.0
    %825 = vmatpush1.msra.mxu0 %v806
    %826 = vmatprep.subr.mxu0 0.0
    %827 = vmatpush1.msra.mxu0 0.0
    %828 = vmatprep.subr.mxu0 0.0
    %829 = vmatpush1.msra.mxu0 0.0
    %830 = vmatprep.subr.mxu0 0.0
    %831 = vmatpush1.msra.mxu0 0.0
    %832 = vmatprep.subr.mxu0 0.0
    %833 = vmatpush1.msra.mxu0 0.0
    %834 = vmatprep.subr.mxu0 0.0
    %835 = vmatpush1.msra.mxu0 0.0
    %836 = vmatprep.subr.mxu0 0.0
    %837 = vmatpush1.msra.mxu0 0.0
    %838 = vmatprep.subr.mxu0 0.0
    %839 = vmatpush1.msra.mxu0 0.0
    %840 = vmatprep.subr.mxu0 0.0
    %841 = vmatpush1.msra.mxu0 0.0
    %842 = vmatprep.subr.mxu0 0.0
    %843 = vmatpush1.msra.mxu0 0.0
    %844 = vmatprep.subr.mxu0 0.0
    %845 = vmatpush1.msra.mxu0 0.0
    %846 = vmatprep.subr.mxu0 0.0
    %847 = vmatpush1.msra.mxu0 0.0
    %848 = vmatprep.subr.mxu0 0.0
    %849 = vmatpush1.msra.mxu0 0.0
    %850 = vmatprep.subr.mxu0 0.0
    %851 = vmatpush1.msra.mxu0 0.0
    %852 = vmatprep.subr.mxu0 0.0
    %853 = vmatpush1.msra.mxu0 0.0
    %854 = vmatprep.subr.mxu0 0.0
    %855 = vmatpush1.msra.mxu0 0.0
    %856 = vmatprep.subr.mxu0 0.0
    %857 = vmatpush1.msra.mxu0 0.0
    %858 = vmatprep.subr.mxu0 0.0
    %859 = vmatpush1.msra.mxu0 0.0
    %860 = vmatprep.subr.mxu0 0.0
    %861 = vmatpush1.msra.mxu0 0.0
    %862 = vmatprep.subr.mxu0 0.0
    %863 = vmatpush1.msra.mxu0 0.0
    %864 = vmatprep.subr.mxu0 0.0
    %865 = vmatpush1.msra.mxu0 0.0
    %866 = vmatprep.subr.mxu0 0.0
    %867 = vmatpush1.msra.mxu0 0.0
    %868 = vmatprep.subr.mxu0 0.0
    %869 = vmatpush1.msra.mxu0 0.0
    %870 = vmatprep.subr.mxu0 0.0
    %871 = vmatpush1.msra.mxu0 0.0
    %872 = vmatprep.subr.mxu0 0.0
    %873 = vmatpush1.msra.mxu0 0.0
    %874 = vmatprep.subr.mxu0 0.0
    %875 = vmatpush1.msra.mxu0 0.0
    %876 = vmatprep.subr.mxu0 0.0
    %877 = vmatpush1.msra.mxu0 0.0
    %878 = vmatprep.subr.mxu0 0.0
    %879 = vmatpush1.msra.mxu0 0.0
    %880 = vmatprep.subr.mxu0 0.0
    %881 = vmatpush1.msra.mxu0 0.0
    %882 = vmatprep.mubr.f32.mxu0 0.0
    %883 = vmatmul.mubr.f32.gmra.mrb[0].mxu0 %v813
    %v884 = vpop.f32.mrb[0].mxu0
    %v885 = vadd.f32 %v811, %v884
    %v886 = vpop.f32.mrb[0].mxu0
    %887 = vmatprep.mubr.f32.mxu0 0.0
    %888 = vmatmul.mubr.f32.gmra.mrb[0].mxu0 %v816
    %v889 = vpop.f32.mrb[0].mxu0
    %v890 = vadd.f32 %v811, %v889
    %v891 = vpop.f32.mrb[0].mxu0
    %892 = vdwg.mxu0
    %895 = vrot.lane.b32.xlu0 %v707, 120
    %v896 = vpop.permute.xlu0 %895
    %897 = vrot.lane.b32.xlu0 %v712, 120
    %v898 = vpop.permute.xlu0 %897
    %899 = vrot.lane.b32.xlu0 %v707, 112
    %v900 = vpop.permute.xlu0 %899
    %901 = vrot.lane.b32.xlu0 %v712, 112
    %v902 = vpop.permute.xlu0 %901
    %903 = vrot.lane.b32.xlu0 %v707, 104
    %v904 = vpop.permute.xlu0 %903
    %905 = vrot.lane.b32.xlu0 %v712, 104
    %v906 = vpop.permute.xlu0 %905
    %909 = vrot.lane.b32.xlu0 %v800, 120
    %v910 = vpop.permute.xlu0 %909
    %911 = vrot.lane.b32.xlu0 %v801, 120
    %v912 = vpop.permute.xlu0 %911
    %913 = vrot.lane.b32.xlu0 %v800, 112
    %v914 = vpop.permute.xlu0 %913
    %915 = vrot.lane.b32.xlu0 %v801, 112
    %v916 = vpop.permute.xlu0 %915
    %917 = vrot.lane.b32.xlu0 %v800, 104
    %v918 = vpop.permute.xlu0 %917
    %919 = vrot.lane.b32.xlu0 %v801, 104
    %v920 = vpop.permute.xlu0 %919
    %923 = vrot.lane.b32.xlu0 %v885, 120
    %v924 = vpop.permute.xlu0 %923
    %925 = vrot.lane.b32.xlu0 %v890, 120
    %v926 = vpop.permute.xlu0 %925
    %929 = vrot.lane.b32.xlu0 %v885, 112
    %v930 = vpop.permute.xlu0 %929
    %931 = vrot.lane.b32.xlu0 %v890, 112
    %v932 = vpop.permute.xlu0 %931
    %935 = vrot.lane.b32.xlu0 %v885, 104
    %v936 = vpop.permute.xlu0 %935
    %937 = vrot.lane.b32.xlu0 %v890, 104
    %v938 = vpop.permute.xlu0 %937
    %vm941 = vcmask 64512
    %v942 = vsel %vm941, %v707, 0
    %v944 = vsel %vm941, %v800, 0
    %946 = vmatprep.subr.mxu0 0.0
    %947 = vmatpush1.xpose.msra.mxu0 %v944
    %948 = vmatprep.subr.mxu0 0.0
    %949 = vmatpush1.xpose.msra.mxu0 0.0
    %950 = vmatprep.subr.mxu0 0.0
    %951 = vmatpush1.xpose.msra.mxu0 0.0
    %952 = vmatprep.subr.mxu0 0.0
    %953 = vmatpush1.xpose.msra.mxu0 0.0
    %954 = vmatprep.subr.mxu0 0.0
    %955 = vmatpush1.xpose.msra.mxu0 0.0
    %956 = vmatprep.subr.mxu0 0.0
    %957 = vmatpush1.xpose.msra.mxu0 0.0
    %958 = vmatprep.subr.mxu0 0.0
    %959 = vmatpush1.xpose.msra.mxu0 0.0
    %960 = vmatprep.subr.mxu0 0.0
    %961 = vmatpush1.xpose.msra.mxu0 0.0
    %962 = vmatprep.subr.mxu0 0.0
    %963 = vmatpush1.xpose.msra.mxu0 0.0
    %964 = vmatprep.subr.mxu0 0.0
    %965 = vmatpush1.xpose.msra.mxu0 0.0
    %966 = vmatprep.subr.mxu0 0.0
    %967 = vmatpush1.xpose.msra.mxu0 0.0
    %968 = vmatprep.subr.mxu0 0.0
    %969 = vmatpush1.xpose.msra.mxu0 0.0
    %970 = vmatprep.subr.mxu0 0.0
    %971 = vmatpush1.xpose.msra.mxu0 0.0
    %972 = vmatprep.subr.mxu0 0.0
    %973 = vmatpush1.xpose.msra.mxu0 0.0
    %974 = vmatprep.subr.mxu0 0.0
    %975 = vmatpush1.xpose.msra.mxu0 0.0
    %976 = vmatprep.subr.mxu0 0.0
    %977 = vmatpush1.xpose.msra.mxu0 0.0
    %978 = vmatprep.subr.mxu0 0.0
    %979 = vmatpush1.xpose.msra.mxu0 0.0
    %980 = vmatprep.subr.mxu0 0.0
    %981 = vmatpush1.xpose.msra.mxu0 0.0
    %982 = vmatprep.subr.mxu0 0.0
    %983 = vmatpush1.xpose.msra.mxu0 0.0
    %984 = vmatprep.subr.mxu0 0.0
    %985 = vmatpush1.xpose.msra.mxu0 0.0
    %986 = vmatprep.subr.mxu0 0.0
    %987 = vmatpush1.xpose.msra.mxu0 0.0
    %988 = vmatprep.subr.mxu0 0.0
    %989 = vmatpush1.xpose.msra.mxu0 0.0
    %990 = vmatprep.subr.mxu0 0.0
    %991 = vmatpush1.xpose.msra.mxu0 0.0
    %992 = vmatprep.subr.mxu0 0.0
    %993 = vmatpush1.xpose.msra.mxu0 0.0
    %994 = vmatprep.subr.mxu0 0.0
    %995 = vmatpush1.xpose.msra.mxu0 0.0
    %996 = vmatprep.subr.mxu0 0.0
    %997 = vmatpush1.xpose.msra.mxu0 0.0
    %998 = vmatprep.subr.mxu0 0.0
    %999 = vmatpush1.xpose.msra.mxu0 0.0
    %1000 = vmatprep.subr.mxu0 0.0
    %1001 = vmatpush1.xpose.msra.mxu0 0.0
    %1002 = vmatprep.subr.mxu0 0.0
    %1003 = vmatpush1.xpose.msra.mxu0 0.0
    %1004 = vmatprep.subr.mxu0 0.0
    %1005 = vmatpush1.xpose.msra.mxu0 0.0
    %1006 = vmatprep.subr.mxu0 0.0
    %1007 = vmatpush1.xpose.msra.mxu0 0.0
    %1008 = vmatprep.subr.mxu0 0.0
    %1009 = vmatpush1.xpose.msra.mxu0 0.0
    %1010 = vmatprep.mubr.f32.mxu0 0.0
    %1011 = vmatmul.mubr.f32.gmra.mrb[0].mxu0 %v942
    %v1012 = vpop.f32.mrb[0].mxu0
    %v1013 = vadd.f32 0.0, %v1012
    %v1014 = vpop.f32.mrb[0].mxu0
    %1015 = vdwg.mxu0
    %v1016 = vsel %vm941, %v712, 0
    %v1018 = vsel %vm941, %v801, 0
    %1020 = vmatprep.subr.mxu0 0.0
    %1021 = vmatpush1.xpose.msra.mxu0 %v1018
    %1022 = vmatprep.subr.mxu0 0.0
    %1023 = vmatpush1.xpose.msra.mxu0 0.0
    %1024 = vmatprep.subr.mxu0 0.0
    %1025 = vmatpush1.xpose.msra.mxu0 0.0
    %1026 = vmatprep.subr.mxu0 0.0
    %1027 = vmatpush1.xpose.msra.mxu0 0.0
    %1028 = vmatprep.subr.mxu0 0.0
    %1029 = vmatpush1.xpose.msra.mxu0 0.0
    %1030 = vmatprep.subr.mxu0 0.0
    %1031 = vmatpush1.xpose.msra.mxu0 0.0
    %1032 = vmatprep.subr.mxu0 0.0
    %1033 = vmatpush1.xpose.msra.mxu0 0.0
    %1034 = vmatprep.subr.mxu0 0.0
    %1035 = vmatpush1.xpose.msra.mxu0 0.0
    %1036 = vmatprep.subr.mxu0 0.0
    %1037 = vmatpush1.xpose.msra.mxu0 0.0
    %1038 = vmatprep.subr.mxu0 0.0
    %1039 = vmatpush1.xpose.msra.mxu0 0.0
    %1040 = vmatprep.subr.mxu0 0.0
    %1041 = vmatpush1.xpose.msra.mxu0 0.0
    %1042 = vmatprep.subr.mxu0 0.0
    %1043 = vmatpush1.xpose.msra.mxu0 0.0
    %1044 = vmatprep.subr.mxu0 0.0
    %1045 = vmatpush1.xpose.msra.mxu0 0.0
    %1046 = vmatprep.subr.mxu0 0.0
    %1047 = vmatpush1.xpose.msra.mxu0 0.0
    %1048 = vmatprep.subr.mxu0 0.0
    %1049 = vmatpush1.xpose.msra.mxu0 0.0
    %1050 = vmatprep.subr.mxu0 0.0
    %1051 = vmatpush1.xpose.msra.mxu0 0.0
    %1052 = vmatprep.subr.mxu0 0.0
    %1053 = vmatpush1.xpose.msra.mxu0 0.0
    %1054 = vmatprep.subr.mxu0 0.0
    %1055 = vmatpush1.xpose.msra.mxu0 0.0
    %1056 = vmatprep.subr.mxu0 0.0
    %1057 = vmatpush1.xpose.msra.mxu0 0.0
    %1058 = vmatprep.subr.mxu0 0.0
    %1059 = vmatpush1.xpose.msra.mxu0 0.0
    %1060 = vmatprep.subr.mxu0 0.0
    %1061 = vmatpush1.xpose.msra.mxu0 0.0
    %1062 = vmatprep.subr.mxu0 0.0
    %1063 = vmatpush1.xpose.msra.mxu0 0.0
    %1064 = vmatprep.subr.mxu0 0.0
    %1065 = vmatpush1.xpose.msra.mxu0 0.0
    %1066 = vmatprep.subr.mxu0 0.0
    %1067 = vmatpush1.xpose.msra.mxu0 0.0
    %1068 = vmatprep.subr.mxu0 0.0
    %1069 = vmatpush1.xpose.msra.mxu0 0.0
    %1070 = vmatprep.subr.mxu0 0.0
    %1071 = vmatpush1.xpose.msra.mxu0 0.0
    %1072 = vmatprep.subr.mxu0 0.0
    %1073 = vmatpush1.xpose.msra.mxu0 0.0
    %1074 = vmatprep.subr.mxu0 0.0
    %1075 = vmatpush1.xpose.msra.mxu0 0.0
    %1076 = vmatprep.subr.mxu0 0.0
    %1077 = vmatpush1.xpose.msra.mxu0 0.0
    %1078 = vmatprep.subr.mxu0 0.0
    %1079 = vmatpush1.xpose.msra.mxu0 0.0
    %1080 = vmatprep.subr.mxu0 0.0
    %1081 = vmatpush1.xpose.msra.mxu0 0.0
    %1082 = vmatprep.subr.mxu0 0.0
    %1083 = vmatpush1.xpose.msra.mxu0 0.0
    %1084 = vmatprep.mubr.f32.mxu0 0.0
    %1085 = vmatmul.mubr.f32.gmra.mrb[0].mxu0 %v1016
    %v1086 = vpop.f32.mrb[0].mxu0
    %v1087 = vadd.f32 0.0, %v1086
    %v1088 = vpop.f32.mrb[0].mxu0
    %1089 = vdwg.mxu0
    %v1090 = vsel %vm941, %v896, 0
    %v1092 = vsel %vm941, %v910, 0
    %1094 = vmatprep.subr.mxu0 0.0
    %1095 = vmatpush1.xpose.msra.mxu0 %v1092
    %1096 = vmatprep.subr.mxu0 0.0
    %1097 = vmatpush1.xpose.msra.mxu0 0.0
    %1098 = vmatprep.subr.mxu0 0.0
    %1099 = vmatpush1.xpose.msra.mxu0 0.0
    %1100 = vmatprep.subr.mxu0 0.0
    %1101 = vmatpush1.xpose.msra.mxu0 0.0
    %1102 = vmatprep.subr.mxu0 0.0
    %1103 = vmatpush1.xpose.msra.mxu0 0.0
    %1104 = vmatprep.subr.mxu0 0.0
    %1105 = vmatpush1.xpose.msra.mxu0 0.0
    %1106 = vmatprep.subr.mxu0 0.0
    %1107 = vmatpush1.xpose.msra.mxu0 0.0
    %1108 = vmatprep.subr.mxu0 0.0
    %1109 = vmatpush1.xpose.msra.mxu0 0.0
    %1110 = vmatprep.subr.mxu0 0.0
    %1111 = vmatpush1.xpose.msra.mxu0 0.0
    %1112 = vmatprep.subr.mxu0 0.0
    %1113 = vmatpush1.xpose.msra.mxu0 0.0
    %1114 = vmatprep.subr.mxu0 0.0
    %1115 = vmatpush1.xpose.msra.mxu0 0.0
    %1116 = vmatprep.subr.mxu0 0.0
    %1117 = vmatpush1.xpose.msra.mxu0 0.0
    %1118 = vmatprep.subr.mxu0 0.0
    %1119 = vmatpush1.xpose.msra.mxu0 0.0
    %1120 = vmatprep.subr.mxu0 0.0
    %1121 = vmatpush1.xpose.msra.mxu0 0.0
    %1122 = vmatprep.subr.mxu0 0.0
    %1123 = vmatpush1.xpose.msra.mxu0 0.0
    %1124 = vmatprep.subr.mxu0 0.0
    %1125 = vmatpush1.xpose.msra.mxu0 0.0
    %1126 = vmatprep.subr.mxu0 0.0
    %1127 = vmatpush1.xpose.msra.mxu0 0.0
    %1128 = vmatprep.subr.mxu0 0.0
    %1129 = vmatpush1.xpose.msra.mxu0 0.0
    %1130 = vmatprep.subr.mxu0 0.0
    %1131 = vmatpush1.xpose.msra.mxu0 0.0
    %1132 = vmatprep.subr.mxu0 0.0
    %1133 = vmatpush1.xpose.msra.mxu0 0.0
    %1134 = vmatprep.subr.mxu0 0.0
    %1135 = vmatpush1.xpose.msra.mxu0 0.0
    %1136 = vmatprep.subr.mxu0 0.0
    %1137 = vmatpush1.xpose.msra.mxu0 0.0
    %1138 = vmatprep.subr.mxu0 0.0
    %1139 = vmatpush1.xpose.msra.mxu0 0.0
    %1140 = vmatprep.subr.mxu0 0.0
    %1141 = vmatpush1.xpose.msra.mxu0 0.0
    %1142 = vmatprep.subr.mxu0 0.0
    %1143 = vmatpush1.xpose.msra.mxu0 0.0
    %1144 = vmatprep.subr.mxu0 0.0
    %1145 = vmatpush1.xpose.msra.mxu0 0.0
    %1146 = vmatprep.subr.mxu0 0.0
    %1147 = vmatpush1.xpose.msra.mxu0 0.0
    %1148 = vmatprep.subr.mxu0 0.0
    %1149 = vmatpush1.xpose.msra.mxu0 0.0
    %1150 = vmatprep.subr.mxu0 0.0
    %1151 = vmatpush1.xpose.msra.mxu0 0.0
    %1152 = vmatprep.subr.mxu0 0.0
    %1153 = vmatpush1.xpose.msra.mxu0 0.0
    %1154 = vmatprep.subr.mxu0 0.0
    %1155 = vmatpush1.xpose.msra.mxu0 0.0
    %1156 = vmatprep.subr.mxu0 0.0
    %1157 = vmatpush1.xpose.msra.mxu0 0.0
    %1158 = vmatprep.mubr.f32.mxu0 0.0
    %1159 = vmatmul.mubr.f32.gmra.mrb[0].mxu0 %v1090
    %v1160 = vpop.f32.mrb[0].mxu0
    %v1161 = vadd.f32 0.0, %v1160
    %v1162 = vpop.f32.mrb[0].mxu0
    %1163 = vdwg.mxu0
    %v1164 = vsel %vm941, %v898, 0
    %v1166 = vsel %vm941, %v912, 0
    %1168 = vmatprep.subr.mxu0 0.0
    %1169 = vmatpush1.xpose.msra.mxu0 %v1166
    %1170 = vmatprep.subr.mxu0 0.0
    %1171 = vmatpush1.xpose.msra.mxu0 0.0
    %1172 = vmatprep.subr.mxu0 0.0
    %1173 = vmatpush1.xpose.msra.mxu0 0.0
    %1174 = vmatprep.subr.mxu0 0.0
    %1175 = vmatpush1.xpose.msra.mxu0 0.0
    %1176 = vmatprep.subr.mxu0 0.0
    %1177 = vmatpush1.xpose.msra.mxu0 0.0
    %1178 = vmatprep.subr.mxu0 0.0
    %1179 = vmatpush1.xpose.msra.mxu0 0.0
    %1180 = vmatprep.subr.mxu0 0.0
    %1181 = vmatpush1.xpose.msra.mxu0 0.0
    %1182 = vmatprep.subr.mxu0 0.0
    %1183 = vmatpush1.xpose.msra.mxu0 0.0
    %1184 = vmatprep.subr.mxu0 0.0
    %1185 = vmatpush1.xpose.msra.mxu0 0.0
    %1186 = vmatprep.subr.mxu0 0.0
    %1187 = vmatpush1.xpose.msra.mxu0 0.0
    %1188 = vmatprep.subr.mxu0 0.0
    %1189 = vmatpush1.xpose.msra.mxu0 0.0
    %1190 = vmatprep.subr.mxu0 0.0
    %1191 = vmatpush1.xpose.msra.mxu0 0.0
    %1192 = vmatprep.subr.mxu0 0.0
    %1193 = vmatpush1.xpose.msra.mxu0 0.0
    %1194 = vmatprep.subr.mxu0 0.0
    %1195 = vmatpush1.xpose.msra.mxu0 0.0
    %1196 = vmatprep.subr.mxu0 0.0
    %1197 = vmatpush1.xpose.msra.mxu0 0.0
    %1198 = vmatprep.subr.mxu0 0.0
    %1199 = vmatpush1.xpose.msra.mxu0 0.0
    %1200 = vmatprep.subr.mxu0 0.0
    %1201 = vmatpush1.xpose.msra.mxu0 0.0
    %1202 = vmatprep.subr.mxu0 0.0
    %1203 = vmatpush1.xpose.msra.mxu0 0.0
    %1204 = vmatprep.subr.mxu0 0.0
    %1205 = vmatpush1.xpose.msra.mxu0 0.0
    %1206 = vmatprep.subr.mxu0 0.0
    %1207 = vmatpush1.xpose.msra.mxu0 0.0
    %1208 = vmatprep.subr.mxu0 0.0
    %1209 = vmatpush1.xpose.msra.mxu0 0.0
    %1210 = vmatprep.subr.mxu0 0.0
    %1211 = vmatpush1.xpose.msra.mxu0 0.0
    %1212 = vmatprep.subr.mxu0 0.0
    %1213 = vmatpush1.xpose.msra.mxu0 0.0
    %1214 = vmatprep.subr.mxu0 0.0
    %1215 = vmatpush1.xpose.msra.mxu0 0.0
    %1216 = vmatprep.subr.mxu0 0.0
    %1217 = vmatpush1.xpose.msra.mxu0 0.0
    %1218 = vmatprep.subr.mxu0 0.0
    %1219 = vmatpush1.xpose.msra.mxu0 0.0
    %1220 = vmatprep.subr.mxu0 0.0
    %1221 = vmatpush1.xpose.msra.mxu0 0.0
    %1222 = vmatprep.subr.mxu0 0.0
    %1223 = vmatpush1.xpose.msra.mxu0 0.0
    %1224 = vmatprep.subr.mxu0 0.0
    %1225 = vmatpush1.xpose.msra.mxu0 0.0
    %1226 = vmatprep.subr.mxu0 0.0
    %1227 = vmatpush1.xpose.msra.mxu0 0.0
    %1228 = vmatprep.subr.mxu0 0.0
    %1229 = vmatpush1.xpose.msra.mxu0 0.0
    %1230 = vmatprep.subr.mxu0 0.0
    %1231 = vmatpush1.xpose.msra.mxu0 0.0
    %1232 = vmatprep.mubr.f32.mxu0 0.0
    %1233 = vmatmul.mubr.f32.gmra.mrb[0].mxu0 %v1164
    %v1234 = vpop.f32.mrb[0].mxu0
    %v1235 = vadd.f32 0.0, %v1234
    %v1236 = vpop.f32.mrb[0].mxu0
    %1237 = vdwg.mxu0
    %v1238 = vsel %vm941, %v900, 0
    %v1240 = vsel %vm941, %v914, 0
    %1242 = vmatprep.subr.mxu0 0.0
    %1243 = vmatpush1.xpose.msra.mxu0 %v1240
    %1244 = vmatprep.subr.mxu0 0.0
    %1245 = vmatpush1.xpose.msra.mxu0 0.0
    %1246 = vmatprep.subr.mxu0 0.0
    %1247 = vmatpush1.xpose.msra.mxu0 0.0
    %1248 = vmatprep.subr.mxu0 0.0
    %1249 = vmatpush1.xpose.msra.mxu0 0.0
    %1250 = vmatprep.subr.mxu0 0.0
    %1251 = vmatpush1.xpose.msra.mxu0 0.0
    %1252 = vmatprep.subr.mxu0 0.0
    %1253 = vmatpush1.xpose.msra.mxu0 0.0
    %1254 = vmatprep.subr.mxu0 0.0
    %1255 = vmatpush1.xpose.msra.mxu0 0.0
    %1256 = vmatprep.subr.mxu0 0.0
    %1257 = vmatpush1.xpose.msra.mxu0 0.0
    %1258 = vmatprep.subr.mxu0 0.0
    %1259 = vmatpush1.xpose.msra.mxu0 0.0
    %1260 = vmatprep.subr.mxu0 0.0
    %1261 = vmatpush1.xpose.msra.mxu0 0.0
    %1262 = vmatprep.subr.mxu0 0.0
    %1263 = vmatpush1.xpose.msra.mxu0 0.0
    %1264 = vmatprep.subr.mxu0 0.0
    %1265 = vmatpush1.xpose.msra.mxu0 0.0
    %1266 = vmatprep.subr.mxu0 0.0
    %1267 = vmatpush1.xpose.msra.mxu0 0.0
    %1268 = vmatprep.subr.mxu0 0.0
    %1269 = vmatpush1.xpose.msra.mxu0 0.0
    %1270 = vmatprep.subr.mxu0 0.0
    %1271 = vmatpush1.xpose.msra.mxu0 0.0
    %1272 = vmatprep.subr.mxu0 0.0
    %1273 = vmatpush1.xpose.msra.mxu0 0.0
    %1274 = vmatprep.subr.mxu0 0.0
    %1275 = vmatpush1.xpose.msra.mxu0 0.0
    %1276 = vmatprep.subr.mxu0 0.0
    %1277 = vmatpush1.xpose.msra.mxu0 0.0
    %1278 = vmatprep.subr.mxu0 0.0
    %1279 = vmatpush1.xpose.msra.mxu0 0.0
    %1280 = vmatprep.subr.mxu0 0.0
    %1281 = vmatpush1.xpose.msra.mxu0 0.0
    %1282 = vmatprep.subr.mxu0 0.0
    %1283 = vmatpush1.xpose.msra.mxu0 0.0
    %1284 = vmatprep.subr.mxu0 0.0
    %1285 = vmatpush1.xpose.msra.mxu0 0.0
    %1286 = vmatprep.subr.mxu0 0.0
    %1287 = vmatpush1.xpose.msra.mxu0 0.0
    %1288 = vmatprep.subr.mxu0 0.0
    %1289 = vmatpush1.xpose.msra.mxu0 0.0
    %1290 = vmatprep.subr.mxu0 0.0
    %1291 = vmatpush1.xpose.msra.mxu0 0.0
    %1292 = vmatprep.subr.mxu0 0.0
    %1293 = vmatpush1.xpose.msra.mxu0 0.0
    %1294 = vmatprep.subr.mxu0 0.0
    %1295 = vmatpush1.xpose.msra.mxu0 0.0
    %1296 = vmatprep.subr.mxu0 0.0
    %1297 = vmatpush1.xpose.msra.mxu0 0.0
    %1298 = vmatprep.subr.mxu0 0.0
    %1299 = vmatpush1.xpose.msra.mxu0 0.0
    %1300 = vmatprep.subr.mxu0 0.0
    %1301 = vmatpush1.xpose.msra.mxu0 0.0
    %1302 = vmatprep.subr.mxu0 0.0
    %1303 = vmatpush1.xpose.msra.mxu0 0.0
    %1304 = vmatprep.subr.mxu0 0.0
    %1305 = vmatpush1.xpose.msra.mxu0 0.0
    %1306 = vmatprep.mubr.f32.mxu0 0.0
    %1307 = vmatmul.mubr.f32.gmra.mrb[0].mxu0 %v1238
    %v1308 = vpop.f32.mrb[0].mxu0
    %v1309 = vadd.f32 0.0, %v1308
    %v1310 = vpop.f32.mrb[0].mxu0
    %1311 = vdwg.mxu0
    %v1312 = vsel %vm941, %v902, 0
    %v1314 = vsel %vm941, %v916, 0
    %1316 = vmatprep.subr.mxu0 0.0
    %1317 = vmatpush1.xpose.msra.mxu0 %v1314
    %1318 = vmatprep.subr.mxu0 0.0
    %1319 = vmatpush1.xpose.msra.mxu0 0.0
    %1320 = vmatprep.subr.mxu0 0.0
    %1321 = vmatpush1.xpose.msra.mxu0 0.0
    %1322 = vmatprep.subr.mxu0 0.0
    %1323 = vmatpush1.xpose.msra.mxu0 0.0
    %1324 = vmatprep.subr.mxu0 0.0
    %1325 = vmatpush1.xpose.msra.mxu0 0.0
    %1326 = vmatprep.subr.mxu0 0.0
    %1327 = vmatpush1.xpose.msra.mxu0 0.0
    %1328 = vmatprep.subr.mxu0 0.0
    %1329 = vmatpush1.xpose.msra.mxu0 0.0
    %1330 = vmatprep.subr.mxu0 0.0
    %1331 = vmatpush1.xpose.msra.mxu0 0.0
    %1332 = vmatprep.subr.mxu0 0.0
    %1333 = vmatpush1.xpose.msra.mxu0 0.0
    %1334 = vmatprep.subr.mxu0 0.0
    %1335 = vmatpush1.xpose.msra.mxu0 0.0
    %1336 = vmatprep.subr.mxu0 0.0
    %1337 = vmatpush1.xpose.msra.mxu0 0.0
    %1338 = vmatprep.subr.mxu0 0.0
    %1339 = vmatpush1.xpose.msra.mxu0 0.0
    %1340 = vmatprep.subr.mxu0 0.0
    %1341 = vmatpush1.xpose.msra.mxu0 0.0
    %1342 = vmatprep.subr.mxu0 0.0
    %1343 = vmatpush1.xpose.msra.mxu0 0.0
    %1344 = vmatprep.subr.mxu0 0.0
    %1345 = vmatpush1.xpose.msra.mxu0 0.0
    %1346 = vmatprep.subr.mxu0 0.0
    %1347 = vmatpush1.xpose.msra.mxu0 0.0
    %1348 = vmatprep.subr.mxu0 0.0
    %1349 = vmatpush1.xpose.msra.mxu0 0.0
    %1350 = vmatprep.subr.mxu0 0.0
    %1351 = vmatpush1.xpose.msra.mxu0 0.0
    %1352 = vmatprep.subr.mxu0 0.0
    %1353 = vmatpush1.xpose.msra.mxu0 0.0
    %1354 = vmatprep.subr.mxu0 0.0
    %1355 = vmatpush1.xpose.msra.mxu0 0.0
    %1356 = vmatprep.subr.mxu0 0.0
    %1357 = vmatpush1.xpose.msra.mxu0 0.0
    %1358 = vmatprep.subr.mxu0 0.0
    %1359 = vmatpush1.xpose.msra.mxu0 0.0
    %1360 = vmatprep.subr.mxu0 0.0
    %1361 = vmatpush1.xpose.msra.mxu0 0.0
    %1362 = vmatprep.subr.mxu0 0.0
    %1363 = vmatpush1.xpose.msra.mxu0 0.0
    %1364 = vmatprep.subr.mxu0 0.0
    %1365 = vmatpush1.xpose.msra.mxu0 0.0
    %1366 = vmatprep.subr.mxu0 0.0
    %1367 = vmatpush1.xpose.msra.mxu0 0.0
    %1368 = vmatprep.subr.mxu0 0.0
    %1369 = vmatpush1.xpose.msra.mxu0 0.0
    %1370 = vmatprep.subr.mxu0 0.0
    %1371 = vmatpush1.xpose.msra.mxu0 0.0
    %1372 = vmatprep.subr.mxu0 0.0
    %1373 = vmatpush1.xpose.msra.mxu0 0.0
    %1374 = vmatprep.subr.mxu0 0.0
    %1375 = vmatpush1.xpose.msra.mxu0 0.0
    %1376 = vmatprep.subr.mxu0 0.0
    %1377 = vmatpush1.xpose.msra.mxu0 0.0
    %1378 = vmatprep.subr.mxu0 0.0
    %1379 = vmatpush1.xpose.msra.mxu0 0.0
    %1380 = vmatprep.mubr.f32.mxu0 0.0
    %1381 = vmatmul.mubr.f32.gmra.mrb[0].mxu0 %v1312
    %v1382 = vpop.f32.mrb[0].mxu0
    %v1383 = vadd.f32 0.0, %v1382
    %v1384 = vpop.f32.mrb[0].mxu0
    %1385 = vdwg.mxu0
    %v1386 = vsel %vm941, %v904, 0
    %v1388 = vsel %vm941, %v918, 0
    %1390 = vmatprep.subr.mxu0 0.0
    %1391 = vmatpush1.xpose.msra.mxu0 %v1388
    %1392 = vmatprep.subr.mxu0 0.0
    %1393 = vmatpush1.xpose.msra.mxu0 0.0
    %1394 = vmatprep.subr.mxu0 0.0
    %1395 = vmatpush1.xpose.msra.mxu0 0.0
    %1396 = vmatprep.subr.mxu0 0.0
    %1397 = vmatpush1.xpose.msra.mxu0 0.0
    %1398 = vmatprep.subr.mxu0 0.0
    %1399 = vmatpush1.xpose.msra.mxu0 0.0
    %1400 = vmatprep.subr.mxu0 0.0
    %1401 = vmatpush1.xpose.msra.mxu0 0.0
    %1402 = vmatprep.subr.mxu0 0.0
    %1403 = vmatpush1.xpose.msra.mxu0 0.0
    %1404 = vmatprep.subr.mxu0 0.0
    %1405 = vmatpush1.xpose.msra.mxu0 0.0
    %1406 = vmatprep.subr.mxu0 0.0
    %1407 = vmatpush1.xpose.msra.mxu0 0.0
    %1408 = vmatprep.subr.mxu0 0.0
    %1409 = vmatpush1.xpose.msra.mxu0 0.0
    %1410 = vmatprep.subr.mxu0 0.0
    %1411 = vmatpush1.xpose.msra.mxu0 0.0
    %1412 = vmatprep.subr.mxu0 0.0
    %1413 = vmatpush1.xpose.msra.mxu0 0.0
    %1414 = vmatprep.subr.mxu0 0.0
    %1415 = vmatpush1.xpose.msra.mxu0 0.0
    %1416 = vmatprep.subr.mxu0 0.0
    %1417 = vmatpush1.xpose.msra.mxu0 0.0
    %1418 = vmatprep.subr.mxu0 0.0
    %1419 = vmatpush1.xpose.msra.mxu0 0.0
    %1420 = vmatprep.subr.mxu0 0.0
    %1421 = vmatpush1.xpose.msra.mxu0 0.0
    %1422 = vmatprep.subr.mxu0 0.0
    %1423 = vmatpush1.xpose.msra.mxu0 0.0
    %1424 = vmatprep.subr.mxu0 0.0
    %1425 = vmatpush1.xpose.msra.mxu0 0.0
    %1426 = vmatprep.subr.mxu0 0.0
    %1427 = vmatpush1.xpose.msra.mxu0 0.0
    %1428 = vmatprep.subr.mxu0 0.0
    %1429 = vmatpush1.xpose.msra.mxu0 0.0
    %1430 = vmatprep.subr.mxu0 0.0
    %1431 = vmatpush1.xpose.msra.mxu0 0.0
    %1432 = vmatprep.subr.mxu0 0.0
    %1433 = vmatpush1.xpose.msra.mxu0 0.0
    %1434 = vmatprep.subr.mxu0 0.0
    %1435 = vmatpush1.xpose.msra.mxu0 0.0
    %1436 = vmatprep.subr.mxu0 0.0
    %1437 = vmatpush1.xpose.msra.mxu0 0.0
    %1438 = vmatprep.subr.mxu0 0.0
    %1439 = vmatpush1.xpose.msra.mxu0 0.0
    %1440 = vmatprep.subr.mxu0 0.0
    %1441 = vmatpush1.xpose.msra.mxu0 0.0
    %1442 = vmatprep.subr.mxu0 0.0
    %1443 = vmatpush1.xpose.msra.mxu0 0.0
    %1444 = vmatprep.subr.mxu0 0.0
    %1445 = vmatpush1.xpose.msra.mxu0 0.0
    %1446 = vmatprep.subr.mxu0 0.0
    %1447 = vmatpush1.xpose.msra.mxu0 0.0
    %1448 = vmatprep.subr.mxu0 0.0
    %1449 = vmatpush1.xpose.msra.mxu0 0.0
    %1450 = vmatprep.subr.mxu0 0.0
    %1451 = vmatpush1.xpose.msra.mxu0 0.0
    %1452 = vmatprep.subr.mxu0 0.0
    %1453 = vmatpush1.xpose.msra.mxu0 0.0
    %1454 = vmatprep.mubr.f32.mxu0 0.0
    %1455 = vmatmul.mubr.f32.gmra.mrb[0].mxu0 %v1386
    %v1456 = vpop.f32.mrb[0].mxu0
    %v1457 = vadd.f32 0.0, %v1456
    %v1458 = vpop.f32.mrb[0].mxu0
    %1459 = vdwg.mxu0
    %v1460 = vsel %vm941, %v906, 0
    %v1462 = vsel %vm941, %v920, 0
    %1464 = vmatprep.subr.mxu0 0.0
    %1465 = vmatpush1.xpose.msra.mxu0 %v1462
    %1466 = vmatprep.subr.mxu0 0.0
    %1467 = vmatpush1.xpose.msra.mxu0 0.0
    %1468 = vmatprep.subr.mxu0 0.0
    %1469 = vmatpush1.xpose.msra.mxu0 0.0
    %1470 = vmatprep.subr.mxu0 0.0
    %1471 = vmatpush1.xpose.msra.mxu0 0.0
    %1472 = vmatprep.subr.mxu0 0.0
    %1473 = vmatpush1.xpose.msra.mxu0 0.0
    %1474 = vmatprep.subr.mxu0 0.0
    %1475 = vmatpush1.xpose.msra.mxu0 0.0
    %1476 = vmatprep.subr.mxu0 0.0
    %1477 = vmatpush1.xpose.msra.mxu0 0.0
    %1478 = vmatprep.subr.mxu0 0.0
    %1479 = vmatpush1.xpose.msra.mxu0 0.0
    %1480 = vmatprep.subr.mxu0 0.0
    %1481 = vmatpush1.xpose.msra.mxu0 0.0
    %1482 = vmatprep.subr.mxu0 0.0
    %1483 = vmatpush1.xpose.msra.mxu0 0.0
    %1484 = vmatprep.subr.mxu0 0.0
    %1485 = vmatpush1.xpose.msra.mxu0 0.0
    %1486 = vmatprep.subr.mxu0 0.0
    %1487 = vmatpush1.xpose.msra.mxu0 0.0
    %1488 = vmatprep.subr.mxu0 0.0
    %1489 = vmatpush1.xpose.msra.mxu0 0.0
    %1490 = vmatprep.subr.mxu0 0.0
    %1491 = vmatpush1.xpose.msra.mxu0 0.0
    %1492 = vmatprep.subr.mxu0 0.0
    %1493 = vmatpush1.xpose.msra.mxu0 0.0
    %1494 = vmatprep.subr.mxu0 0.0
    %1495 = vmatpush1.xpose.msra.mxu0 0.0
    %1496 = vmatprep.subr.mxu0 0.0
    %1497 = vmatpush1.xpose.msra.mxu0 0.0
    %1498 = vmatprep.subr.mxu0 0.0
    %1499 = vmatpush1.xpose.msra.mxu0 0.0
    %1500 = vmatprep.subr.mxu0 0.0
    %1501 = vmatpush1.xpose.msra.mxu0 0.0
    %1502 = vmatprep.subr.mxu0 0.0
    %1503 = vmatpush1.xpose.msra.mxu0 0.0
    %1504 = vmatprep.subr.mxu0 0.0
    %1505 = vmatpush1.xpose.msra.mxu0 0.0
    %1506 = vmatprep.subr.mxu0 0.0
    %1507 = vmatpush1.xpose.msra.mxu0 0.0
    %1508 = vmatprep.subr.mxu0 0.0
    %1509 = vmatpush1.xpose.msra.mxu0 0.0
    %1510 = vmatprep.subr.mxu0 0.0
    %1511 = vmatpush1.xpose.msra.mxu0 0.0
    %1512 = vmatprep.subr.mxu0 0.0
    %1513 = vmatpush1.xpose.msra.mxu0 0.0
    %1514 = vmatprep.subr.mxu0 0.0
    %1515 = vmatpush1.xpose.msra.mxu0 0.0
    %1516 = vmatprep.subr.mxu0 0.0
    %1517 = vmatpush1.xpose.msra.mxu0 0.0
    %1518 = vmatprep.subr.mxu0 0.0
    %1519 = vmatpush1.xpose.msra.mxu0 0.0
    %1520 = vmatprep.subr.mxu0 0.0
    %1521 = vmatpush1.xpose.msra.mxu0 0.0
    %1522 = vmatprep.subr.mxu0 0.0
    %1523 = vmatpush1.xpose.msra.mxu0 0.0
    %1524 = vmatprep.subr.mxu0 0.0
    %1525 = vmatpush1.xpose.msra.mxu0 0.0
    %1526 = vmatprep.subr.mxu0 0.0
    %1527 = vmatpush1.xpose.msra.mxu0 0.0
    %1528 = vmatprep.mubr.f32.mxu0 0.0
    %1529 = vmatmul.mubr.f32.gmra.mrb[0].mxu0 %v1460
    %v1530 = vpop.f32.mrb[0].mxu0
    %v1531 = vadd.f32 0.0, %v1530
    %v1532 = vpop.f32.mrb[0].mxu0
    %1533 = vdwg.mxu0
    %v1534 = vsel %vm941, %v1013, -inf
    %1535 = vmax.xlane.f32.xlu0 %v1534
    %v1536 = vpop.xlane.xlu0 %1535
    %v1537 = vsel %vm941, %v1087, -inf
    %1538 = vmax.xlane.f32.xlu0 %v1537
    %v1539 = vpop.xlane.xlu0 %1538
    %v1540 = vsel %vm941, %v1161, -inf
    %1541 = vmax.xlane.f32.xlu0 %v1540
    %v1542 = vpop.xlane.xlu0 %1541
    %v1543 = vsel %vm941, %v1235, -inf
    %1544 = vmax.xlane.f32.xlu0 %v1543
    %v1545 = vpop.xlane.xlu0 %1544
    %v1546 = vsel %vm941, %v1309, -inf
    %1547 = vmax.xlane.f32.xlu0 %v1546
    %v1548 = vpop.xlane.xlu0 %1547
    %v1549 = vsel %vm941, %v1383, -inf
    %1550 = vmax.xlane.f32.xlu0 %v1549
    %v1551 = vpop.xlane.xlu0 %1550
    %v1552 = vsel %vm941, %v1457, -inf
    %1553 = vmax.xlane.f32.xlu0 %v1552
    %v1554 = vpop.xlane.xlu0 %1553
    %v1555 = vsel %vm941, %v1531, -inf
    %1556 = vmax.xlane.f32.xlu0 %v1555
    %v1557 = vpop.xlane.xlu0 %1556
    %v1558 = vsub.f32 %v1013, %v1536
    %v1559 = vsub.f32 %v1087, %v1539
    %v1560 = vsub.f32 %v1161, %v1542
    %v1561 = vsub.f32 %v1235, %v1545
    %v1562 = vsub.f32 %v1309, %v1548
    %v1563 = vsub.f32 %v1383, %v1551
    %v1564 = vsub.f32 %v1457, %v1554
    %v1565 = vsub.f32 %v1531, %v1557
    %v1566 = vmul.f32 %v1558, 1.442695
    %v1567 = vpow.pop %v1566
    %v1568 = vmul.f32 %v1559, 1.442695
    %v1569 = vpow.pop %v1568
    %v1570 = vmul.f32 %v1560, 1.442695
    %v1571 = vpow.pop %v1570
    %v1572 = vmul.f32 %v1561, 1.442695
    %v1573 = vpow.pop %v1572
    %v1574 = vmul.f32 %v1562, 1.442695
    %v1575 = vpow.pop %v1574
    %v1576 = vmul.f32 %v1563, 1.442695
    %v1577 = vpow.pop %v1576
    %v1578 = vmul.f32 %v1564, 1.442695
    %v1579 = vpow.pop %v1578
    %v1580 = vmul.f32 %v1565, 1.442695
    %v1581 = vpow.pop %v1580
    %v1582 = vsel %vm941, %v1567, 0.0
    %1583 = vadd.xlane.f32.xlu0 %v1582
    %v1584 = vpop.xlane.xlu0 %1583
    %v1585 = vsel %vm941, %v1569, 0.0
    %1586 = vadd.xlane.f32.xlu0 %v1585
    %v1587 = vpop.xlane.xlu0 %1586
    %v1588 = vsel %vm941, %v1571, 0.0
    %1589 = vadd.xlane.f32.xlu0 %v1588
    %v1590 = vpop.xlane.xlu0 %1589
    %v1591 = vsel %vm941, %v1573, 0.0
    %1592 = vadd.xlane.f32.xlu0 %v1591
    %v1593 = vpop.xlane.xlu0 %1592
    %v1594 = vsel %vm941, %v1575, 0.0
    %1595 = vadd.xlane.f32.xlu0 %v1594
    %v1596 = vpop.xlane.xlu0 %1595
    %v1597 = vsel %vm941, %v1577, 0.0
    %1598 = vadd.xlane.f32.xlu0 %v1597
    %v1599 = vpop.xlane.xlu0 %1598
    %v1600 = vsel %vm941, %v1579, 0.0
    %1601 = vadd.xlane.f32.xlu0 %v1600
    %v1602 = vpop.xlane.xlu0 %1601
    %v1603 = vsel %vm941, %v1581, 0.0
    %1604 = vadd.xlane.f32.xlu0 %v1603
    %v1605 = vpop.xlane.xlu0 %1604
    %v1606 = vrcp.pop %v1584
    %v1607 = vrcp.pop %v1587
    %v1608 = vrcp.pop %v1590
    %v1609 = vrcp.pop %v1593
    %v1610 = vrcp.pop %v1596
    %v1611 = vrcp.pop %v1599
    %v1612 = vrcp.pop %v1602
    %v1613 = vrcp.pop %v1605
    %v1614 = vmul.f32 %v1567, %v1606
    %v1615 = vmul.f32 %v1569, %v1607
    %v1616 = vmul.f32 %v1571, %v1608
    %v1617 = vmul.f32 %v1573, %v1609
    %v1618 = vmul.f32 %v1575, %v1610
    %v1619 = vmul.f32 %v1577, %v1611
    %v1620 = vmul.f32 %v1579, %v1612
    %v1621 = vmul.f32 %v1581, %v1613
    %v1623 = vsel %vm941, %v1614, 0
    %1625 = vmatprep.subr.mxu0 0.0
    %1626 = vmatpush1.msra.mxu0 %v885
    %1627 = vmatprep.subr.mxu0 0.0
    %1628 = vmatpush1.msra.mxu0 0.0
    %1629 = vmatprep.subr.mxu0 0.0
    %1630 = vmatpush1.msra.mxu0 0.0
    %1631 = vmatprep.subr.mxu0 0.0
    %1632 = vmatpush1.msra.mxu0 0.0
    %1633 = vmatprep.subr.mxu0 0.0
    %1634 = vmatpush1.msra.mxu0 0.0
    %1635 = vmatprep.subr.mxu0 0.0
    %1636 = vmatpush1.msra.mxu0 0.0
    %1637 = vmatprep.subr.mxu0 0.0
    %1638 = vmatpush1.msra.mxu0 0.0
    %1639 = vmatprep.subr.mxu0 0.0
    %1640 = vmatpush1.msra.mxu0 0.0
    %1641 = vmatprep.subr.mxu0 0.0
    %1642 = vmatpush1.msra.mxu0 0.0
    %1643 = vmatprep.subr.mxu0 0.0
    %1644 = vmatpush1.msra.mxu0 0.0
    %1645 = vmatprep.subr.mxu0 0.0
    %1646 = vmatpush1.msra.mxu0 0.0
    %1647 = vmatprep.subr.mxu0 0.0
    %1648 = vmatpush1.msra.mxu0 0.0
    %1649 = vmatprep.subr.mxu0 0.0
    %1650 = vmatpush1.msra.mxu0 0.0
    %1651 = vmatprep.subr.mxu0 0.0
    %1652 = vmatpush1.msra.mxu0 0.0
    %1653 = vmatprep.subr.mxu0 0.0
    %1654 = vmatpush1.msra.mxu0 0.0
    %1655 = vmatprep.subr.mxu0 0.0
    %1656 = vmatpush1.msra.mxu0 0.0
    %1657 = vmatprep.subr.mxu0 0.0
    %1658 = vmatpush1.msra.mxu0 0.0
    %1659 = vmatprep.subr.mxu0 0.0
    %1660 = vmatpush1.msra.mxu0 0.0
    %1661 = vmatprep.subr.mxu0 0.0
    %1662 = vmatpush1.msra.mxu0 0.0
    %1663 = vmatprep.subr.mxu0 0.0
    %1664 = vmatpush1.msra.mxu0 0.0
    %1665 = vmatprep.subr.mxu0 0.0
    %1666 = vmatpush1.msra.mxu0 0.0
    %1667 = vmatprep.subr.mxu0 0.0
    %1668 = vmatpush1.msra.mxu0 0.0
    %1669 = vmatprep.subr.mxu0 0.0
    %1670 = vmatpush1.msra.mxu0 0.0
    %1671 = vmatprep.subr.mxu0 0.0
    %1672 = vmatpush1.msra.mxu0 0.0
    %1673 = vmatprep.subr.mxu0 0.0
    %1674 = vmatpush1.msra.mxu0 0.0
    %1675 = vmatprep.subr.mxu0 0.0
    %1676 = vmatpush1.msra.mxu0 0.0
    %1677 = vmatprep.subr.mxu0 0.0
    %1678 = vmatpush1.msra.mxu0 0.0
    %1679 = vmatprep.subr.mxu0 0.0
    %1680 = vmatpush1.msra.mxu0 0.0
    %1681 = vmatprep.subr.mxu0 0.0
    %1682 = vmatpush1.msra.mxu0 0.0
    %1683 = vmatprep.subr.mxu0 0.0
    %1684 = vmatpush1.msra.mxu0 0.0
    %1685 = vmatprep.subr.mxu0 0.0
    %1686 = vmatpush1.msra.mxu0 0.0
    %1687 = vmatprep.subr.mxu0 0.0
    %1688 = vmatpush1.msra.mxu0 0.0
    %1689 = vmatprep.mubr.f32.mxu0 0.0
    %1690 = vmatmul.mubr.f32.gmra.mrb[0].mxu0 %v1623
    %v1691 = vpop.f32.mrb[0].mxu0
    %v1692 = vadd.f32 0.0, %v1691
    %v1693 = vpop.f32.mrb[0].mxu0
    %1694 = vdwg.mxu0
    %v1696 = vsel %vm941, %v1615, 0
    %1698 = vmatprep.subr.mxu0 0.0
    %1699 = vmatpush1.msra.mxu0 %v890
    %1700 = vmatprep.subr.mxu0 0.0
    %1701 = vmatpush1.msra.mxu0 0.0
    %1702 = vmatprep.subr.mxu0 0.0
    %1703 = vmatpush1.msra.mxu0 0.0
    %1704 = vmatprep.subr.mxu0 0.0
    %1705 = vmatpush1.msra.mxu0 0.0
    %1706 = vmatprep.subr.mxu0 0.0
    %1707 = vmatpush1.msra.mxu0 0.0
    %1708 = vmatprep.subr.mxu0 0.0
    %1709 = vmatpush1.msra.mxu0 0.0
    %1710 = vmatprep.subr.mxu0 0.0
    %1711 = vmatpush1.msra.mxu0 0.0
    %1712 = vmatprep.subr.mxu0 0.0
    %1713 = vmatpush1.msra.mxu0 0.0
    %1714 = vmatprep.subr.mxu0 0.0
    %1715 = vmatpush1.msra.mxu0 0.0
    %1716 = vmatprep.subr.mxu0 0.0
    %1717 = vmatpush1.msra.mxu0 0.0
    %1718 = vmatprep.subr.mxu0 0.0
    %1719 = vmatpush1.msra.mxu0 0.0
    %1720 = vmatprep.subr.mxu0 0.0
    %1721 = vmatpush1.msra.mxu0 0.0
    %1722 = vmatprep.subr.mxu0 0.0
    %1723 = vmatpush1.msra.mxu0 0.0
    %1724 = vmatprep.subr.mxu0 0.0
    %1725 = vmatpush1.msra.mxu0 0.0
    %1726 = vmatprep.subr.mxu0 0.0
    %1727 = vmatpush1.msra.mxu0 0.0
    %1728 = vmatprep.subr.mxu0 0.0
    %1729 = vmatpush1.msra.mxu0 0.0
    %1730 = vmatprep.subr.mxu0 0.0
    %1731 = vmatpush1.msra.mxu0 0.0
    %1732 = vmatprep.subr.mxu0 0.0
    %1733 = vmatpush1.msra.mxu0 0.0
    %1734 = vmatprep.subr.mxu0 0.0
    %1735 = vmatpush1.msra.mxu0 0.0
    %1736 = vmatprep.subr.mxu0 0.0
    %1737 = vmatpush1.msra.mxu0 0.0
    %1738 = vmatprep.subr.mxu0 0.0
    %1739 = vmatpush1.msra.mxu0 0.0
    %1740 = vmatprep.subr.mxu0 0.0
    %1741 = vmatpush1.msra.mxu0 0.0
    %1742 = vmatprep.subr.mxu0 0.0
    %1743 = vmatpush1.msra.mxu0 0.0
    %1744 = vmatprep.subr.mxu0 0.0
    %1745 = vmatpush1.msra.mxu0 0.0
    %1746 = vmatprep.subr.mxu0 0.0
    %1747 = vmatpush1.msra.mxu0 0.0
    %1748 = vmatprep.subr.mxu0 0.0
    %1749 = vmatpush1.msra.mxu0 0.0
    %1750 = vmatprep.subr.mxu0 0.0
    %1751 = vmatpush1.msra.mxu0 0.0
    %1752 = vmatprep.subr.mxu0 0.0
    %1753 = vmatpush1.msra.mxu0 0.0
    %1754 = vmatprep.subr.mxu0 0.0
    %1755 = vmatpush1.msra.mxu0 0.0
    %1756 = vmatprep.subr.mxu0 0.0
    %1757 = vmatpush1.msra.mxu0 0.0
    %1758 = vmatprep.subr.mxu0 0.0
    %1759 = vmatpush1.msra.mxu0 0.0
    %1760 = vmatprep.subr.mxu0 0.0
    %1761 = vmatpush1.msra.mxu0 0.0
    %1762 = vmatprep.mubr.f32.mxu0 0.0
    %1763 = vmatmul.mubr.f32.gmra.mrb[0].mxu0 %v1696
    %v1764 = vpop.f32.mrb[0].mxu0
    %v1765 = vadd.f32 0.0, %v1764
    %v1766 = vpop.f32.mrb[0].mxu0
    %1767 = vdwg.mxu0
    %v1769 = vsel %vm941, %v1616, 0
    %1771 = vmatprep.subr.mxu0 0.0
    %1772 = vmatpush1.msra.mxu0 %v924
    %1773 = vmatprep.subr.mxu0 0.0
    %1774 = vmatpush1.msra.mxu0 0.0
    %1775 = vmatprep.subr.mxu0 0.0
    %1776 = vmatpush1.msra.mxu0 0.0
    %1777 = vmatprep.subr.mxu0 0.0
    %1778 = vmatpush1.msra.mxu0 0.0
    %1779 = vmatprep.subr.mxu0 0.0
    %1780 = vmatpush1.msra.mxu0 0.0
    %1781 = vmatprep.subr.mxu0 0.0
    %1782 = vmatpush1.msra.mxu0 0.0
    %1783 = vmatprep.subr.mxu0 0.0
    %1784 = vmatpush1.msra.mxu0 0.0
    %1785 = vmatprep.subr.mxu0 0.0
    %1786 = vmatpush1.msra.mxu0 0.0
    %1787 = vmatprep.subr.mxu0 0.0
    %1788 = vmatpush1.msra.mxu0 0.0
    %1789 = vmatprep.subr.mxu0 0.0
    %1790 = vmatpush1.msra.mxu0 0.0
    %1791 = vmatprep.subr.mxu0 0.0
    %1792 = vmatpush1.msra.mxu0 0.0
    %1793 = vmatprep.subr.mxu0 0.0
    %1794 = vmatpush1.msra.mxu0 0.0
    %1795 = vmatprep.subr.mxu0 0.0
    %1796 = vmatpush1.msra.mxu0 0.0
    %1797 = vmatprep.subr.mxu0 0.0
    %1798 = vmatpush1.msra.mxu0 0.0
    %1799 = vmatprep.subr.mxu0 0.0
    %1800 = vmatpush1.msra.mxu0 0.0
    %1801 = vmatprep.subr.mxu0 0.0
    %1802 = vmatpush1.msra.mxu0 0.0
    %1803 = vmatprep.subr.mxu0 0.0
    %1804 = vmatpush1.msra.mxu0 0.0
    %1805 = vmatprep.subr.mxu0 0.0
    %1806 = vmatpush1.msra.mxu0 0.0
    %1807 = vmatprep.subr.mxu0 0.0
    %1808 = vmatpush1.msra.mxu0 0.0
    %1809 = vmatprep.subr.mxu0 0.0
    %1810 = vmatpush1.msra.mxu0 0.0
    %1811 = vmatprep.subr.mxu0 0.0
    %1812 = vmatpush1.msra.mxu0 0.0
    %1813 = vmatprep.subr.mxu0 0.0
    %1814 = vmatpush1.msra.mxu0 0.0
    %1815 = vmatprep.subr.mxu0 0.0
    %1816 = vmatpush1.msra.mxu0 0.0
    %1817 = vmatprep.subr.mxu0 0.0
    %1818 = vmatpush1.msra.mxu0 0.0
    %1819 = vmatprep.subr.mxu0 0.0
    %1820 = vmatpush1.msra.mxu0 0.0
    %1821 = vmatprep.subr.mxu0 0.0
    %1822 = vmatpush1.msra.mxu0 0.0
    %1823 = vmatprep.subr.mxu0 0.0
    %1824 = vmatpush1.msra.mxu0 0.0
    %1825 = vmatprep.subr.mxu0 0.0
    %1826 = vmatpush1.msra.mxu0 0.0
    %1827 = vmatprep.subr.mxu0 0.0
    %1828 = vmatpush1.msra.mxu0 0.0
    %1829 = vmatprep.subr.mxu0 0.0
    %1830 = vmatpush1.msra.mxu0 0.0
    %1831 = vmatprep.subr.mxu0 0.0
    %1832 = vmatpush1.msra.mxu0 0.0
    %1833 = vmatprep.subr.mxu0 0.0
    %1834 = vmatpush1.msra.mxu0 0.0
    %1835 = vmatprep.mubr.f32.mxu0 0.0
    %1836 = vmatmul.mubr.f32.gmra.mrb[0].mxu0 %v1769
    %v1837 = vpop.f32.mrb[0].mxu0
    %v1838 = vadd.f32 0.0, %v1837
    %v1839 = vpop.f32.mrb[0].mxu0
    %1840 = vdwg.mxu0
    %v1842 = vsel %vm941, %v1617, 0
    %1844 = vmatprep.subr.mxu0 0.0
    %1845 = vmatpush1.msra.mxu0 %v926
    %1846 = vmatprep.subr.mxu0 0.0
    %1847 = vmatpush1.msra.mxu0 0.0
    %1848 = vmatprep.subr.mxu0 0.0
    %1849 = vmatpush1.msra.mxu0 0.0
    %1850 = vmatprep.subr.mxu0 0.0
    %1851 = vmatpush1.msra.mxu0 0.0
    %1852 = vmatprep.subr.mxu0 0.0
    %1853 = vmatpush1.msra.mxu0 0.0
    %1854 = vmatprep.subr.mxu0 0.0
    %1855 = vmatpush1.msra.mxu0 0.0
    %1856 = vmatprep.subr.mxu0 0.0
    %1857 = vmatpush1.msra.mxu0 0.0
    %1858 = vmatprep.subr.mxu0 0.0
    %1859 = vmatpush1.msra.mxu0 0.0
    %1860 = vmatprep.subr.mxu0 0.0
    %1861 = vmatpush1.msra.mxu0 0.0
    %1862 = vmatprep.subr.mxu0 0.0
    %1863 = vmatpush1.msra.mxu0 0.0
    %1864 = vmatprep.subr.mxu0 0.0
    %1865 = vmatpush1.msra.mxu0 0.0
    %1866 = vmatprep.subr.mxu0 0.0
    %1867 = vmatpush1.msra.mxu0 0.0
    %1868 = vmatprep.subr.mxu0 0.0
    %1869 = vmatpush1.msra.mxu0 0.0
    %1870 = vmatprep.subr.mxu0 0.0
    %1871 = vmatpush1.msra.mxu0 0.0
    %1872 = vmatprep.subr.mxu0 0.0
    %1873 = vmatpush1.msra.mxu0 0.0
    %1874 = vmatprep.subr.mxu0 0.0
    %1875 = vmatpush1.msra.mxu0 0.0
    %1876 = vmatprep.subr.mxu0 0.0
    %1877 = vmatpush1.msra.mxu0 0.0
    %1878 = vmatprep.subr.mxu0 0.0
    %1879 = vmatpush1.msra.mxu0 0.0
    %1880 = vmatprep.subr.mxu0 0.0
    %1881 = vmatpush1.msra.mxu0 0.0
    %1882 = vmatprep.subr.mxu0 0.0
    %1883 = vmatpush1.msra.mxu0 0.0
    %1884 = vmatprep.subr.mxu0 0.0
    %1885 = vmatpush1.msra.mxu0 0.0
    %1886 = vmatprep.subr.mxu0 0.0
    %1887 = vmatpush1.msra.mxu0 0.0
    %1888 = vmatprep.subr.mxu0 0.0
    %1889 = vmatpush1.msra.mxu0 0.0
    %1890 = vmatprep.subr.mxu0 0.0
    %1891 = vmatpush1.msra.mxu0 0.0
    %1892 = vmatprep.subr.mxu0 0.0
    %1893 = vmatpush1.msra.mxu0 0.0
    %1894 = vmatprep.subr.mxu0 0.0
    %1895 = vmatpush1.msra.mxu0 0.0
    %1896 = vmatprep.subr.mxu0 0.0
    %1897 = vmatpush1.msra.mxu0 0.0
    %1898 = vmatprep.subr.mxu0 0.0
    %1899 = vmatpush1.msra.mxu0 0.0
    %1900 = vmatprep.subr.mxu0 0.0
    %1901 = vmatpush1.msra.mxu0 0.0
    %1902 = vmatprep.subr.mxu0 0.0
    %1903 = vmatpush1.msra.mxu0 0.0
    %1904 = vmatprep.subr.mxu0 0.0
    %1905 = vmatpush1.msra.mxu0 0.0
    %1906 = vmatprep.subr.mxu0 0.0
    %1907 = vmatpush1.msra.mxu0 0.0
    %1908 = vmatprep.mubr.f32.mxu0 0.0
    %1909 = vmatmul.mubr.f32.gmra.mrb[0].mxu0 %v1842
    %v1910 = vpop.f32.mrb[0].mxu0
    %v1911 = vadd.f32 0.0, %v1910
    %v1912 = vpop.f32.mrb[0].mxu0
    %1913 = vdwg.mxu0
    %v1915 = vsel %vm941, %v1618, 0
    %1917 = vmatprep.subr.mxu0 0.0
    %1918 = vmatpush1.msra.mxu0 %v930
    %1919 = vmatprep.subr.mxu0 0.0
    %1920 = vmatpush1.msra.mxu0 0.0
    %1921 = vmatprep.subr.mxu0 0.0
    %1922 = vmatpush1.msra.mxu0 0.0
    %1923 = vmatprep.subr.mxu0 0.0
    %1924 = vmatpush1.msra.mxu0 0.0
    %1925 = vmatprep.subr.mxu0 0.0
    %1926 = vmatpush1.msra.mxu0 0.0
    %1927 = vmatprep.subr.mxu0 0.0
    %1928 = vmatpush1.msra.mxu0 0.0
    %1929 = vmatprep.subr.mxu0 0.0
    %1930 = vmatpush1.msra.mxu0 0.0
    %1931 = vmatprep.subr.mxu0 0.0
    %1932 = vmatpush1.msra.mxu0 0.0
    %1933 = vmatprep.subr.mxu0 0.0
    %1934 = vmatpush1.msra.mxu0 0.0
    %1935 = vmatprep.subr.mxu0 0.0
    %1936 = vmatpush1.msra.mxu0 0.0
    %1937 = vmatprep.subr.mxu0 0.0
    %1938 = vmatpush1.msra.mxu0 0.0
    %1939 = vmatprep.subr.mxu0 0.0
    %1940 = vmatpush1.msra.mxu0 0.0
    %1941 = vmatprep.subr.mxu0 0.0
    %1942 = vmatpush1.msra.mxu0 0.0
    %1943 = vmatprep.subr.mxu0 0.0
    %1944 = vmatpush1.msra.mxu0 0.0
    %1945 = vmatprep.subr.mxu0 0.0
    %1946 = vmatpush1.msra.mxu0 0.0
    %1947 = vmatprep.subr.mxu0 0.0
    %1948 = vmatpush1.msra.mxu0 0.0
    %1949 = vmatprep.subr.mxu0 0.0
    %1950 = vmatpush1.msra.mxu0 0.0
    %1951 = vmatprep.subr.mxu0 0.0
    %1952 = vmatpush1.msra.mxu0 0.0
    %1953 = vmatprep.subr.mxu0 0.0
    %1954 = vmatpush1.msra.mxu0 0.0
    %1955 = vmatprep.subr.mxu0 0.0
    %1956 = vmatpush1.msra.mxu0 0.0
    %1957 = vmatprep.subr.mxu0 0.0
    %1958 = vmatpush1.msra.mxu0 0.0
    %1959 = vmatprep.subr.mxu0 0.0
    %1960 = vmatpush1.msra.mxu0 0.0
    %1961 = vmatprep.subr.mxu0 0.0
    %1962 = vmatpush1.msra.mxu0 0.0
    %1963 = vmatprep.subr.mxu0 0.0
    %1964 = vmatpush1.msra.mxu0 0.0
    %1965 = vmatprep.subr.mxu0 0.0
    %1966 = vmatpush1.msra.mxu0 0.0
    %1967 = vmatprep.subr.mxu0 0.0
    %1968 = vmatpush1.msra.mxu0 0.0
    %1969 = vmatprep.subr.mxu0 0.0
    %1970 = vmatpush1.msra.mxu0 0.0
    %1971 = vmatprep.subr.mxu0 0.0
    %1972 = vmatpush1.msra.mxu0 0.0
    %1973 = vmatprep.subr.mxu0 0.0
    %1974 = vmatpush1.msra.mxu0 0.0
    %1975 = vmatprep.subr.mxu0 0.0
    %1976 = vmatpush1.msra.mxu0 0.0
    %1977 = vmatprep.subr.mxu0 0.0
    %1978 = vmatpush1.msra.mxu0 0.0
    %1979 = vmatprep.subr.mxu0 0.0
    %1980 = vmatpush1.msra.mxu0 0.0
    %1981 = vmatprep.mubr.f32.mxu0 0.0
    %1982 = vmatmul.mubr.f32.gmra.mrb[0].mxu0 %v1915
    %v1983 = vpop.f32.mrb[0].mxu0
    %v1984 = vadd.f32 0.0, %v1983
    %v1985 = vpop.f32.mrb[0].mxu0
    %1986 = vdwg.mxu0
    %v1988 = vsel %vm941, %v1619, 0
    %1990 = vmatprep.subr.mxu0 0.0
    %1991 = vmatpush1.msra.mxu0 %v932
    %1992 = vmatprep.subr.mxu0 0.0
    %1993 = vmatpush1.msra.mxu0 0.0
    %1994 = vmatprep.subr.mxu0 0.0
    %1995 = vmatpush1.msra.mxu0 0.0
    %1996 = vmatprep.subr.mxu0 0.0
    %1997 = vmatpush1.msra.mxu0 0.0
    %1998 = vmatprep.subr.mxu0 0.0
    %1999 = vmatpush1.msra.mxu0 0.0
    %2000 = vmatprep.subr.mxu0 0.0
    %2001 = vmatpush1.msra.mxu0 0.0
    %2002 = vmatprep.subr.mxu0 0.0
    %2003 = vmatpush1.msra.mxu0 0.0
    %2004 = vmatprep.subr.mxu0 0.0
    %2005 = vmatpush1.msra.mxu0 0.0
    %2006 = vmatprep.subr.mxu0 0.0
    %2007 = vmatpush1.msra.mxu0 0.0
    %2008 = vmatprep.subr.mxu0 0.0
    %2009 = vmatpush1.msra.mxu0 0.0
    %2010 = vmatprep.subr.mxu0 0.0
    %2011 = vmatpush1.msra.mxu0 0.0
    %2012 = vmatprep.subr.mxu0 0.0
    %2013 = vmatpush1.msra.mxu0 0.0
    %2014 = vmatprep.subr.mxu0 0.0
    %2015 = vmatpush1.msra.mxu0 0.0
    %2016 = vmatprep.subr.mxu0 0.0
    %2017 = vmatpush1.msra.mxu0 0.0
    %2018 = vmatprep.subr.mxu0 0.0
    %2019 = vmatpush1.msra.mxu0 0.0
    %2020 = vmatprep.subr.mxu0 0.0
    %2021 = vmatpush1.msra.mxu0 0.0
    %2022 = vmatprep.subr.mxu0 0.0
    %2023 = vmatpush1.msra.mxu0 0.0
    %2024 = vmatprep.subr.mxu0 0.0
    %2025 = vmatpush1.msra.mxu0 0.0
    %2026 = vmatprep.subr.mxu0 0.0
    %2027 = vmatpush1.msra.mxu0 0.0
    %2028 = vmatprep.subr.mxu0 0.0
    %2029 = vmatpush1.msra.mxu0 0.0
    %2030 = vmatprep.subr.mxu0 0.0
    %2031 = vmatpush1.msra.mxu0 0.0
    %2032 = vmatprep.subr.mxu0 0.0
    %2033 = vmatpush1.msra.mxu0 0.0
    %2034 = vmatprep.subr.mxu0 0.0
    %2035 = vmatpush1.msra.mxu0 0.0
    %2036 = vmatprep.subr.mxu0 0.0
    %2037 = vmatpush1.msra.mxu0 0.0
    %2038 = vmatprep.subr.mxu0 0.0
    %2039 = vmatpush1.msra.mxu0 0.0
    %2040 = vmatprep.subr.mxu0 0.0
    %2041 = vmatpush1.msra.mxu0 0.0
    %2042 = vmatprep.subr.mxu0 0.0
    %2043 = vmatpush1.msra.mxu0 0.0
    %2044 = vmatprep.subr.mxu0 0.0
    %2045 = vmatpush1.msra.mxu0 0.0
    %2046 = vmatprep.subr.mxu0 0.0
    %2047 = vmatpush1.msra.mxu0 0.0
    %2048 = vmatprep.subr.mxu0 0.0
    %2049 = vmatpush1.msra.mxu0 0.0
    %2050 = vmatprep.subr.mxu0 0.0
    %2051 = vmatpush1.msra.mxu0 0.0
    %2052 = vmatprep.subr.mxu0 0.0
    %2053 = vmatpush1.msra.mxu0 0.0
    %2054 = vmatprep.mubr.f32.mxu0 0.0
    %2055 = vmatmul.mubr.f32.gmra.mrb[0].mxu0 %v1988
    %v2056 = vpop.f32.mrb[0].mxu0
    %v2057 = vadd.f32 0.0, %v2056
    %v2058 = vpop.f32.mrb[0].mxu0
    %2059 = vdwg.mxu0
    %v2061 = vsel %vm941, %v1620, 0
    %2063 = vmatprep.subr.mxu0 0.0
    %2064 = vmatpush1.msra.mxu0 %v936
    %2065 = vmatprep.subr.mxu0 0.0
    %2066 = vmatpush1.msra.mxu0 0.0
    %2067 = vmatprep.subr.mxu0 0.0
    %2068 = vmatpush1.msra.mxu0 0.0
    %2069 = vmatprep.subr.mxu0 0.0
    %2070 = vmatpush1.msra.mxu0 0.0
    %2071 = vmatprep.subr.mxu0 0.0
    %2072 = vmatpush1.msra.mxu0 0.0
    %2073 = vmatprep.subr.mxu0 0.0
    %2074 = vmatpush1.msra.mxu0 0.0
    %2075 = vmatprep.subr.mxu0 0.0
    %2076 = vmatpush1.msra.mxu0 0.0
    %2077 = vmatprep.subr.mxu0 0.0
    %2078 = vmatpush1.msra.mxu0 0.0
    %2079 = vmatprep.subr.mxu0 0.0
    %2080 = vmatpush1.msra.mxu0 0.0
    %2081 = vmatprep.subr.mxu0 0.0
    %2082 = vmatpush1.msra.mxu0 0.0
    %2083 = vmatprep.subr.mxu0 0.0
    %2084 = vmatpush1.msra.mxu0 0.0
    %2085 = vmatprep.subr.mxu0 0.0
    %2086 = vmatpush1.msra.mxu0 0.0
    %2087 = vmatprep.subr.mxu0 0.0
    %2088 = vmatpush1.msra.mxu0 0.0
    %2089 = vmatprep.subr.mxu0 0.0
    %2090 = vmatpush1.msra.mxu0 0.0
    %2091 = vmatprep.subr.mxu0 0.0
    %2092 = vmatpush1.msra.mxu0 0.0
    %2093 = vmatprep.subr.mxu0 0.0
    %2094 = vmatpush1.msra.mxu0 0.0
    %2095 = vmatprep.subr.mxu0 0.0
    %2096 = vmatpush1.msra.mxu0 0.0
    %2097 = vmatprep.subr.mxu0 0.0
    %2098 = vmatpush1.msra.mxu0 0.0
    %2099 = vmatprep.subr.mxu0 0.0
    %2100 = vmatpush1.msra.mxu0 0.0
    %2101 = vmatprep.subr.mxu0 0.0
    %2102 = vmatpush1.msra.mxu0 0.0
    %2103 = vmatprep.subr.mxu0 0.0
    %2104 = vmatpush1.msra.mxu0 0.0
    %2105 = vmatprep.subr.mxu0 0.0
    %2106 = vmatpush1.msra.mxu0 0.0
    %2107 = vmatprep.subr.mxu0 0.0
    %2108 = vmatpush1.msra.mxu0 0.0
    %2109 = vmatprep.subr.mxu0 0.0
    %2110 = vmatpush1.msra.mxu0 0.0
    %2111 = vmatprep.subr.mxu0 0.0
    %2112 = vmatpush1.msra.mxu0 0.0
    %2113 = vmatprep.subr.mxu0 0.0
    %2114 = vmatpush1.msra.mxu0 0.0
    %2115 = vmatprep.subr.mxu0 0.0
    %2116 = vmatpush1.msra.mxu0 0.0
    %2117 = vmatprep.subr.mxu0 0.0
    %2118 = vmatpush1.msra.mxu0 0.0
    %2119 = vmatprep.subr.mxu0 0.0
    %2120 = vmatpush1.msra.mxu0 0.0
    %2121 = vmatprep.subr.mxu0 0.0
    %2122 = vmatpush1.msra.mxu0 0.0
    %2123 = vmatprep.subr.mxu0 0.0
    %2124 = vmatpush1.msra.mxu0 0.0
    %2125 = vmatprep.subr.mxu0 0.0
    %2126 = vmatpush1.msra.mxu0 0.0
    %2127 = vmatprep.mubr.f32.mxu0 0.0
    %2128 = vmatmul.mubr.f32.gmra.mrb[0].mxu0 %v2061
    %v2129 = vpop.f32.mrb[0].mxu0
    %v2130 = vadd.f32 0.0, %v2129
    %v2131 = vpop.f32.mrb[0].mxu0
    %2132 = vdwg.mxu0
    %v2134 = vsel %vm941, %v1621, 0
    %2136 = vmatprep.subr.mxu0 0.0
    %2137 = vmatpush1.msra.mxu0 %v938
    %2138 = vmatprep.subr.mxu0 0.0
    %2139 = vmatpush1.msra.mxu0 0.0
    %2140 = vmatprep.subr.mxu0 0.0
    %2141 = vmatpush1.msra.mxu0 0.0
    %2142 = vmatprep.subr.mxu0 0.0
    %2143 = vmatpush1.msra.mxu0 0.0
    %2144 = vmatprep.subr.mxu0 0.0
    %2145 = vmatpush1.msra.mxu0 0.0
    %2146 = vmatprep.subr.mxu0 0.0
    %2147 = vmatpush1.msra.mxu0 0.0
    %2148 = vmatprep.subr.mxu0 0.0
    %2149 = vmatpush1.msra.mxu0 0.0
    %2150 = vmatprep.subr.mxu0 0.0
    %2151 = vmatpush1.msra.mxu0 0.0
    %2152 = vmatprep.subr.mxu0 0.0
    %2153 = vmatpush1.msra.mxu0 0.0
    %2154 = vmatprep.subr.mxu0 0.0
    %2155 = vmatpush1.msra.mxu0 0.0
    %2156 = vmatprep.subr.mxu0 0.0
    %2157 = vmatpush1.msra.mxu0 0.0
    %2158 = vmatprep.subr.mxu0 0.0
    %2159 = vmatpush1.msra.mxu0 0.0
    %2160 = vmatprep.subr.mxu0 0.0
    %2161 = vmatpush1.msra.mxu0 0.0
    %2162 = vmatprep.subr.mxu0 0.0
    %2163 = vmatpush1.msra.mxu0 0.0
    %2164 = vmatprep.subr.mxu0 0.0
    %2165 = vmatpush1.msra.mxu0 0.0
    %2166 = vmatprep.subr.mxu0 0.0
    %2167 = vmatpush1.msra.mxu0 0.0
    %2168 = vmatprep.subr.mxu0 0.0
    %2169 = vmatpush1.msra.mxu0 0.0
    %2170 = vmatprep.subr.mxu0 0.0
    %2171 = vmatpush1.msra.mxu0 0.0
    %2172 = vmatprep.subr.mxu0 0.0
    %2173 = vmatpush1.msra.mxu0 0.0
    %2174 = vmatprep.subr.mxu0 0.0
    %2175 = vmatpush1.msra.mxu0 0.0
    %2176 = vmatprep.subr.mxu0 0.0
    %2177 = vmatpush1.msra.mxu0 0.0
    %2178 = vmatprep.subr.mxu0 0.0
    %2179 = vmatpush1.msra.mxu0 0.0
    %2180 = vmatprep.subr.mxu0 0.0
    %2181 = vmatpush1.msra.mxu0 0.0
    %2182 = vmatprep.subr.mxu0 0.0
    %2183 = vmatpush1.msra.mxu0 0.0
    %2184 = vmatprep.subr.mxu0 0.0
    %2185 = vmatpush1.msra.mxu0 0.0
    %2186 = vmatprep.subr.mxu0 0.0
    %2187 = vmatpush1.msra.mxu0 0.0
    %2188 = vmatprep.subr.mxu0 0.0
    %2189 = vmatpush1.msra.mxu0 0.0
    %2190 = vmatprep.subr.mxu0 0.0
    %2191 = vmatpush1.msra.mxu0 0.0
    %2192 = vmatprep.subr.mxu0 0.0
    %2193 = vmatpush1.msra.mxu0 0.0
    %2194 = vmatprep.subr.mxu0 0.0
    %2195 = vmatpush1.msra.mxu0 0.0
    %2196 = vmatprep.subr.mxu0 0.0
    %2197 = vmatpush1.msra.mxu0 0.0
    %2198 = vmatprep.subr.mxu0 0.0
    %2199 = vmatpush1.msra.mxu0 0.0
    %2200 = vmatprep.mubr.f32.mxu0 0.0
    %2201 = vmatmul.mubr.f32.gmra.mrb[0].mxu0 %v2134
    %v2202 = vpop.f32.mrb[0].mxu0
    %v2203 = vadd.f32 0.0, %v2202
    %v2204 = vpop.f32.mrb[0].mxu0
    %2205 = vdwg.mxu0
    %v2206 = vld [vmem:[%s12] sm:$0xff]
    %s2207 = scalar_lea.vmem %s12, 8
    %v2208 = vld [vmem:[%s2207] sm:$0xff]
    %v2210 = vsel %vm941, %v1838, 0
    %v2213 = vsel %vm941, %v1911, 0
    %2215 = vmatprep.subr.mxu0 0.0
    %2216 = vmatpush1.msra.mxu0 %v2208
    %2217 = vmatprep.subr.mxu0 0.0
    %2218 = vmatpush1.msra.mxu0 0.0
    %2219 = vmatprep.subr.mxu0 0.0
    %2220 = vmatpush1.msra.mxu0 0.0
    %2221 = vmatprep.subr.mxu0 0.0
    %2222 = vmatpush1.msra.mxu0 0.0
    %2223 = vmatprep.subr.mxu0 0.0
    %2224 = vmatpush1.msra.mxu0 0.0
    %2225 = vmatprep.subr.mxu0 0.0
    %2226 = vmatpush1.msra.mxu0 0.0
    %2227 = vmatprep.subr.mxu0 0.0
    %2228 = vmatpush1.msra.mxu0 0.0
    %2229 = vmatprep.subr.mxu0 0.0
    %2230 = vmatpush1.msra.mxu0 0.0
    %2231 = vmatprep.subr.mxu0 0.0
    %2232 = vmatpush1.msra.mxu0 0.0
    %2233 = vmatprep.subr.mxu0 0.0
    %2234 = vmatpush1.msra.mxu0 0.0
    %2235 = vmatprep.subr.mxu0 0.0
    %2236 = vmatpush1.msra.mxu0 0.0
    %2237 = vmatprep.subr.mxu0 0.0
    %2238 = vmatpush1.msra.mxu0 0.0
    %2239 = vmatprep.subr.mxu0 0.0
    %2240 = vmatpush1.msra.mxu0 0.0
    %2241 = vmatprep.subr.mxu0 0.0
    %2242 = vmatpush1.msra.mxu0 0.0
    %2243 = vmatprep.subr.mxu0 0.0
    %2244 = vmatpush1.msra.mxu0 0.0
    %2245 = vmatprep.subr.mxu0 0.0
    %2246 = vmatpush1.msra.mxu0 0.0
    %2247 = vmatprep.subr.mxu0 0.0
    %2248 = vmatpush1.msra.mxu0 0.0
    %2249 = vmatprep.subr.mxu0 0.0
    %2250 = vmatpush1.msra.mxu0 0.0
    %2251 = vmatprep.subr.mxu0 0.0
    %2252 = vmatpush1.msra.mxu0 0.0
    %2253 = vmatprep.subr.mxu0 0.0
    %2254 = vmatpush1.msra.mxu0 0.0
    %2255 = vmatprep.subr.mxu0 0.0
    %2256 = vmatpush1.msra.mxu0 0.0
    %2257 = vmatprep.subr.mxu0 0.0
    %2258 = vmatpush1.msra.mxu0 0.0
    %2259 = vmatprep.subr.mxu0 0.0
    %2260 = vmatpush1.msra.mxu0 0.0
    %2261 = vmatprep.subr.mxu0 0.0
    %2262 = vmatpush1.msra.mxu0 0.0
    %2263 = vmatprep.subr.mxu0 0.0
    %2264 = vmatpush1.msra.mxu0 0.0
    %2265 = vmatprep.subr.mxu0 0.0
    %2266 = vmatpush1.msra.mxu0 0.0
    %2267 = vmatprep.subr.mxu0 0.0
    %2268 = vmatpush1.msra.mxu0 0.0
    %2269 = vmatprep.subr.mxu0 0.0
    %2270 = vmatpush1.msra.mxu0 0.0
    %2271 = vmatprep.subr.mxu0 0.0
    %2272 = vmatpush1.msra.mxu0 0.0
    %2273 = vmatprep.subr.mxu0 0.0
    %2274 = vmatpush1.msra.mxu0 0.0
    %2275 = vmatprep.subr.mxu0 0.0
    %2276 = vmatpush1.msra.mxu0 0.0
    %2277 = vmatprep.subr.mxu0 0.0
    %2278 = vmatpush1.msra.mxu0 0.0
    %2279 = vmatprep.mubr.f32.mxu0 0.0
    %2280 = vmatmul.mubr.f32.gmra.mrb[0].mxu0 %v2210
    %v2281 = vpop.f32.mrb[0].mxu0
    %v2282 = vadd.f32 0.0, %v2281
    %v2283 = vpop.f32.mrb[0].mxu0
    %2284 = vmatprep.mubr.f32.mxu0 0.0
    %2285 = vmatmul.mubr.f32.gmra.mrb[0].mxu0 %v2213
    %v2286 = vpop.f32.mrb[0].mxu0
    %v2287 = vadd.f32 0.0, %v2286
    %v2288 = vpop.f32.mrb[0].mxu0
    %2289 = vdwg.mxu0
    %v2291 = vsel %vm941, %v1692, 0
    %v2294 = vsel %vm941, %v1765, 0
    %2296 = vmatprep.subr.mxu0 0.0
    %2297 = vmatpush1.msra.mxu0 %v2206
    %2298 = vmatprep.subr.mxu0 0.0
    %2299 = vmatpush1.msra.mxu0 0.0
    %2300 = vmatprep.subr.mxu0 0.0
    %2301 = vmatpush1.msra.mxu0 0.0
    %2302 = vmatprep.subr.mxu0 0.0
    %2303 = vmatpush1.msra.mxu0 0.0
    %2304 = vmatprep.subr.mxu0 0.0
    %2305 = vmatpush1.msra.mxu0 0.0
    %2306 = vmatprep.subr.mxu0 0.0
    %2307 = vmatpush1.msra.mxu0 0.0
    %2308 = vmatprep.subr.mxu0 0.0
    %2309 = vmatpush1.msra.mxu0 0.0
    %2310 = vmatprep.subr.mxu0 0.0
    %2311 = vmatpush1.msra.mxu0 0.0
    %2312 = vmatprep.subr.mxu0 0.0
    %2313 = vmatpush1.msra.mxu0 0.0
    %2314 = vmatprep.subr.mxu0 0.0
    %2315 = vmatpush1.msra.mxu0 0.0
    %2316 = vmatprep.subr.mxu0 0.0
    %2317 = vmatpush1.msra.mxu0 0.0
    %2318 = vmatprep.subr.mxu0 0.0
    %2319 = vmatpush1.msra.mxu0 0.0
    %2320 = vmatprep.subr.mxu0 0.0
    %2321 = vmatpush1.msra.mxu0 0.0
    %2322 = vmatprep.subr.mxu0 0.0
    %2323 = vmatpush1.msra.mxu0 0.0
    %2324 = vmatprep.subr.mxu0 0.0
    %2325 = vmatpush1.msra.mxu0 0.0
    %2326 = vmatprep.subr.mxu0 0.0
    %2327 = vmatpush1.msra.mxu0 0.0
    %2328 = vmatprep.subr.mxu0 0.0
    %2329 = vmatpush1.msra.mxu0 0.0
    %2330 = vmatprep.subr.mxu0 0.0
    %2331 = vmatpush1.msra.mxu0 0.0
    %2332 = vmatprep.subr.mxu0 0.0
    %2333 = vmatpush1.msra.mxu0 0.0
    %2334 = vmatprep.subr.mxu0 0.0
    %2335 = vmatpush1.msra.mxu0 0.0
    %2336 = vmatprep.subr.mxu0 0.0
    %2337 = vmatpush1.msra.mxu0 0.0
    %2338 = vmatprep.subr.mxu0 0.0
    %2339 = vmatpush1.msra.mxu0 0.0
    %2340 = vmatprep.subr.mxu0 0.0
    %2341 = vmatpush1.msra.mxu0 0.0
    %2342 = vmatprep.subr.mxu0 0.0
    %2343 = vmatpush1.msra.mxu0 0.0
    %2344 = vmatprep.subr.mxu0 0.0
    %2345 = vmatpush1.msra.mxu0 0.0
    %2346 = vmatprep.subr.mxu0 0.0
    %2347 = vmatpush1.msra.mxu0 0.0
    %2348 = vmatprep.subr.mxu0 0.0
    %2349 = vmatpush1.msra.mxu0 0.0
    %2350 = vmatprep.subr.mxu0 0.0
    %2351 = vmatpush1.msra.mxu0 0.0
    %2352 = vmatprep.subr.mxu0 0.0
    %2353 = vmatpush1.msra.mxu0 0.0
    %2354 = vmatprep.subr.mxu0 0.0
    %2355 = vmatpush1.msra.mxu0 0.0
    %2356 = vmatprep.subr.mxu0 0.0
    %2357 = vmatpush1.msra.mxu0 0.0
    %2358 = vmatprep.subr.mxu0 0.0
    %2359 = vmatpush1.msra.mxu0 0.0
    %2360 = vmatprep.mubr.f32.mxu0 0.0
    %2361 = vmatmul.mubr.f32.gmra.mrb[0].mxu0 %v2291
    %v2362 = vpop.f32.mrb[0].mxu0
    %v2363 = vadd.f32 %v2282, %v2362
    %v2364 = vpop.f32.mrb[0].mxu0
    %2365 = vmatprep.mubr.f32.mxu0 0.0
    %2366 = vmatmul.mubr.f32.gmra.mrb[0].mxu0 %v2294
    %v2367 = vpop.f32.mrb[0].mxu0
    %v2368 = vadd.f32 %v2287, %v2367
    %v2369 = vpop.f32.mrb[0].mxu0
    %2370 = vdwg.mxu0
    %s2371 = scalar_lea.vmem %s12, 16
    %v2372 = vld [vmem:[%s2371] sm:$0xff]
    %v2374 = vsel %vm941, %v1984, 0
    %v2377 = vsel %vm941, %v2057, 0
    %2379 = vmatprep.subr.mxu0 0.0
    %2380 = vmatpush1.msra.mxu0 %v2372
    %2381 = vmatprep.subr.mxu0 0.0
    %2382 = vmatpush1.msra.mxu0 0.0
    %2383 = vmatprep.subr.mxu0 0.0
    %2384 = vmatpush1.msra.mxu0 0.0
    %2385 = vmatprep.subr.mxu0 0.0
    %2386 = vmatpush1.msra.mxu0 0.0
    %2387 = vmatprep.subr.mxu0 0.0
    %2388 = vmatpush1.msra.mxu0 0.0
    %2389 = vmatprep.subr.mxu0 0.0
    %2390 = vmatpush1.msra.mxu0 0.0
    %2391 = vmatprep.subr.mxu0 0.0
    %2392 = vmatpush1.msra.mxu0 0.0
    %2393 = vmatprep.subr.mxu0 0.0
    %2394 = vmatpush1.msra.mxu0 0.0
    %2395 = vmatprep.subr.mxu0 0.0
    %2396 = vmatpush1.msra.mxu0 0.0
    %2397 = vmatprep.subr.mxu0 0.0
    %2398 = vmatpush1.msra.mxu0 0.0
    %2399 = vmatprep.subr.mxu0 0.0
    %2400 = vmatpush1.msra.mxu0 0.0
    %2401 = vmatprep.subr.mxu0 0.0
    %2402 = vmatpush1.msra.mxu0 0.0
    %2403 = vmatprep.subr.mxu0 0.0
    %2404 = vmatpush1.msra.mxu0 0.0
    %2405 = vmatprep.subr.mxu0 0.0
    %2406 = vmatpush1.msra.mxu0 0.0
    %2407 = vmatprep.subr.mxu0 0.0
    %2408 = vmatpush1.msra.mxu0 0.0
    %2409 = vmatprep.subr.mxu0 0.0
    %2410 = vmatpush1.msra.mxu0 0.0
    %2411 = vmatprep.subr.mxu0 0.0
    %2412 = vmatpush1.msra.mxu0 0.0
    %2413 = vmatprep.subr.mxu0 0.0
    %2414 = vmatpush1.msra.mxu0 0.0
    %2415 = vmatprep.subr.mxu0 0.0
    %2416 = vmatpush1.msra.mxu0 0.0
    %2417 = vmatprep.subr.mxu0 0.0
    %2418 = vmatpush1.msra.mxu0 0.0
    %2419 = vmatprep.subr.mxu0 0.0
    %2420 = vmatpush1.msra.mxu0 0.0
    %2421 = vmatprep.subr.mxu0 0.0
    %2422 = vmatpush1.msra.mxu0 0.0
    %2423 = vmatprep.subr.mxu0 0.0
    %2424 = vmatpush1.msra.mxu0 0.0
    %2425 = vmatprep.subr.mxu0 0.0
    %2426 = vmatpush1.msra.mxu0 0.0
    %2427 = vmatprep.subr.mxu0 0.0
    %2428 = vmatpush1.msra.mxu0 0.0
    %2429 = vmatprep.subr.mxu0 0.0
    %2430 = vmatpush1.msra.mxu0 0.0
    %2431 = vmatprep.subr.mxu0 0.0
    %2432 = vmatpush1.msra.mxu0 0.0
    %2433 = vmatprep.subr.mxu0 0.0
    %2434 = vmatpush1.msra.mxu0 0.0
    %2435 = vmatprep.subr.mxu0 0.0
    %2436 = vmatpush1.msra.mxu0 0.0
    %2437 = vmatprep.subr.mxu0 0.0
    %2438 = vmatpush1.msra.mxu0 0.0
    %2439 = vmatprep.subr.mxu0 0.0
    %2440 = vmatpush1.msra.mxu0 0.0
    %2441 = vmatprep.subr.mxu0 0.0
    %2442 = vmatpush1.msra.mxu0 0.0
    %2443 = vmatprep.mubr.f32.mxu0 0.0
    %2444 = vmatmul.mubr.f32.gmra.mrb[0].mxu0 %v2374
    %v2445 = vpop.f32.mrb[0].mxu0
    %v2446 = vadd.f32 0.0, %v2445
    %v2447 = vpop.f32.mrb[0].mxu0
    %2448 = vmatprep.mubr.f32.mxu0 0.0
    %2449 = vmatmul.mubr.f32.gmra.mrb[0].mxu0 %v2377
    %v2450 = vpop.f32.mrb[0].mxu0
    %v2451 = vadd.f32 0.0, %v2450
    %v2452 = vpop.f32.mrb[0].mxu0
    %2453 = vdwg.mxu0
    %v2454 = vadd.f32 %v2363, %v2446
    %v2455 = vadd.f32 %v2368, %v2451
    %s2456 = scalar_lea.vmem %s12, 24
    %v2457 = vld [vmem:[%s2456] sm:$0xff]
    %v2459 = vsel %vm941, %v2130, 0
    %v2462 = vsel %vm941, %v2203, 0
    %2464 = vmatprep.subr.mxu0 0.0
    %2465 = vmatpush1.msra.mxu0 %v2457
    %2466 = vmatprep.subr.mxu0 0.0
    %2467 = vmatpush1.msra.mxu0 0.0
    %2468 = vmatprep.subr.mxu0 0.0
    %2469 = vmatpush1.msra.mxu0 0.0
    %2470 = vmatprep.subr.mxu0 0.0
    %2471 = vmatpush1.msra.mxu0 0.0
    %2472 = vmatprep.subr.mxu0 0.0
    %2473 = vmatpush1.msra.mxu0 0.0
    %2474 = vmatprep.subr.mxu0 0.0
    %2475 = vmatpush1.msra.mxu0 0.0
    %2476 = vmatprep.subr.mxu0 0.0
    %2477 = vmatpush1.msra.mxu0 0.0
    %2478 = vmatprep.subr.mxu0 0.0
    %2479 = vmatpush1.msra.mxu0 0.0
    %2480 = vmatprep.subr.mxu0 0.0
    %2481 = vmatpush1.msra.mxu0 0.0
    %2482 = vmatprep.subr.mxu0 0.0
    %2483 = vmatpush1.msra.mxu0 0.0
    %2484 = vmatprep.subr.mxu0 0.0
    %2485 = vmatpush1.msra.mxu0 0.0
    %2486 = vmatprep.subr.mxu0 0.0
    %2487 = vmatpush1.msra.mxu0 0.0
    %2488 = vmatprep.subr.mxu0 0.0
    %2489 = vmatpush1.msra.mxu0 0.0
    %2490 = vmatprep.subr.mxu0 0.0
    %2491 = vmatpush1.msra.mxu0 0.0
    %2492 = vmatprep.subr.mxu0 0.0
    %2493 = vmatpush1.msra.mxu0 0.0
    %2494 = vmatprep.subr.mxu0 0.0
    %2495 = vmatpush1.msra.mxu0 0.0
    %2496 = vmatprep.subr.mxu0 0.0
    %2497 = vmatpush1.msra.mxu0 0.0
    %2498 = vmatprep.subr.mxu0 0.0
    %2499 = vmatpush1.msra.mxu0 0.0
    %2500 = vmatprep.subr.mxu0 0.0
    %2501 = vmatpush1.msra.mxu0 0.0
    %2502 = vmatprep.subr.mxu0 0.0
    %2503 = vmatpush1.msra.mxu0 0.0
    %2504 = vmatprep.subr.mxu0 0.0
    %2505 = vmatpush1.msra.mxu0 0.0
    %2506 = vmatprep.subr.mxu0 0.0
    %2507 = vmatpush1.msra.mxu0 0.0
    %2508 = vmatprep.subr.mxu0 0.0
    %2509 = vmatpush1.msra.mxu0 0.0
    %2510 = vmatprep.subr.mxu0 0.0
    %2511 = vmatpush1.msra.mxu0 0.0
    %2512 = vmatprep.subr.mxu0 0.0
    %2513 = vmatpush1.msra.mxu0 0.0
    %2514 = vmatprep.subr.mxu0 0.0
    %2515 = vmatpush1.msra.mxu0 0.0
    %2516 = vmatprep.subr.mxu0 0.0
    %2517 = vmatpush1.msra.mxu0 0.0
    %2518 = vmatprep.subr.mxu0 0.0
    %2519 = vmatpush1.msra.mxu0 0.0
    %2520 = vmatprep.subr.mxu0 0.0
    %2521 = vmatpush1.msra.mxu0 0.0
    %2522 = vmatprep.subr.mxu0 0.0
    %2523 = vmatpush1.msra.mxu0 0.0
    %2524 = vmatprep.subr.mxu0 0.0
    %2525 = vmatpush1.msra.mxu0 0.0
    %2526 = vmatprep.subr.mxu0 0.0
    %2527 = vmatpush1.msra.mxu0 0.0
    %2528 = vmatprep.mubr.f32.mxu0 0.0
    %2529 = vmatmul.mubr.f32.gmra.mrb[0].mxu0 %v2459
    %v2530 = vpop.f32.mrb[0].mxu0
    %v2531 = vadd.f32 0.0, %v2530
    %v2532 = vpop.f32.mrb[0].mxu0
    %2533 = vmatprep.mubr.f32.mxu0 0.0
    %2534 = vmatmul.mubr.f32.gmra.mrb[0].mxu0 %v2462
    %v2535 = vpop.f32.mrb[0].mxu0
    %v2536 = vadd.f32 0.0, %v2535
    %v2537 = vpop.f32.mrb[0].mxu0
    %2538 = vdwg.mxu0
    %v2539 = vadd.f32 %v2454, %v2531
    %v2540 = vadd.f32 %v2455, %v2536
    %v2541 = vadd.f32 %v522, %v2539
    %v2542 = vadd.f32 %v523, %v2540
    %v2543 = vld [vmem:[#allocation17] sm:$0x1]
    %v2545 = vlaneseq
    %v2546 = vshrl.u32 %v2545, 7
    %v2547 = vsub.s32 0, %v2546
    %v2548 = vrot.slane %v2543, %v2547
    %v2550 = vadd.f32 %v2541, %v2548
    %v2551 = vadd.f32 %v2542, %v2548
    %v2552 = vsel %vm277, %v2550, 0.0
    %2553 = vadd.xlane.f32.xlu0 %v2552
    %v2554 = vpop.xlane.xlu0 %2553
    %v2555 = vsel %vm277, %v2551, 0.0
    %2556 = vadd.xlane.f32.xlu0 %v2555
    %v2557 = vpop.xlane.xlu0 %2556
    %v2558 = vmul.f32 %v2554, %v284
    %v2559 = vmul.f32 %v2557, %v284
    %v2560 = vsub.f32 %v2550, %v2558
    %v2561 = vsub.f32 %v2551, %v2559
    %v2562 = vmul.f32 %v2560, %v2560
    %v2563 = vmul.f32 %v2561, %v2561
    %v2564 = vsel %vm277, %v2562, 0.0
    %2565 = vadd.xlane.f32.xlu0 %v2564
    %v2566 = vpop.xlane.xlu0 %2565
    %v2567 = vsel %vm277, %v2563, 0.0
    %2568 = vadd.xlane.f32.xlu0 %v2567
    %v2569 = vpop.xlane.xlu0 %2568
    %v2570 = vmul.f32 %v2566, %v284
    %v2571 = vmul.f32 %v2569, %v284
    %v2572 = vadd.f32 %v2570, 1e-05
    %v2573 = vadd.f32 %v2571, 1e-05
    %v2574 = vrsqrt.pop %v2572
    %v2575 = vrsqrt.pop %v2573
    %v2576 = vmul.f32 %v2560, %v2574
    %v2577 = vmul.f32 %v2561, %v2575
    %v2578 = vld [vmem:[#allocation10 + $0x2] sm:$0x1]
    %v2579 = vlaneseq
    %v2580 = vshrl.u32 %v2579, 7
    %v2581 = vsub.s32 0, %v2580
    %v2582 = vrot.slane %v2578, %v2581
    %v2583 = vmul.f32 %v2576, %v2582
    %v2584 = vmul.f32 %v2577, %v2582
    %v2585 = vld [vmem:[#allocation11 + $0x2] sm:$0x1]
    %v2586 = vlaneseq
    %v2587 = vshrl.u32 %v2586, 7
    %v2588 = vsub.s32 0, %v2587
    %v2589 = vrot.slane %v2585, %v2588
    %v2590 = vadd.f32 %v2583, %v2589
    %v2591 = vadd.f32 %v2584, %v2589
    %v2592 = vld [vmem:[%s14] sm:$0xff]
    %v2593 = vld [vmem:[%s14 + $0x8] sm:$0xff]
    %v2594 = vld [vmem:[%s14 + $0x10] sm:$0xff]
    %v2595 = vld [vmem:[%s14 + $0x18] sm:$0xff]
    %v2596 = vld [vmem:[#allocation19] sm:$0x1]
    %v2598 = vlaneseq
    %v2599 = vshrl.u32 %v2598, 7
    %v2600 = vsub.s32 0, %v2599
    %v2601 = vrot.slane %v2596, %v2600
    %v2604 = vsel %vm277, %v2590, 0
    %v2607 = vsel %vm277, %v2591, 0
    %2609 = vmatprep.subr.mxu0 0.0
    %2610 = vmatpush1.msra.mxu0 %v2592
    %2611 = vmatprep.subr.mxu0 0.0
    %2612 = vmatpush1.msra.mxu0 %v2593
    %2613 = vmatprep.subr.mxu0 0.0
    %2614 = vmatpush1.msra.mxu0 %v2594
    %2615 = vmatprep.subr.mxu0 0.0
    %2616 = vmatpush1.msra.mxu0 %v2595
    %2617 = vmatprep.subr.mxu0 0.0
    %2618 = vmatpush1.msra.mxu0 0.0
    %2619 = vmatprep.subr.mxu0 0.0
    %2620 = vmatpush1.msra.mxu0 0.0
    %2621 = vmatprep.subr.mxu0 0.0
    %2622 = vmatpush1.msra.mxu0 0.0
    %2623 = vmatprep.subr.mxu0 0.0
    %2624 = vmatpush1.msra.mxu0 0.0
    %2625 = vmatprep.subr.mxu0 0.0
    %2626 = vmatpush1.msra.mxu0 0.0
    %2627 = vmatprep.subr.mxu0 0.0
    %2628 = vmatpush1.msra.mxu0 0.0
    %2629 = vmatprep.subr.mxu0 0.0
    %2630 = vmatpush1.msra.mxu0 0.0
    %2631 = vmatprep.subr.mxu0 0.0
    %2632 = vmatpush1.msra.mxu0 0.0
    %2633 = vmatprep.subr.mxu0 0.0
    %2634 = vmatpush1.msra.mxu0 0.0
    %2635 = vmatprep.subr.mxu0 0.0
    %2636 = vmatpush1.msra.mxu0 0.0
    %2637 = vmatprep.subr.mxu0 0.0
    %2638 = vmatpush1.msra.mxu0 0.0
    %2639 = vmatprep.subr.mxu0 0.0
    %2640 = vmatpush1.msra.mxu0 0.0
    %2641 = vmatprep.subr.mxu0 0.0
    %2642 = vmatpush1.msra.mxu0 0.0
    %2643 = vmatprep.subr.mxu0 0.0
    %2644 = vmatpush1.msra.mxu0 0.0
    %2645 = vmatprep.subr.mxu0 0.0
    %2646 = vmatpush1.msra.mxu0 0.0
    %2647 = vmatprep.subr.mxu0 0.0
    %2648 = vmatpush1.msra.mxu0 0.0
    %2649 = vmatprep.subr.mxu0 0.0
    %2650 = vmatpush1.msra.mxu0 0.0
    %2651 = vmatprep.subr.mxu0 0.0
    %2652 = vmatpush1.msra.mxu0 0.0
    %2653 = vmatprep.subr.mxu0 0.0
    %2654 = vmatpush1.msra.mxu0 0.0
    %2655 = vmatprep.subr.mxu0 0.0
    %2656 = vmatpush1.msra.mxu0 0.0
    %2657 = vmatprep.subr.mxu0 0.0
    %2658 = vmatpush1.msra.mxu0 0.0
    %2659 = vmatprep.subr.mxu0 0.0
    %2660 = vmatpush1.msra.mxu0 0.0
    %2661 = vmatprep.subr.mxu0 0.0
    %2662 = vmatpush1.msra.mxu0 0.0
    %2663 = vmatprep.subr.mxu0 0.0
    %2664 = vmatpush1.msra.mxu0 0.0
    %2665 = vmatprep.subr.mxu0 0.0
    %2666 = vmatpush1.msra.mxu0 0.0
    %2667 = vmatprep.subr.mxu0 0.0
    %2668 = vmatpush1.msra.mxu0 0.0
    %2669 = vmatprep.subr.mxu0 0.0
    %2670 = vmatpush1.msra.mxu0 0.0
    %2671 = vmatprep.subr.mxu0 0.0
    %2672 = vmatpush1.msra.mxu0 0.0
    %2673 = vmatprep.mubr.f32.mxu0 0.0
    %2674 = vmatmul.mubr.f32.gmra.mrb[0].mxu0 %v2604
    %v2675 = vpop.f32.mrb[0].mxu0
    %v2676 = vadd.f32 %v2601, %v2675
    %v2677 = vpop.f32.mrb[0].mxu0
    %2678 = vmatprep.mubr.f32.mxu0 0.0
    %2679 = vmatmul.mubr.f32.gmra.mrb[0].mxu0 %v2607
    %v2680 = vpop.f32.mrb[0].mxu0
    %v2681 = vadd.f32 %v2601, %v2680
    %v2682 = vpop.f32.mrb[0].mxu0
    %2683 = vdwg.mxu0
    %v2684 = vld [vmem:[#allocation20] sm:$0xff]
    %v2685 = vld [vmem:[#allocation20 + $0x8] sm:$0xff]
    %v2686 = vld [vmem:[#allocation20 + $0x10] sm:$0xff]
    %v2687 = vld [vmem:[#allocation20 + $0x18] sm:$0xff]
    %v2688 = vld [vmem:[#allocation22] sm:$0x1]
    %v2690 = vlaneseq
    %v2691 = vshrl.u32 %v2690, 7
    %v2692 = vsub.s32 0, %v2691
    %v2693 = vrot.slane %v2688, %v2692
    %2695 = vmatprep.subr.mxu0 0.0
    %2696 = vmatpush1.msra.mxu0 %v2684
    %2697 = vmatprep.subr.mxu0 0.0
    %2698 = vmatpush1.msra.mxu0 %v2685
    %2699 = vmatprep.subr.mxu0 0.0
    %2700 = vmatpush1.msra.mxu0 %v2686
    %2701 = vmatprep.subr.mxu0 0.0
    %2702 = vmatpush1.msra.mxu0 %v2687
    %2703 = vmatprep.subr.mxu0 0.0
    %2704 = vmatpush1.msra.mxu0 0.0
    %2705 = vmatprep.subr.mxu0 0.0
    %2706 = vmatpush1.msra.mxu0 0.0
    %2707 = vmatprep.subr.mxu0 0.0
    %2708 = vmatpush1.msra.mxu0 0.0
    %2709 = vmatprep.subr.mxu0 0.0
    %2710 = vmatpush1.msra.mxu0 0.0
    %2711 = vmatprep.subr.mxu0 0.0
    %2712 = vmatpush1.msra.mxu0 0.0
    %2713 = vmatprep.subr.mxu0 0.0
    %2714 = vmatpush1.msra.mxu0 0.0
    %2715 = vmatprep.subr.mxu0 0.0
    %2716 = vmatpush1.msra.mxu0 0.0
    %2717 = vmatprep.subr.mxu0 0.0
    %2718 = vmatpush1.msra.mxu0 0.0
    %2719 = vmatprep.subr.mxu0 0.0
    %2720 = vmatpush1.msra.mxu0 0.0
    %2721 = vmatprep.subr.mxu0 0.0
    %2722 = vmatpush1.msra.mxu0 0.0
    %2723 = vmatprep.subr.mxu0 0.0
    %2724 = vmatpush1.msra.mxu0 0.0
    %2725 = vmatprep.subr.mxu0 0.0
    %2726 = vmatpush1.msra.mxu0 0.0
    %2727 = vmatprep.subr.mxu0 0.0
    %2728 = vmatpush1.msra.mxu0 0.0
    %2729 = vmatprep.subr.mxu0 0.0
    %2730 = vmatpush1.msra.mxu0 0.0
    %2731 = vmatprep.subr.mxu0 0.0
    %2732 = vmatpush1.msra.mxu0 0.0
    %2733 = vmatprep.subr.mxu0 0.0
    %2734 = vmatpush1.msra.mxu0 0.0
    %2735 = vmatprep.subr.mxu0 0.0
    %2736 = vmatpush1.msra.mxu0 0.0
    %2737 = vmatprep.subr.mxu0 0.0
    %2738 = vmatpush1.msra.mxu0 0.0
    %2739 = vmatprep.subr.mxu0 0.0
    %2740 = vmatpush1.msra.mxu0 0.0
    %2741 = vmatprep.subr.mxu0 0.0
    %2742 = vmatpush1.msra.mxu0 0.0
    %2743 = vmatprep.subr.mxu0 0.0
    %2744 = vmatpush1.msra.mxu0 0.0
    %2745 = vmatprep.subr.mxu0 0.0
    %2746 = vmatpush1.msra.mxu0 0.0
    %2747 = vmatprep.subr.mxu0 0.0
    %2748 = vmatpush1.msra.mxu0 0.0
    %2749 = vmatprep.subr.mxu0 0.0
    %2750 = vmatpush1.msra.mxu0 0.0
    %2751 = vmatprep.subr.mxu0 0.0
    %2752 = vmatpush1.msra.mxu0 0.0
    %2753 = vmatprep.subr.mxu0 0.0
    %2754 = vmatpush1.msra.mxu0 0.0
    %2755 = vmatprep.subr.mxu0 0.0
    %2756 = vmatpush1.msra.mxu0 0.0
    %2757 = vmatprep.subr.mxu0 0.0
    %2758 = vmatpush1.msra.mxu0 0.0
    %2759 = vmatprep.mubr.f32.mxu0 0.0
    %2760 = vmatmul.mubr.f32.gmra.mrb[0].mxu0 %v2604
    %v2761 = vpop.f32.mrb[0].mxu0
    %v2762 = vadd.f32 %v2693, %v2761
    %v2763 = vpop.f32.mrb[0].mxu0
    %2764 = vmatprep.mubr.f32.mxu0 0.0
    %2765 = vmatmul.mubr.f32.gmra.mrb[0].mxu0 %v2607
    %v2766 = vpop.f32.mrb[0].mxu0
    %v2767 = vadd.f32 %v2693, %v2766
    %v2768 = vpop.f32.mrb[0].mxu0
    %2769 = vdwg.mxu0
    %v2770 = vsub.f32 0.0, %v2762
    %v2771 = vsub.f32 0.0, %v2767
    %v2772 = vmul.f32 %v2770, 1.442695
    %v2773 = vpow.pop %v2772
    %v2774 = vmul.f32 %v2771, 1.442695
    %v2775 = vpow.pop %v2774
    %v2776 = vadd.f32 %v2773, 1.0
    %v2777 = vadd.f32 %v2775, 1.0
    %v2778 = vrcp.pop %v2776
    %v2779 = vrcp.pop %v2777
    %v2780 = vmul.f32 %v2676, %v2778
    %v2781 = vmul.f32 %v2681, %v2779
    %v2782 = vlaneseq
    %v2783 = vshrl.u32 %v2782, 7
    %v2784 = vrot.slane %v2780, 5
    %v2785 = vrot.slane %v2781, 5
    %vm2786 = vcmp.lt.s32.totalorder %v2783, 3
    %v2787 = vsel %vm2786, %v2784, %v2785
    %v2788 = vsel %vm2786, %v2785, %v2784
    %vm2789 = vcmp.ge.s32.totalorder %v2783, 3
    %v2790 = vsel %vm2789, %v2788, 0.0
    %v2791 = vsel %vm2789, %v2787, 0.0
    %v2792 = vld [vmem:[#allocation23] sm:$0x1]
    %v2793 = vlaneseq
    %v2794 = vshrl.u32 %v2793, 7
    %v2795 = vsub.s32 0, %v2794
    %v2796 = vrot.slane %v2792, %v2795
    %v2797 = vmul.f32 %v2790, %v2796
    %v2798 = vmul.f32 %v2791, %v2796
    %v2799 = vadd.f32 %v2797, 0.0
    %v2800 = vadd.f32 %v2798, 0.0
    %v2801 = vrot.slane %v2780, 6
    %v2802 = vrot.slane %v2781, 6
    %vm2803 = vcmp.lt.s32.totalorder %v2783, 2
    %v2804 = vsel %vm2803, %v2801, %v2802
    %v2805 = vsel %vm2803, %v2802, %v2801
    %vm2806 = vcmp.ge.s32.totalorder %v2783, 2
    %v2807 = vsel %vm2806, %v2805, 0.0
    %v2808 = vsel %vm2806, %v2804, 0.0
    %v2809 = vld [vmem:[#allocation23 + $0x1] sm:$0x1]
    %v2810 = vlaneseq
    %v2811 = vshrl.u32 %v2810, 7
    %v2812 = vsub.s32 0, %v2811
    %v2813 = vrot.slane %v2809, %v2812
    %v2814 = vmul.f32 %v2807, %v2813
    %v2815 = vmul.f32 %v2808, %v2813
    %v2816 = vadd.f32 %v2799, %v2814
    %v2817 = vadd.f32 %v2800, %v2815
    %v2818 = vrot.slane %v2780, 7
    %v2819 = vrot.slane %v2781, 7
    %vm2820 = vcmp.lt.s32.totalorder %v2783, 1
    %v2821 = vsel %vm2820, %v2818, %v2819
    %v2822 = vsel %vm2820, %v2819, %v2818
    %vm2823 = vcmp.ge.s32.totalorder %v2783, 1
    %v2824 = vsel %vm2823, %v2822, 0.0
    %v2825 = vsel %vm2823, %v2821, 0.0
    %v2826 = vld [vmem:[#allocation23 + $0x2] sm:$0x1]
    %v2827 = vlaneseq
    %v2828 = vshrl.u32 %v2827, 7
    %v2829 = vsub.s32 0, %v2828
    %v2830 = vrot.slane %v2826, %v2829
    %v2831 = vmul.f32 %v2824, %v2830
    %v2832 = vmul.f32 %v2825, %v2830
    %v2833 = vadd.f32 %v2816, %v2831
    %v2834 = vadd.f32 %v2817, %v2832
    %v2835 = vld [vmem:[#allocation23 + $0x3] sm:$0x1]
    %v2836 = vlaneseq
    %v2837 = vshrl.u32 %v2836, 7
    %v2838 = vsub.s32 0, %v2837
    %v2839 = vrot.slane %v2835, %v2838
    %v2840 = vmul.f32 %v2780, %v2839
    %v2841 = vmul.f32 %v2781, %v2839
    %v2842 = vadd.f32 %v2833, %v2840
    %v2843 = vadd.f32 %v2834, %v2841
    %v2844 = vrot.slane %v2780, 1
    %v2845 = vrot.slane %v2781, 1
    %vm2846 = vcmp.lt.s32.totalorder %v2783, 7
    %v2847 = vsel %vm2846, %v2844, %v2845
    %v2848 = vsel %vm2846, %v2845, %v2844
    %v2849 = vsel %vm2846, %v2847, 0.0
    %v2850 = vsel %vm2846, %v2848, 0.0
    %v2851 = vld [vmem:[#allocation23 + $0x4] sm:$0x1]
    %v2852 = vlaneseq
    %v2853 = vshrl.u32 %v2852, 7
    %v2854 = vsub.s32 0, %v2853
    %v2855 = vrot.slane %v2851, %v2854
    %v2856 = vmul.f32 %v2849, %v2855
    %v2857 = vmul.f32 %v2850, %v2855
    %v2858 = vadd.f32 %v2842, %v2856
    %v2859 = vadd.f32 %v2843, %v2857
    %v2860 = vrot.slane %v2780, 2
    %v2861 = vrot.slane %v2781, 2
    %vm2862 = vcmp.lt.s32.totalorder %v2783, 6
    %v2863 = vsel %vm2862, %v2860, %v2861
    %v2864 = vsel %vm2862, %v2861, %v2860
    %v2865 = vsel %vm2862, %v2863, 0.0
    %v2866 = vsel %vm2862, %v2864, 0.0
    %v2867 = vld [vmem:[#allocation23 + $0x5] sm:$0x1]
    %v2868 = vlaneseq
    %v2869 = vshrl.u32 %v2868, 7
    %v2870 = vsub.s32 0, %v2869
    %v2871 = vrot.slane %v2867, %v2870
    %v2872 = vmul.f32 %v2865, %v2871
    %v2873 = vmul.f32 %v2866, %v2871
    %v2874 = vadd.f32 %v2858, %v2872
    %v2875 = vadd.f32 %v2859, %v2873
    %v2876 = vrot.slane %v2780, 3
    %v2877 = vrot.slane %v2781, 3
    %vm2878 = vcmp.lt.s32.totalorder %v2783, 5
    %v2879 = vsel %vm2878, %v2876, %v2877
    %v2880 = vsel %vm2878, %v2877, %v2876
    %v2881 = vsel %vm2878, %v2879, 0.0
    %v2882 = vsel %vm2878, %v2880, 0.0
    %v2883 = vld [vmem:[#allocation23 + $0x6] sm:$0x1]
    %v2884 = vlaneseq
    %v2885 = vshrl.u32 %v2884, 7
    %v2886 = vsub.s32 0, %v2885
    %v2887 = vrot.slane %v2883, %v2886
    %v2888 = vmul.f32 %v2881, %v2887
    %v2889 = vmul.f32 %v2882, %v2887
    %v2890 = vadd.f32 %v2874, %v2888
    %v2891 = vadd.f32 %v2875, %v2889
    %v2892 = vld [vmem:[%s19] sm:$0x1]
    %v2894 = vlaneseq
    %v2895 = vshrl.u32 %v2894, 7
    %v2896 = vsub.s32 0, %v2895
    %v2897 = vrot.slane %v2892, %v2896
    %v2899 = vadd.f32 %v2890, %v2897
    %v2900 = vadd.f32 %v2891, %v2897
    %v2901 = vld [vmem:[%s20] sm:$0x1]
    %v2903 = vlaneseq
    %v2904 = vshrl.u32 %v2903, 7
    %v2905 = vsub.s32 0, %v2904
    %v2906 = vrot.slane %v2901, %v2905
    %v2908 = vmul.f32 %v2899, %v2906
    %v2909 = vmul.f32 %v2900, %v2906
    %v2910 = vld [vmem:[%s21] sm:$0x1]
    %v2912 = vlaneseq
    %v2913 = vshrl.u32 %v2912, 7
    %v2914 = vsub.s32 0, %v2913
    %v2915 = vrot.slane %v2910, %v2914
    %v2917 = vadd.f32 %v2908, %v2915
    %v2918 = vadd.f32 %v2909, %v2915
    %v2919 = vsub.f32 0.0, %v2917
    %v2920 = vsub.f32 0.0, %v2918
    %v2921 = vmul.f32 %v2919, 1.442695
    %v2922 = vpow.pop %v2921
    %v2923 = vmul.f32 %v2920, 1.442695
    %v2924 = vpow.pop %v2923
    %v2925 = vadd.f32 %v2922, 1.0
    %v2926 = vadd.f32 %v2924, 1.0
    %v2927 = vrcp.pop %v2925
    %v2928 = vrcp.pop %v2926
    %v2929 = vmul.f32 %v2917, %v2927
    %v2930 = vmul.f32 %v2918, %v2928
    %v2931 = vld [vmem:[%s22] sm:$0xff]
    %v2932 = vld [vmem:[%s22 + $0x8] sm:$0xff]
    %v2933 = vld [vmem:[%s22 + $0x10] sm:$0xff]
    %v2934 = vld [vmem:[%s22 + $0x18] sm:$0xff]
    %v2935 = vld [vmem:[%s23] sm:$0x1]
    %v2937 = vlaneseq
    %v2938 = vshrl.u32 %v2937, 7
    %v2939 = vsub.s32 0, %v2938
    %v2940 = vrot.slane %v2935, %v2939
    %v2943 = vsel %vm277, %v2929, 0
    %v2946 = vsel %vm277, %v2930, 0
    %2948 = vmatprep.subr.mxu0 0.0
    %2949 = vmatpush1.msra.mxu0 %v2931
    %2950 = vmatprep.subr.mxu0 0.0
    %2951 = vmatpush1.msra.mxu0 %v2932
    %2952 = vmatprep.subr.mxu0 0.0
    %2953 = vmatpush1.msra.mxu0 %v2933
    %2954 = vmatprep.subr.mxu0 0.0
    %2955 = vmatpush1.msra.mxu0 %v2934
    %2956 = vmatprep.subr.mxu0 0.0
    %2957 = vmatpush1.msra.mxu0 0.0
    %2958 = vmatprep.subr.mxu0 0.0
    %2959 = vmatpush1.msra.mxu0 0.0
    %2960 = vmatprep.subr.mxu0 0.0
    %2961 = vmatpush1.msra.mxu0 0.0
    %2962 = vmatprep.subr.mxu0 0.0
    %2963 = vmatpush1.msra.mxu0 0.0
    %2964 = vmatprep.subr.mxu0 0.0
    %2965 = vmatpush1.msra.mxu0 0.0
    %2966 = vmatprep.subr.mxu0 0.0
    %2967 = vmatpush1.msra.mxu0 0.0
    %2968 = vmatprep.subr.mxu0 0.0
    %2969 = vmatpush1.msra.mxu0 0.0
    %2970 = vmatprep.subr.mxu0 0.0
    %2971 = vmatpush1.msra.mxu0 0.0
    %2972 = vmatprep.subr.mxu0 0.0
    %2973 = vmatpush1.msra.mxu0 0.0
    %2974 = vmatprep.subr.mxu0 0.0
    %2975 = vmatpush1.msra.mxu0 0.0
    %2976 = vmatprep.subr.mxu0 0.0
    %2977 = vmatpush1.msra.mxu0 0.0
    %2978 = vmatprep.subr.mxu0 0.0
    %2979 = vmatpush1.msra.mxu0 0.0
    %2980 = vmatprep.subr.mxu0 0.0
    %2981 = vmatpush1.msra.mxu0 0.0
    %2982 = vmatprep.subr.mxu0 0.0
    %2983 = vmatpush1.msra.mxu0 0.0
    %2984 = vmatprep.subr.mxu0 0.0
    %2985 = vmatpush1.msra.mxu0 0.0
    %2986 = vmatprep.subr.mxu0 0.0
    %2987 = vmatpush1.msra.mxu0 0.0
    %2988 = vmatprep.subr.mxu0 0.0
    %2989 = vmatpush1.msra.mxu0 0.0
    %2990 = vmatprep.subr.mxu0 0.0
    %2991 = vmatpush1.msra.mxu0 0.0
    %2992 = vmatprep.subr.mxu0 0.0
    %2993 = vmatpush1.msra.mxu0 0.0
    %2994 = vmatprep.subr.mxu0 0.0
    %2995 = vmatpush1.msra.mxu0 0.0
    %2996 = vmatprep.subr.mxu0 0.0
    %2997 = vmatpush1.msra.mxu0 0.0
    %2998 = vmatprep.subr.mxu0 0.0
    %2999 = vmatpush1.msra.mxu0 0.0
    %3000 = vmatprep.subr.mxu0 0.0
    %3001 = vmatpush1.msra.mxu0 0.0
    %3002 = vmatprep.subr.mxu0 0.0
    %3003 = vmatpush1.msra.mxu0 0.0
    %3004 = vmatprep.subr.mxu0 0.0
    %3005 = vmatpush1.msra.mxu0 0.0
    %3006 = vmatprep.subr.mxu0 0.0
    %3007 = vmatpush1.msra.mxu0 0.0
    %3008 = vmatprep.subr.mxu0 0.0
    %3009 = vmatpush1.msra.mxu0 0.0
    %3010 = vmatprep.subr.mxu0 0.0
    %3011 = vmatpush1.msra.mxu0 0.0
    %3012 = vmatprep.mubr.f32.mxu0 0.0
    %3013 = vmatmul.mubr.f32.gmra.mrb[0].mxu0 %v2943
    %v3014 = vpop.f32.mrb[0].mxu0
    %v3015 = vadd.f32 %v2940, %v3014
    %v3016 = vpop.f32.mrb[0].mxu0
    %3017 = vmatprep.mubr.f32.mxu0 0.0
    %3018 = vmatmul.mubr.f32.gmra.mrb[0].mxu0 %v2946
    %v3019 = vpop.f32.mrb[0].mxu0
    %v3020 = vadd.f32 %v2940, %v3019
    %v3021 = vpop.f32.mrb[0].mxu0
    %3022 = vdwg.mxu0
    %v3023 = vadd.f32 %v2550, %v3015
    %v3024 = vadd.f32 %v2551, %v3020
    %v3025 = vsel %vm277, %v3023, 0.0
    %3026 = vadd.xlane.f32.xlu0 %v3025
    %v3027 = vpop.xlane.xlu0 %3026
    %v3028 = vsel %vm277, %v3024, 0.0
    %3029 = vadd.xlane.f32.xlu0 %v3028
    %v3030 = vpop.xlane.xlu0 %3029
    %v3031 = vmul.f32 %v3027, %v284
    %v3032 = vmul.f32 %v3030, %v284
    %v3033 = vsub.f32 %v3023, %v3031
    %v3034 = vsub.f32 %v3024, %v3032
    %v3035 = vmul.f32 %v3033, %v3033
    %v3036 = vmul.f32 %v3034, %v3034
    %v3037 = vsel %vm277, %v3035, 0.0
    %3038 = vadd.xlane.f32.xlu0 %v3037
    %v3039 = vpop.xlane.xlu0 %3038
    %v3040 = vsel %vm277, %v3036, 0.0
    %3041 = vadd.xlane.f32.xlu0 %v3040
    %v3042 = vpop.xlane.xlu0 %3041
    %v3043 = vmul.f32 %v3039, %v284
    %v3044 = vmul.f32 %v3042, %v284
    %v3045 = vadd.f32 %v3043, 1e-05
    %v3046 = vadd.f32 %v3044, 1e-05
    %v3047 = vrsqrt.pop %v3045
    %v3048 = vrsqrt.pop %v3046
    %v3049 = vmul.f32 %v3033, %v3047
    %v3050 = vmul.f32 %v3034, %v3048
    %v3051 = vld [vmem:[#allocation10 + $0x3] sm:$0x1]
    %v3052 = vlaneseq
    %v3053 = vshrl.u32 %v3052, 7
    %v3054 = vsub.s32 0, %v3053
    %v3055 = vrot.slane %v3051, %v3054
    %v3056 = vmul.f32 %v3049, %v3055
    %v3057 = vmul.f32 %v3050, %v3055
    %v3058 = vld [vmem:[#allocation11 + $0x3] sm:$0x1]
    %v3059 = vlaneseq
    %v3060 = vshrl.u32 %v3059, 7
    %v3061 = vsub.s32 0, %v3060
    %v3062 = vrot.slane %v3058, %v3061
    %v3063 = vadd.f32 %v3056, %v3062
    %v3064 = vadd.f32 %v3057, %v3062
    %v3065 = vld [vmem:[#allocation25] sm:$0xff]
    %v3066 = vld [vmem:[#allocation25 + $0x8] sm:$0xff]
    %v3067 = vld [vmem:[#allocation25 + $0x10] sm:$0xff]
    %v3068 = vld [vmem:[#allocation25 + $0x18] sm:$0xff]
    %v3069 = vld [vmem:[%s25] sm:$0x1]
    %v3071 = vlaneseq
    %v3072 = vshrl.u32 %v3071, 7
    %v3073 = vsub.s32 0, %v3072
    %v3074 = vrot.slane %v3069, %v3073
    %v3077 = vsel %vm277, %v3063, 0
    %v3080 = vsel %vm277, %v3064, 0
    %3082 = vmatprep.subr.mxu0 0.0
    %3083 = vmatpush1.msra.mxu0 %v3065
    %3084 = vmatprep.subr.mxu0 0.0
    %3085 = vmatpush1.msra.mxu0 %v3066
    %3086 = vmatprep.subr.mxu0 0.0
    %3087 = vmatpush1.msra.mxu0 %v3067
    %3088 = vmatprep.subr.mxu0 0.0
    %3089 = vmatpush1.msra.mxu0 %v3068
    %3090 = vmatprep.subr.mxu0 0.0
    %3091 = vmatpush1.msra.mxu0 0.0
    %3092 = vmatprep.subr.mxu0 0.0
    %3093 = vmatpush1.msra.mxu0 0.0
    %3094 = vmatprep.subr.mxu0 0.0
    %3095 = vmatpush1.msra.mxu0 0.0
    %3096 = vmatprep.subr.mxu0 0.0
    %3097 = vmatpush1.msra.mxu0 0.0
    %3098 = vmatprep.subr.mxu0 0.0
    %3099 = vmatpush1.msra.mxu0 0.0
    %3100 = vmatprep.subr.mxu0 0.0
    %3101 = vmatpush1.msra.mxu0 0.0
    %3102 = vmatprep.subr.mxu0 0.0
    %3103 = vmatpush1.msra.mxu0 0.0
    %3104 = vmatprep.subr.mxu0 0.0
    %3105 = vmatpush1.msra.mxu0 0.0
    %3106 = vmatprep.subr.mxu0 0.0
    %3107 = vmatpush1.msra.mxu0 0.0
    %3108 = vmatprep.subr.mxu0 0.0
    %3109 = vmatpush1.msra.mxu0 0.0
    %3110 = vmatprep.subr.mxu0 0.0
    %3111 = vmatpush1.msra.mxu0 0.0
    %3112 = vmatprep.subr.mxu0 0.0
    %3113 = vmatpush1.msra.mxu0 0.0
    %3114 = vmatprep.subr.mxu0 0.0
    %3115 = vmatpush1.msra.mxu0 0.0
    %3116 = vmatprep.subr.mxu0 0.0
    %3117 = vmatpush1.msra.mxu0 0.0
    %3118 = vmatprep.subr.mxu0 0.0
    %3119 = vmatpush1.msra.mxu0 0.0
    %3120 = vmatprep.subr.mxu0 0.0
    %3121 = vmatpush1.msra.mxu0 0.0
    %3122 = vmatprep.subr.mxu0 0.0
    %3123 = vmatpush1.msra.mxu0 0.0
    %3124 = vmatprep.subr.mxu0 0.0
    %3125 = vmatpush1.msra.mxu0 0.0
    %3126 = vmatprep.subr.mxu0 0.0
    %3127 = vmatpush1.msra.mxu0 0.0
    %3128 = vmatprep.subr.mxu0 0.0
    %3129 = vmatpush1.msra.mxu0 0.0
    %3130 = vmatprep.subr.mxu0 0.0
    %3131 = vmatpush1.msra.mxu0 0.0
    %3132 = vmatprep.subr.mxu0 0.0
    %3133 = vmatpush1.msra.mxu0 0.0
    %3134 = vmatprep.subr.mxu0 0.0
    %3135 = vmatpush1.msra.mxu0 0.0
    %3136 = vmatprep.subr.mxu0 0.0
    %3137 = vmatpush1.msra.mxu0 0.0
    %3138 = vmatprep.subr.mxu0 0.0
    %3139 = vmatpush1.msra.mxu0 0.0
    %3140 = vmatprep.subr.mxu0 0.0
    %3141 = vmatpush1.msra.mxu0 0.0
    %3142 = vmatprep.subr.mxu0 0.0
    %3143 = vmatpush1.msra.mxu0 0.0
    %3144 = vmatprep.subr.mxu0 0.0
    %3145 = vmatpush1.msra.mxu0 0.0
    %3146 = vmatprep.mubr.f32.mxu0 0.0
    %3147 = vmatmul.mubr.f32.gmra.mrb[0].mxu0 %v3077
    %v3148 = vpop.f32.mrb[0].mxu0
    %v3149 = vadd.f32 %v3074, %v3148
    %v3150 = vpop.f32.mrb[0].mxu0
    %3151 = vmatprep.mubr.f32.mxu0 0.0
    %3152 = vmatmul.mubr.f32.gmra.mrb[0].mxu0 %v3080
    %v3153 = vpop.f32.mrb[0].mxu0
    %v3154 = vadd.f32 %v3074, %v3153
    %v3155 = vpop.f32.mrb[0].mxu0
    %3156 = vdwg.mxu0
    %v3157 = vsub.f32 0.0, %v3149
    %v3158 = vsub.f32 0.0, %v3154
    %v3159 = vmul.f32 %v3157, 1.442695
    %v3160 = vpow.pop %v3159
    %v3161 = vmul.f32 %v3158, 1.442695
    %v3162 = vpow.pop %v3161
    %v3163 = vadd.f32 %v3160, 1.0
    %v3164 = vadd.f32 %v3162, 1.0
    %v3165 = vrcp.pop %v3163
    %v3166 = vrcp.pop %v3164
    %v3167 = vmul.f32 %v3149, %v3165
    %v3168 = vmul.f32 %v3154, %v3166
    %v3169 = vld [vmem:[%s26] sm:$0xff]
    %v3170 = vld [vmem:[%s26 + $0x8] sm:$0xff]
    %v3171 = vld [vmem:[%s26 + $0x10] sm:$0xff]
    %v3172 = vld [vmem:[%s26 + $0x18] sm:$0xff]
    %v3173 = vld [vmem:[%s26 + $0x20] sm:$0xff]
    %v3174 = vld [vmem:[%s26 + $0x28] sm:$0xff]
    %v3175 = vld [vmem:[%s26 + $0x30] sm:$0xff]
    %v3176 = vld [vmem:[%s26 + $0x38] sm:$0xff]
    %v3177 = vld [vmem:[%s27] sm:$0x1]
    %v3179 = vlaneseq
    %v3180 = vshrl.u32 %v3179, 7
    %v3181 = vsub.s32 0, %v3180
    %v3182 = vrot.slane %v3177, %v3181
    %v3185 = vsel %vm438, %v3167, 0
    %v3188 = vsel %vm438, %v3168, 0
    %3190 = vmatprep.subr.mxu0 0.0
    %3191 = vmatpush1.msra.mxu0 %v3169
    %3192 = vmatprep.subr.mxu0 0.0
    %3193 = vmatpush1.msra.mxu0 %v3170
    %3194 = vmatprep.subr.mxu0 0.0
    %3195 = vmatpush1.msra.mxu0 %v3171
    %3196 = vmatprep.subr.mxu0 0.0
    %3197 = vmatpush1.msra.mxu0 %v3172
    %3198 = vmatprep.subr.mxu0 0.0
    %3199 = vmatpush1.msra.mxu0 %v3173
    %3200 = vmatprep.subr.mxu0 0.0
    %3201 = vmatpush1.msra.mxu0 %v3174
    %3202 = vmatprep.subr.mxu0 0.0
    %3203 = vmatpush1.msra.mxu0 %v3175
    %3204 = vmatprep.subr.mxu0 0.0
    %3205 = vmatpush1.msra.mxu0 %v3176
    %3206 = vmatprep.subr.mxu0 0.0
    %3207 = vmatpush1.msra.mxu0 0.0
    %3208 = vmatprep.subr.mxu0 0.0
    %3209 = vmatpush1.msra.mxu0 0.0
    %3210 = vmatprep.subr.mxu0 0.0
    %3211 = vmatpush1.msra.mxu0 0.0
    %3212 = vmatprep.subr.mxu0 0.0
    %3213 = vmatpush1.msra.mxu0 0.0
    %3214 = vmatprep.subr.mxu0 0.0
    %3215 = vmatpush1.msra.mxu0 0.0
    %3216 = vmatprep.subr.mxu0 0.0
    %3217 = vmatpush1.msra.mxu0 0.0
    %3218 = vmatprep.subr.mxu0 0.0
    %3219 = vmatpush1.msra.mxu0 0.0
    %3220 = vmatprep.subr.mxu0 0.0
    %3221 = vmatpush1.msra.mxu0 0.0
    %3222 = vmatprep.subr.mxu0 0.0
    %3223 = vmatpush1.msra.mxu0 0.0
    %3224 = vmatprep.subr.mxu0 0.0
    %3225 = vmatpush1.msra.mxu0 0.0
    %3226 = vmatprep.subr.mxu0 0.0
    %3227 = vmatpush1.msra.mxu0 0.0
    %3228 = vmatprep.subr.mxu0 0.0
    %3229 = vmatpush1.msra.mxu0 0.0
    %3230 = vmatprep.subr.mxu0 0.0
    %3231 = vmatpush1.msra.mxu0 0.0
    %3232 = vmatprep.subr.mxu0 0.0
    %3233 = vmatpush1.msra.mxu0 0.0
    %3234 = vmatprep.subr.mxu0 0.0
    %3235 = vmatpush1.msra.mxu0 0.0
    %3236 = vmatprep.subr.mxu0 0.0
    %3237 = vmatpush1.msra.mxu0 0.0
    %3238 = vmatprep.subr.mxu0 0.0
    %3239 = vmatpush1.msra.mxu0 0.0
    %3240 = vmatprep.subr.mxu0 0.0
    %3241 = vmatpush1.msra.mxu0 0.0
    %3242 = vmatprep.subr.mxu0 0.0
    %3243 = vmatpush1.msra.mxu0 0.0
    %3244 = vmatprep.subr.mxu0 0.0
    %3245 = vmatpush1.msra.mxu0 0.0
    %3246 = vmatprep.subr.mxu0 0.0
    %3247 = vmatpush1.msra.mxu0 0.0
    %3248 = vmatprep.subr.mxu0 0.0
    %3249 = vmatpush1.msra.mxu0 0.0
    %3250 = vmatprep.subr.mxu0 0.0
    %3251 = vmatpush1.msra.mxu0 0.0
    %3252 = vmatprep.subr.mxu0 0.0
    %3253 = vmatpush1.msra.mxu0 0.0
    %3254 = vmatprep.mubr.f32.mxu0 0.0
    %3255 = vmatmul.mubr.f32.gmra.mrb[0].mxu0 %v3185
    %v3256 = vpop.f32.mrb[0].mxu0
    %v3257 = vadd.f32 %v3182, %v3256
    %v3258 = vpop.f32.mrb[0].mxu0
    %3259 = vmatprep.mubr.f32.mxu0 0.0
    %3260 = vmatmul.mubr.f32.gmra.mrb[0].mxu0 %v3188
    %v3261 = vpop.f32.mrb[0].mxu0
    %v3262 = vadd.f32 %v3182, %v3261
    %v3263 = vpop.f32.mrb[0].mxu0
    %3264 = vdwg.mxu0
    %v3265 = vmul.f32 %v3257, 0.5
    %v3266 = vmul.f32 %v3262, 0.5
    %v3267 = vadd.f32 %v3023, %v3265
    %v3268 = vadd.f32 %v3024, %v3266
    %v3269 = vsel %vm277, %v3267, 0.0
    %3270 = vadd.xlane.f32.xlu0 %v3269
    %v3271 = vpop.xlane.xlu0 %3270
    %v3272 = vsel %vm277, %v3268, 0.0
    %3273 = vadd.xlane.f32.xlu0 %v3272
    %v3274 = vpop.xlane.xlu0 %3273
    %v3275 = vmul.f32 %v3271, %v284
    %v3276 = vmul.f32 %v3274, %v284
    %v3277 = vsub.f32 %v3267, %v3275
    %v3278 = vsub.f32 %v3268, %v3276
    %v3279 = vmul.f32 %v3277, %v3277
    %v3280 = vmul.f32 %v3278, %v3278
    %v3281 = vsel %vm277, %v3279, 0.0
    %3282 = vadd.xlane.f32.xlu0 %v3281
    %v3283 = vpop.xlane.xlu0 %3282
    %v3284 = vsel %vm277, %v3280, 0.0
    %3285 = vadd.xlane.f32.xlu0 %v3284
    %v3286 = vpop.xlane.xlu0 %3285
    %v3287 = vmul.f32 %v3283, %v284
    %v3288 = vmul.f32 %v3286, %v284
    %v3289 = vadd.f32 %v3287, 1e-05
    %v3290 = vadd.f32 %v3288, 1e-05
    %v3291 = vrsqrt.pop %v3289
    %v3292 = vrsqrt.pop %v3290
    %v3293 = vmul.f32 %v3277, %v3291
    %v3294 = vmul.f32 %v3278, %v3292
    %v3295 = vld [vmem:[#allocation10 + $0x4] sm:$0x1]
    %v3296 = vlaneseq
    %v3297 = vshrl.u32 %v3296, 7
    %v3298 = vsub.s32 0, %v3297
    %v3299 = vrot.slane %v3295, %v3298
    %v3300 = vmul.f32 %v3293, %v3299
    %v3301 = vmul.f32 %v3294, %v3299
    %v3302 = vld [vmem:[#allocation11 + $0x4] sm:$0x1]
    %v3303 = vlaneseq
    %v3304 = vshrl.u32 %v3303, 7
    %v3305 = vsub.s32 0, %v3304
    %v3306 = vrot.slane %v3302, %v3305
    %v3307 = vadd.f32 %v3300, %v3306
    %v3308 = vadd.f32 %v3301, %v3306
    %3309 = vst.msk [vmem:[#allocation26] sm:$0xff] %vm277, %v3307
    %3310 = vst.msk [vmem:[#allocation26 + $0x8] sm:$0xff] %vm277, %v3308
    // Predicated region
    $region174: #{tpu_custom_call.1} parent=1 // pred_check
      _
    $region175: #{tpu_custom_call.1} parent=1 // pred_check_branch
      %3312 = sbr.rel (0) target = $region177
    $region176: #{tpu_custom_call.1} parent=1 // pred_region
      %s3314 = ssub.s32 256, 256
      %3315 = vsyncadd [#allocation4], %s3314
      %s3316 = sshll.u32 [#allocation26], 4
      %s3317 = int_to_ptr.vmem [resolvable:$true] %s3316
      %3322 = dma.vmem_to_hbm [thread:$0]  %s3317, 256, %s28, [#allocation4], 128, 128, 8
    $region177: #{tpu_custom_call.1} parent=1 // pred_fallthru
      _
    // Predicated region
    $region178: #{tpu_custom_call.1} parent=1 // pred_check
      _
    $region179: #{tpu_custom_call.1} parent=1 // pred_check_branch
      %3324 = sbr.rel (0) target = $region181
    $region180: #{tpu_custom_call.1} parent=1 // pred_region
      %3325 = dma.done [#allocation4], 256
    $region181: #{tpu_custom_call.1} parent=1 // pred_fallthru
      _
    %3326 = vsyncpa [#allocation3], 1
    %3327 = vsyncpa [#allocation6], 1
    %3328 = vsyncpa [#allocation9], 1
    %3329 = vsyncpa [#allocation12], 1
    %3330 = vsyncpa [#allocation15], 1
    %3331 = vsyncpa [#allocation18], 1
    %3332 = vsyncpa [#allocation21], 1
    %3333 = vsyncpa [#allocation24], 1
    %3334 = vsyncpa [#allocation4], 1

</llo_original>
